<compile_context>
chip_gen: v7x
topology: tpu7x:2x2x1
jax: 0.10.0
libtpu: 0.0.40
codegen_flags: <defaults>
</compile_context>

<pallas_src>
import functools

import jax
import jax.numpy as jnp
from jax.experimental import pallas as pl
from jax.experimental.pallas import tpu as pltpu

_PAD_LEFT = 8  # sublane-aligned start column of the pad-scratch interior


def _relu6(x):
    return jnp.clip(x, 0.0, 6.0)


def inverted_residual_kernel(
    x_ref,      # (1, H, W, Cin_p)   bf16 activation block
    w1_ref,     # (Cin_p, Chid_p)    1x1 expand weight, BN1 scale folded (bf16)
    b1_ref,     # (1, Chid_p)        BN1 bias (f32)
    wdw_ref,    # (9, Chid_p)        3x3 depthwise weight, BN2 scale folded (f32)
    b2_ref,     # (1, Chid_p)        BN2 bias (f32)
    w3_ref,     # (Chid_p, Cout_p)   1x1 project weight, BN3 scale folded (bf16)
    b3_ref,     # (1, Cout_p)        BN3 bias (f32)
    o_ref,      # (1, Ho, Wo, Cout_p) f32
    pad_ref,    # VMEM scratch (H+2, _PAD_LEFT + W + 8, Chid_p), bf16
    *,
    stride,
    identity,
):
    H, W = x_ref.shape[1], x_ref.shape[2]
    Chid = w1_ref.shape[1]
    Cout = w3_ref.shape[1]
    Ho = (H + 2 - 3) // stride + 1
    Wo = (W + 2 - 3) // stride + 1
    Hp, Wp = pad_ref.shape[0], pad_ref.shape[1]
    L = _PAD_LEFT

    # --- re-zero only the halo regions the 9 taps read: two full-width rows
    #     and two 8-wide sublane-aligned column slabs (dense, unmasked stores;
    #     megacore-safe because it runs every grid step) ---------------------
    zrow = jnp.zeros((1, Wp, Chid), jnp.bfloat16)
    pad_ref[0:1, :, :] = zrow
    pad_ref[H + 1:H + 2, :, :] = zrow
    zcols = jnp.zeros((Hp, 8, Chid), jnp.bfloat16)
    pad_ref[:, 0:L, :] = zcols
    pad_ref[:, L + W:L + W + 8, :] = zcols

    x_bf16 = x_ref[0].reshape(H * W, x_ref.shape[3])   # bf16, reused by residual

    # --- 1x1 expand conv (bf16 MXU, f32 acc) + BN bias + ReLU6, stored as
    #     bf16 straight into the sublane-aligned interior of the pad scratch --
    h1 = jnp.dot(x_bf16, w1_ref[...], preferred_element_type=jnp.float32)
    h1 = _relu6(h1 + b1_ref[...])
    pad_ref[1:H + 1, L:L + W, :] = h1.reshape(H, W, Chid).astype(jnp.bfloat16)

    # --- 3x3 depthwise conv (padding=1, stride=s), f32 VPU accumulate;
    #     BN2 scale already folded into the taps, bias seeds the accumulator --
    wdw = wdw_ref[...]
    acc = jnp.broadcast_to(b2_ref[...].reshape(1, 1, Chid), (Ho, Wo, Chid))
    for kh in range(3):
        for kw in range(3):
            if stride == 1:
                tap = pad_ref[kh:kh + Ho, L - 1 + kw:L - 1 + kw + Wo, :]
            else:
                tap = pad_ref[pl.ds(kh, Ho, stride),
                              pl.ds(L - 1 + kw, Wo, stride), :]
            acc = acc + tap.astype(jnp.float32) * wdw[kh * 3 + kw].reshape(1, 1, Chid)
    h2 = _relu6(acc)

    # --- 1x1 project conv (bf16 MXU, f32 acc) + BN bias, linear -------------
    out = jnp.dot(h2.reshape(Ho * Wo, Chid).astype(jnp.bfloat16), w3_ref[...],
                  preferred_element_type=jnp.float32)
    out = out + b3_ref[...]

    if identity:  # static python flag: stride == 1 and inp == oup
        out = out + x_bf16.astype(jnp.float32)

    o_ref[0] = out.reshape(Ho, Wo, Cout).astype(o_ref.dtype)


def _lane_pad(c):
    """Round a channel count up to the next multiple of 128 (full lane tiles)."""
    return -(-c // 128) * 128


def _vreg_padded_bytes(shape, itemsize):
    s = list(shape)
    if len(s) >= 1:
        s[-1] = -(-s[-1] // 128) * 128
    if len(s) >= 2:
        s[-2] = -(-s[-2] // 8) * 8
    n = 1
    for d in s:
        n *= d
    return n * itemsize


def inverted_residual_pallas(x_nchw, params, *, stride):
    """x_nchw: (N, Cin, H, W) float32 -> (N, Cout, Ho, Wo) float32."""
    N, Cin, H, W = x_nchw.shape
    Chid = params["w1"].shape[1]
    Cout = params["w3"].shape[1]
    Ho = (H + 2 - 3) // stride + 1
    Wo = (W + 2 - 3) // stride + 1
    identity = (stride == 1) and (Cin == Cout)

    Cin_p, Chid_p, Cout_p = _lane_pad(Cin), _lane_pad(Chid), _lane_pad(Cout)

    # NHWC, bf16-streamed activations, channels zero-padded to full lane tiles
    # (lane-dense loads/stores; padded channels stay exactly zero end-to-end
    # because the weight/bias pads below are zero).
    x = jnp.transpose(x_nchw, (0, 2, 3, 1)).astype(jnp.bfloat16)
    x = jnp.pad(x, ((0, 0), (0, 0), (0, 0), (0, Cin_p - Cin)))

    def pad_last(a, tgt):
        return jnp.pad(a, [(0, 0)] * (a.ndim - 1) + [(0, tgt - a.shape[-1])])

    # Fold the BN scales into the conv weights (in f32, then cast to bf16 where
    # the MXU consumes them); only the biases remain as in-kernel adds.
    w1 = jnp.pad(params["w1"] * params["s1"],
                 ((0, Cin_p - Cin), (0, Chid_p - Chid))).astype(jnp.bfloat16)
    wdw = pad_last(params["wdw"] * params["s2"], Chid_p)
    w3 = jnp.pad(params["w3"] * params["s3"],
                 ((0, Chid_p - Chid), (0, Cout_p - Cout))).astype(jnp.bfloat16)
    b1 = pad_last(params["b1"], Chid_p)
    b2 = pad_last(params["b2"], Chid_p)
    b3 = pad_last(params["b3"], Cout_p)

    Wp = _PAD_LEFT + W + 8

    # Scoped-VMEM sizing: streamed blocks double-buffered, weights counted once
    # (constant index_map -> grid-resident), capped at 85% of per-core VMEM.
    try:
        vmem_cap = int(pltpu.get_tpu_info().vmem_capacity_bytes)
    except Exception:
        vmem_cap = 64 * 2 ** 20   # conservative fallback (v7x per-core VMEM)
    budget = int(0.85 * vmem_cap)

    resident = sum(_vreg_padded_bytes(a.shape, a.dtype.itemsize)
                   for a in (w1, b1, wdw, b2, w3, b3))
    streamed = (_vreg_padded_bytes((1, H, W, Cin_p), 2)
                + _vreg_padded_bytes((1, Ho, Wo, Cout_p), 4))
    scratch = _vreg_padded_bytes((H + 2, Wp, Chid_p), 2)
    footprint = 2 * streamed + resident + scratch
    vmem_limit = int(min(budget, max(32 * 2 ** 20, footprint + 16 * 2 ** 20)))

    kernel = functools.partial(inverted_residual_kernel,
                               stride=stride, identity=identity)

    def full_spec(a):
        return pl.BlockSpec(a.shape, lambda n, _r=a.ndim: (0,) * _r)

    out_nhwc = pl.pallas_call(
        kernel,
        out_shape=jax.ShapeDtypeStruct((N, Ho, Wo, Cout_p), jnp.float32),
        grid=(N,),
        in_specs=[
            pl.BlockSpec((1, H, W, Cin_p), lambda n: (n, 0, 0, 0)),
            full_spec(w1), full_spec(b1),
            full_spec(wdw), full_spec(b2),
            full_spec(w3), full_spec(b3),
        ],
        out_specs=pl.BlockSpec((1, Ho, Wo, Cout_p), lambda n: (n, 0, 0, 0)),
        scratch_shapes=[pltpu.VMEM((H + 2, Wp, Chid_p), jnp.bfloat16)],
        compiler_params=pltpu.CompilerParams(
            dimension_semantics=("parallel",),
            vmem_limit_bytes=vmem_limit),
    )(x, w1, b1, wdw, b2, w3, b3)

    return jnp.transpose(out_nhwc[:, :, :, :Cout], (0, 3, 1, 2))


def make_params(key, inp, oup, expand_ratio):
    """Deterministic synthetic weights; BN represented as per-channel scale/bias."""
    assert expand_ratio != 1, "only the expand_ratio > 1 branch is implemented"
    hidden = round(inp * expand_ratio)
    ks = jax.random.split(key, 15)

    def bn_fold(kg, kb, km, kv, c, eps=1e-5):
        gamma = 1.0 + 0.1 * jax.random.normal(kg, (c,), jnp.float32)
        beta = 0.1 * jax.random.normal(kb, (c,), jnp.float32)
        mean = 0.1 * jax.random.normal(km, (c,), jnp.float32)
        var = 1.0 + jnp.abs(jax.random.normal(kv, (c,), jnp.float32))
        scale = gamma / jnp.sqrt(var + eps)
        bias = beta - mean * scale
        return scale.reshape(1, c), bias.reshape(1, c)

    w1 = 0.1 * jax.random.normal(ks[0], (inp, hidden), jnp.float32)
    s1, b1 = bn_fold(ks[1], ks[2], ks[3], ks[4], hidden)
    wdw = 0.1 * jax.random.normal(ks[5], (9, hidden), jnp.float32)
    s2, b2 = bn_fold(ks[6], ks[7], ks[8], ks[9], hidden)
    w3 = 0.1 * jax.random.normal(ks[10], (hidden, oup), jnp.float32)
    s3, b3 = bn_fold(ks[11], ks[12], ks[13], ks[14], oup)

    return dict(w1=w1, s1=s1, b1=b1, wdw=wdw, s2=s2, b2=b2,
                w3=w3, s3=s3, b3=b3)


def inverted_residual_ref(x_nchw, params, *, stride):
    """Pure-JAX reference with the same precision choices as the kernel:
    bf16-streamed input, BN scales folded into weights (then bf16 for the two
    1x1 convs), bf16 pad-scratch storage of h1, f32 accumulation everywhere."""
    hi = jax.lax.Precision.HIGHEST
    x = jnp.transpose(x_nchw, (0, 2, 3, 1)).astype(jnp.bfloat16)
    N, H, W, Cin = x.shape
    Chid = params["w1"].shape[1]
    Cout = params["w3"].shape[1]
    Ho = (H + 2 - 3) // stride + 1
    Wo = (W + 2 - 3) // stride + 1
    w1 = (params["w1"] * params["s1"]).astype(jnp.bfloat16)
    wdw = params["wdw"] * params["s2"]
    w3 = (params["w3"] * params["s3"]).astype(jnp.bfloat16)

    h1 = jnp.einsum("nhwc,cd->nhwd", x, w1,
                    preferred_element_type=jnp.float32, precision=hi)
    h1 = jnp.clip(h1 + params["b1"][0], 0.0, 6.0).astype(jnp.bfloat16)
    hp = jnp.pad(h1, ((0, 0), (1, 1), (1, 1), (0, 0)))
    acc = jnp.broadcast_to(params["b2"][0], (N, Ho, Wo, Chid)).astype(jnp.float32)
    for kh in range(3):
        for kw in range(3):
            tap = hp[:, kh:kh + (Ho - 1) * stride + 1:stride,
                     kw:kw + (Wo - 1) * stride + 1:stride, :]
            acc = acc + tap.astype(jnp.float32) * wdw[kh * 3 + kw]
    h2 = jnp.clip(acc, 0.0, 6.0)
    out = jnp.einsum("nhwc,cd->nhwd", h2.astype(jnp.bfloat16), w3,
                     preferred_element_type=jnp.float32, precision=hi)
    out = out + params["b3"][0]
    if stride == 1 and Cin == Cout:
        out = out + x.astype(jnp.float32)
    return jnp.transpose(out, (0, 3, 1, 2))


if __name__ == "__main__":
    inp, oup, stride, expand_ratio = 8, 8, 1, 4   # identity branch active
    key = jax.random.PRNGKey(0)
    kx, kp = jax.random.split(key)
    x = jax.random.normal(kx, (2, inp, 16, 16), jnp.float32)
    params = make_params(kp, inp, oup, expand_ratio)

    y = inverted_residual_pallas(x, params, stride=stride)
    y = jax.block_until_ready(y)

    y_ref = inverted_residual_ref(x, params, stride=stride)
    max_err = float(jnp.max(jnp.abs(y - y_ref)))
    assert y.shape == (2, oup, 16, 16), y.shape
    # Tolerance covers bf16-operand / f32-accumulate divergence between the
    # MXU matmuls and the XLA reference einsums (same folding, same rounding
    # points for x, h1 and h2).
    assert max_err < 2e-2, f"max abs err {max_err}"
    print("KERNEL_OK")
</pallas_src>

<mosaic_0001>
module attributes {stable_mosaic.version = 11 : i64} {
  func.func @inverted_residual_kernel(%arg0: i32, %arg1: memref<1x16x16x128xbf16, #tpu.memory_space<vmem>>, %arg2: memref<128x128xbf16, #tpu.memory_space<vmem>>, %arg3: memref<1x128xf32, #tpu.memory_space<vmem>>, %arg4: memref<9x128xf32, #tpu.memory_space<vmem>>, %arg5: memref<1x128xf32, #tpu.memory_space<vmem>>, %arg6: memref<128x128xbf16, #tpu.memory_space<vmem>>, %arg7: memref<1x128xf32, #tpu.memory_space<vmem>>, %arg8: memref<1x16x16x128xf32, #tpu.memory_space<vmem>>, %arg9: memref<18x32x128xbf16, #tpu.memory_space<vmem>>) attributes {dimension_semantics = [#tpu.dimension_semantics<parallel>], iteration_bounds = array<i64: 2>, scalar_prefetch = 0 : i64, scratch_operands = 1 : i64, tpu.core_type = #tpu.core_type<tc>, window_params = [{transform_indices = @transform_0, window_bounds = array<i64: 1, 16, 16, 128>}, {pipeline_mode = #tpu.pipeline_mode<synchronous>, transform_indices = @transform_1, window_bounds = array<i64: 128, 128>}, {pipeline_mode = #tpu.pipeline_mode<synchronous>, transform_indices = @transform_2, window_bounds = array<i64: 1, 128>}, {pipeline_mode = #tpu.pipeline_mode<synchronous>, transform_indices = @transform_3, window_bounds = array<i64: 9, 128>}, {pipeline_mode = #tpu.pipeline_mode<synchronous>, transform_indices = @transform_4, window_bounds = array<i64: 1, 128>}, {pipeline_mode = #tpu.pipeline_mode<synchronous>, transform_indices = @transform_5, window_bounds = array<i64: 128, 128>}, {pipeline_mode = #tpu.pipeline_mode<synchronous>, transform_indices = @transform_6, window_bounds = array<i64: 1, 128>}, {transform_indices = @transform_7, window_bounds = array<i64: 1, 16, 16, 128>}]} {
    %cst = arith.constant 0.000000e+00 : bf16
    %0 = vector.broadcast %cst : bf16 to vector<1x32x128xbf16>
    %c0 = arith.constant 0 : index
    %c0_0 = arith.constant 0 : index
    %c0_1 = arith.constant 0 : index
    %1 = vector.load %arg9[%c0, %c0_0, %c0_1] : memref<18x32x128xbf16, #tpu.memory_space<vmem>>, vector<1x32x128xbf16>
    tpu.vector_store %arg9[%c0, %c0_0, %c0_1], %0 {strides = array<i32>} : memref<18x32x128xbf16, #tpu.memory_space<vmem>>, vector<1x32x128xbf16>,
    %c17 = arith.constant 17 : index
    %c0_2 = arith.constant 0 : index
    %c0_3 = arith.constant 0 : index
    %2 = vector.load %arg9[%c17, %c0_2, %c0_3] : memref<18x32x128xbf16, #tpu.memory_space<vmem>>, vector<1x32x128xbf16>
    tpu.vector_store %arg9[%c17, %c0_2, %c0_3], %0 {strides = array<i32>} : memref<18x32x128xbf16, #tpu.memory_space<vmem>>, vector<1x32x128xbf16>,
    %cst_4 = arith.constant 0.000000e+00 : bf16
    %3 = vector.broadcast %cst_4 : bf16 to vector<18x8x128xbf16>
    %c0_5 = arith.constant 0 : index
    %c0_6 = arith.constant 0 : index
    %c0_7 = arith.constant 0 : index
    %4 = vector.load %arg9[%c0_5, %c0_6, %c0_7] : memref<18x32x128xbf16, #tpu.memory_space<vmem>>, vector<18x8x128xbf16>
    tpu.vector_store %arg9[%c0_5, %c0_6, %c0_7], %3 {strides = array<i32>} : memref<18x32x128xbf16, #tpu.memory_space<vmem>>, vector<18x8x128xbf16>,
    %c0_8 = arith.constant 0 : index
    %c24 = arith.constant 24 : index
    %c0_9 = arith.constant 0 : index
    %5 = vector.load %arg9[%c0_8, %c24, %c0_9] : memref<18x32x128xbf16, #tpu.memory_space<vmem>>, vector<18x8x128xbf16>
    tpu.vector_store %arg9[%c0_8, %c24, %c0_9], %3 {strides = array<i32>} : memref<18x32x128xbf16, #tpu.memory_space<vmem>>, vector<18x8x128xbf16>,
    %c0_10 = arith.constant 0 : index
    %c0_11 = arith.constant 0 : index
    %c0_12 = arith.constant 0 : index
    %c0_13 = arith.constant 0 : index
    %6 = vector.load %arg1[%c0_10, %c0_11, %c0_12, %c0_13] : memref<1x16x16x128xbf16, #tpu.memory_space<vmem>>, vector<1x16x16x128xbf16>
    %7 = vector.shape_cast %6 : vector<1x16x16x128xbf16> to vector<16x16x128xbf16>
    %8 = vector.shape_cast %7 : vector<16x16x128xbf16> to vector<256x128xbf16>
    %c0_14 = arith.constant 0 : index
    %c0_15 = arith.constant 0 : index
    %9 = vector.load %arg2[%c0_14, %c0_15] : memref<128x128xbf16, #tpu.memory_space<vmem>>, vector<128x128xbf16>
    %cst_16 = arith.constant dense<0.000000e+00> : vector<256x128xf32>
    %10 = tpu.matmul %8, %9, %cst_16 {dimension_numbers = #tpu.dot_dimension_numbers<[1], [0], [0], [1], [0, 0, 1, 1], [], []>} : vector<256x128xbf16>, vector<128x128xbf16>, vector<256x128xf32> -> vector<256x128xf32>
    %c0_17 = arith.constant 0 : index
    %c0_18 = arith.constant 0 : index
    %11 = vector.load %arg3[%c0_17, %c0_18] : memref<1x128xf32, #tpu.memory_space<vmem>>, vector<1x128xf32>
    %12 = vector.broadcast %11 : vector<1x128xf32> to vector<256x128xf32>
    %13 = arith.addf %10, %12 : vector<256x128xf32>
    %cst_19 = arith.constant 0.000000e+00 : f32
    %cst_20 = arith.constant 6.000000e+00 : f32
    %14 = vector.broadcast %cst_19 : f32 to vector<256x128xf32>
    %15 = arith.maximumf %14, %13 : vector<256x128xf32>
    %16 = vector.broadcast %cst_20 : f32 to vector<256x128xf32>
    %17 = arith.minimumf %16, %15 : vector<256x128xf32>
    %18 = vector.shape_cast %17 : vector<256x128xf32> to vector<16x16x128xf32>
    %19 = arith.truncf %18 : vector<16x16x128xf32> to vector<16x16x128xbf16>
    %c1 = arith.constant 1 : index
    %c8 = arith.constant 8 : index
    %c0_21 = arith.constant 0 : index
    %20 = vector.load %arg9[%c1, %c8, %c0_21] : memref<18x32x128xbf16, #tpu.memory_space<vmem>>, vector<16x16x128xbf16>
    tpu.vector_store %arg9[%c1, %c8, %c0_21], %19 {strides = array<i32>} : memref<18x32x128xbf16, #tpu.memory_space<vmem>>, vector<16x16x128xbf16>,
    %c0_22 = arith.constant 0 : index
    %c0_23 = arith.constant 0 : index
    %21 = vector.load %arg4[%c0_22, %c0_23] : memref<9x128xf32, #tpu.memory_space<vmem>>, vector<9x128xf32>
    %c0_24 = arith.constant 0 : index
    %c0_25 = arith.constant 0 : index
    %22 = vector.load %arg5[%c0_24, %c0_25] : memref<1x128xf32, #tpu.memory_space<vmem>>, vector<1x128xf32>
    %23 = vector.shape_cast %22 : vector<1x128xf32> to vector<1x1x128xf32>
    %24 = vector.shape_cast %23 : vector<1x1x128xf32> to vector<1x1x128xf32>
    %25 = vector.broadcast %24 : vector<1x1x128xf32> to vector<16x16x128xf32>
    %c0_26 = arith.constant 0 : index
    %c7 = arith.constant 7 : index
    %c0_27 = arith.constant 0 : index
    %26 = vector.load %arg9[%c0_26, %c7, %c0_27] : memref<18x32x128xbf16, #tpu.memory_space<vmem>>, vector<16x16x128xbf16>
    %27 = arith.extf %26 : vector<16x16x128xbf16> to vector<16x16x128xf32>
    %28 = vector.extract_strided_slice %21 {offsets = [0, 0], sizes = [1, 128], strides = [1, 1]} : vector<9x128xf32> to vector<1x128xf32>
    %29 = vector.shape_cast %28 : vector<1x128xf32> to vector<128xf32>
    %30 = vector.shape_cast %29 : vector<128xf32> to vector<1x1x128xf32>
    %31 = vector.broadcast %30 : vector<1x1x128xf32> to vector<16x16x128xf32>
    %32 = arith.mulf %27, %31 : vector<16x16x128xf32>
    %33 = arith.addf %25, %32 : vector<16x16x128xf32>
    %c0_28 = arith.constant 0 : index
    %c8_29 = arith.constant 8 : index
    %c0_30 = arith.constant 0 : index
    %34 = vector.load %arg9[%c0_28, %c8_29, %c0_30] : memref<18x32x128xbf16, #tpu.memory_space<vmem>>, vector<16x16x128xbf16>
    %35 = arith.extf %34 : vector<16x16x128xbf16> to vector<16x16x128xf32>
    %36 = vector.extract_strided_slice %21 {offsets = [1, 0], sizes = [1, 128], strides = [1, 1]} : vector<9x128xf32> to vector<1x128xf32>
    %37 = vector.shape_cast %36 : vector<1x128xf32> to vector<128xf32>
    %38 = vector.shape_cast %37 : vector<128xf32> to vector<1x1x128xf32>
    %39 = vector.broadcast %38 : vector<1x1x128xf32> to vector<16x16x128xf32>
    %40 = arith.mulf %35, %39 : vector<16x16x128xf32>
    %41 = arith.addf %33, %40 : vector<16x16x128xf32>
    %c0_31 = arith.constant 0 : index
    %c9 = arith.constant 9 : index
    %c0_32 = arith.constant 0 : index
    %42 = vector.load %arg9[%c0_31, %c9, %c0_32] : memref<18x32x128xbf16, #tpu.memory_space<vmem>>, vector<16x16x128xbf16>
    %43 = arith.extf %42 : vector<16x16x128xbf16> to vector<16x16x128xf32>
    %44 = vector.extract_strided_slice %21 {offsets = [2, 0], sizes = [1, 128], strides = [1, 1]} : vector<9x128xf32> to vector<1x128xf32>
    %45 = vector.shape_cast %44 : vector<1x128xf32> to vector<128xf32>
    %46 = vector.shape_cast %45 : vector<128xf32> to vector<1x1x128xf32>
    %47 = vector.broadcast %46 : vector<1x1x128xf32> to vector<16x16x128xf32>
    %48 = arith.mulf %43, %47 : vector<16x16x128xf32>
    %49 = arith.addf %41, %48 : vector<16x16x128xf32>
    %c1_33 = arith.constant 1 : index
    %c7_34 = arith.constant 7 : index
    %c0_35 = arith.constant 0 : index
    %50 = vector.load %arg9[%c1_33, %c7_34, %c0_35] : memref<18x32x128xbf16, #tpu.memory_space<vmem>>, vector<16x16x128xbf16>
    %51 = arith.extf %50 : vector<16x16x128xbf16> to vector<16x16x128xf32>
    %52 = vector.extract_strided_slice %21 {offsets = [3, 0], sizes = [1, 128], strides = [1, 1]} : vector<9x128xf32> to vector<1x128xf32>
    %53 = vector.shape_cast %52 : vector<1x128xf32> to vector<128xf32>
    %54 = vector.shape_cast %53 : vector<128xf32> to vector<1x1x128xf32>
    %55 = vector.broadcast %54 : vector<1x1x128xf32> to vector<16x16x128xf32>
    %56 = arith.mulf %51, %55 : vector<16x16x128xf32>
    %57 = arith.addf %49, %56 : vector<16x16x128xf32>
    %c1_36 = arith.constant 1 : index
    %c8_37 = arith.constant 8 : index
    %c0_38 = arith.constant 0 : index
    %58 = vector.load %arg9[%c1_36, %c8_37, %c0_38] : memref<18x32x128xbf16, #tpu.memory_space<vmem>>, vector<16x16x128xbf16>
    %59 = arith.extf %58 : vector<16x16x128xbf16> to vector<16x16x128xf32>
    %60 = vector.extract_strided_slice %21 {offsets = [4, 0], sizes = [1, 128], strides = [1, 1]} : vector<9x128xf32> to vector<1x128xf32>
    %61 = vector.shape_cast %60 : vector<1x128xf32> to vector<128xf32>
    %62 = vector.shape_cast %61 : vector<128xf32> to vector<1x1x128xf32>
    %63 = vector.broadcast %62 : vector<1x1x128xf32> to vector<16x16x128xf32>
    %64 = arith.mulf %59, %63 : vector<16x16x128xf32>
    %65 = arith.addf %57, %64 : vector<16x16x128xf32>
    %c1_39 = arith.constant 1 : index
    %c9_40 = arith.constant 9 : index
    %c0_41 = arith.constant 0 : index
    %66 = vector.load %arg9[%c1_39, %c9_40, %c0_41] : memref<18x32x128xbf16, #tpu.memory_space<vmem>>, vector<16x16x128xbf16>
    %67 = arith.extf %66 : vector<16x16x128xbf16> to vector<16x16x128xf32>
    %68 = vector.extract_strided_slice %21 {offsets = [5, 0], sizes = [1, 128], strides = [1, 1]} : vector<9x128xf32> to vector<1x128xf32>
    %69 = vector.shape_cast %68 : vector<1x128xf32> to vector<128xf32>
    %70 = vector.shape_cast %69 : vector<128xf32> to vector<1x1x128xf32>
    %71 = vector.broadcast %70 : vector<1x1x128xf32> to vector<16x16x128xf32>
    %72 = arith.mulf %67, %71 : vector<16x16x128xf32>
    %73 = arith.addf %65, %72 : vector<16x16x128xf32>
    %c2 = arith.constant 2 : index
    %c7_42 = arith.constant 7 : index
    %c0_43 = arith.constant 0 : index
    %74 = vector.load %arg9[%c2, %c7_42, %c0_43] : memref<18x32x128xbf16, #tpu.memory_space<vmem>>, vector<16x16x128xbf16>
    %75 = arith.extf %74 : vector<16x16x128xbf16> to vector<16x16x128xf32>
    %76 = vector.extract_strided_slice %21 {offsets = [6, 0], sizes = [1, 128], strides = [1, 1]} : vector<9x128xf32> to vector<1x128xf32>
    %77 = vector.shape_cast %76 : vector<1x128xf32> to vector<128xf32>
    %78 = vector.shape_cast %77 : vector<128xf32> to vector<1x1x128xf32>
    %79 = vector.broadcast %78 : vector<1x1x128xf32> to vector<16x16x128xf32>
    %80 = arith.mulf %75, %79 : vector<16x16x128xf32>
    %81 = arith.addf %73, %80 : vector<16x16x128xf32>
    %c2_44 = arith.constant 2 : index
    %c8_45 = arith.constant 8 : index
    %c0_46 = arith.constant 0 : index
    %82 = vector.load %arg9[%c2_44, %c8_45, %c0_46] : memref<18x32x128xbf16, #tpu.memory_space<vmem>>, vector<16x16x128xbf16>
    %83 = arith.extf %82 : vector<16x16x128xbf16> to vector<16x16x128xf32>
    %84 = vector.extract_strided_slice %21 {offsets = [7, 0], sizes = [1, 128], strides = [1, 1]} : vector<9x128xf32> to vector<1x128xf32>
    %85 = vector.shape_cast %84 : vector<1x128xf32> to vector<128xf32>
    %86 = vector.shape_cast %85 : vector<128xf32> to vector<1x1x128xf32>
    %87 = vector.broadcast %86 : vector<1x1x128xf32> to vector<16x16x128xf32>
    %88 = arith.mulf %83, %87 : vector<16x16x128xf32>
    %89 = arith.addf %81, %88 : vector<16x16x128xf32>
    %c2_47 = arith.constant 2 : index
    %c9_48 = arith.constant 9 : index
    %c0_49 = arith.constant 0 : index
    %90 = vector.load %arg9[%c2_47, %c9_48, %c0_49] : memref<18x32x128xbf16, #tpu.memory_space<vmem>>, vector<16x16x128xbf16>
    %91 = arith.extf %90 : vector<16x16x128xbf16> to vector<16x16x128xf32>
    %92 = vector.extract_strided_slice %21 {offsets = [8, 0], sizes = [1, 128], strides = [1, 1]} : vector<9x128xf32> to vector<1x128xf32>
    %93 = vector.shape_cast %92 : vector<1x128xf32> to vector<128xf32>
    %94 = vector.shape_cast %93 : vector<128xf32> to vector<1x1x128xf32>
    %95 = vector.broadcast %94 : vector<1x1x128xf32> to vector<16x16x128xf32>
    %96 = arith.mulf %91, %95 : vector<16x16x128xf32>
    %97 = arith.addf %89, %96 : vector<16x16x128xf32>
    %cst_50 = arith.constant 0.000000e+00 : f32
    %cst_51 = arith.constant 6.000000e+00 : f32
    %98 = vector.broadcast %cst_50 : f32 to vector<16x16x128xf32>
    %99 = arith.maximumf %98, %97 : vector<16x16x128xf32>
    %100 = vector.broadcast %cst_51 : f32 to vector<16x16x128xf32>
    %101 = arith.minimumf %100, %99 : vector<16x16x128xf32>
    %102 = vector.shape_cast %101 : vector<16x16x128xf32> to vector<256x128xf32>
    %103 = arith.truncf %102 : vector<256x128xf32> to vector<256x128xbf16>
    %c0_52 = arith.constant 0 : index
    %c0_53 = arith.constant 0 : index
    %104 = vector.load %arg6[%c0_52, %c0_53] : memref<128x128xbf16, #tpu.memory_space<vmem>>, vector<128x128xbf16>
    %cst_54 = arith.constant dense<0.000000e+00> : vector<256x128xf32>
    %105 = tpu.matmul %103, %104, %cst_54 {dimension_numbers = #tpu.dot_dimension_numbers<[1], [0], [0], [1], [0, 0, 1, 1], [], []>} : vector<256x128xbf16>, vector<128x128xbf16>, vector<256x128xf32> -> vector<256x128xf32>
    %c0_55 = arith.constant 0 : index
    %c0_56 = arith.constant 0 : index
    %106 = vector.load %arg7[%c0_55, %c0_56] : memref<1x128xf32, #tpu.memory_space<vmem>>, vector<1x128xf32>
    %107 = vector.broadcast %106 : vector<1x128xf32> to vector<256x128xf32>
    %108 = arith.addf %105, %107 : vector<256x128xf32>
    %109 = arith.extf %8 : vector<256x128xbf16> to vector<256x128xf32>
    %110 = arith.addf %108, %109 : vector<256x128xf32>
    %111 = vector.shape_cast %110 : vector<256x128xf32> to vector<16x16x128xf32>
    %c0_57 = arith.constant 0 : index
    %c0_58 = arith.constant 0 : index
    %c0_59 = arith.constant 0 : index
    %c0_60 = arith.constant 0 : index
    %112 = vector.load %arg8[%c0_57, %c0_58, %c0_59, %c0_60] : memref<1x16x16x128xf32, #tpu.memory_space<vmem>>, vector<1x16x16x128xf32>
    %113 = vector.shape_cast %112 : vector<1x16x16x128xf32> to vector<16x16x128xf32>
    %114 = vector.shape_cast %111 : vector<16x16x128xf32> to vector<1x16x16x128xf32>
    tpu.vector_store %arg8[%c0_57, %c0_58, %c0_59, %c0_60], %114 {strides = array<i32>} : memref<1x16x16x128xf32, #tpu.memory_space<vmem>>, vector<1x16x16x128xf32>,
    return
  }
  func.func @transform_0(%arg0: i32) -> (i32, i32, i32, i32) {
    %c0_i32 = arith.constant 0 : i32
    %c0_i32_0 = arith.constant 0 : i32
    %c0_i32_1 = arith.constant 0 : i32
    %c0_i32_2 = arith.constant 0 : i32
    return %arg0, %c0_i32, %c0_i32_0, %c0_i32_1 : i32, i32, i32, i32
  }
  func.func @transform_1(%arg0: i32) -> (i32, i32) {
    %c0_i32 = arith.constant 0 : i32
    %c0_i32_0 = arith.constant 0 : i32
    %c0_i32_1 = arith.constant 0 : i32
    return %c0_i32, %c0_i32_0 : i32, i32
  }
  func.func @transform_2(%arg0: i32) -> (i32, i32) {
    %c0_i32 = arith.constant 0 : i32
    %c0_i32_0 = arith.constant 0 : i32
    %c0_i32_1 = arith.constant 0 : i32
    return %c0_i32, %c0_i32_0 : i32, i32
  }
  func.func @transform_3(%arg0: i32) -> (i32, i32) {
    %c0_i32 = arith.constant 0 : i32
    %c0_i32_0 = arith.constant 0 : i32
    %c0_i32_1 = arith.constant 0 : i32
    return %c0_i32, %c0_i32_0 : i32, i32
  }
  func.func @transform_4(%arg0: i32) -> (i32, i32) {
    %c0_i32 = arith.constant 0 : i32
    %c0_i32_0 = arith.constant 0 : i32
    %c0_i32_1 = arith.constant 0 : i32
    return %c0_i32, %c0_i32_0 : i32, i32
  }
  func.func @transform_5(%arg0: i32) -> (i32, i32) {
    %c0_i32 = arith.constant 0 : i32
    %c0_i32_0 = arith.constant 0 : i32
    %c0_i32_1 = arith.constant 0 : i32
    return %c0_i32, %c0_i32_0 : i32, i32
  }
  func.func @transform_6(%arg0: i32) -> (i32, i32) {
    %c0_i32 = arith.constant 0 : i32
    %c0_i32_0 = arith.constant 0 : i32
    %c0_i32_1 = arith.constant 0 : i32
    return %c0_i32, %c0_i32_0 : i32, i32
  }
  func.func @transform_7(%arg0: i32) -> (i32, i32, i32, i32) {
    %c0_i32 = arith.constant 0 : i32
    %c0_i32_0 = arith.constant 0 : i32
    %c0_i32_1 = arith.constant 0 : i32
    %c0_i32_2 = arith.constant 0 : i32
    return %arg0, %c0_i32, %c0_i32_0, %c0_i32_1 : i32, i32, i32, i32
  }
}

</mosaic_0001>

<llo_original>
// kernel: tpu_custom_call.1
$region0: #{tpu_custom_call.1}
  #allocation0 [shape = 'u32[]', space=smem, size = 0x4, offset = 0x4, fixed_abs, tag = 'smem constant byte address 0x4 - core index']
  #allocation1 [shape = 'u32[144,128]{1,0:T(1,128)}', space=vmem, size = 0x12000, scoped, tag = 'internal scratch']
  #allocation2 [shape = 'bf16[18,32,128]{2,1,0:T(16,128)(2,1)}', space=vmem, size = 0x24000, scoped, tag = 'scratch operand']
  %s0 = inlined_call_operand.hbm [shape: bf16[2,16,16,128], index: 0, kind: input, shape index: {}]
  %s1 = inlined_call_operand.hbm [shape: bf16[128,128], index: 1, kind: input, shape index: {}]
  %s2 = inlined_call_operand.vmem [shape: f32[1,128], index: 2, kind: input, shape index: {}]
  %s3 = inlined_call_operand.hbm [shape: f32[9,128], index: 3, kind: input, shape index: {}]
  %s4 = inlined_call_operand.vmem [shape: f32[1,128], index: 4, kind: input, shape index: {}]
  %s5 = inlined_call_operand.hbm [shape: bf16[128,128], index: 5, kind: input, shape index: {}]
  %s6 = inlined_call_operand.vmem [shape: f32[1,128], index: 6, kind: input, shape index: {}]
  %s7 = inlined_call_operand.hbm [shape: f32[2,16,16,128], index: 7, kind: output, shape index: {}]
  %s8 = sld [smem:[#allocation0]]
  $region77: #{tpu_custom_call.1} parent=0
    _
  %s10 = ssub.s32 1, %s8
  %s11 = scalar_select 0, %s10, %s8
  $region1: #{tpu_custom_call.1} parent=0
    #allocation3 [shape = 'u8[131072]{0}', space=vmem, size = 0x20000, scoped, tag = 'input window, operand 0']
    #allocation4 [shape = 's32[2]{0}', space=sflag, size = 0x8, scoped, tag = 'scoped memory for tpu_custom_call.1']
    #allocation5 [shape = 's32[2]{0}', space=sflag, size = 0x8, scoped, tag = 'scoped memory for tpu_custom_call.1']
    #allocation6 [shape = 'u8[32768]{0}', space=vmem, size = 0x8000, scoped, tag = 'input window, operand 1, single buffered']
    #allocation7 [shape = 's32[1]{0}', space=sflag, size = 0x4, scoped, tag = 'scoped memory for tpu_custom_call.1']
    #allocation8 [shape = 'u8[8192]{0}', space=vmem, size = 0x2000, scoped, tag = 'input window, operand 3, single buffered']
    #allocation9 [shape = 'u8[32768]{0}', space=vmem, size = 0x8000, scoped, tag = 'input window, operand 5, single buffered']
    #allocation10 [shape = 's32[1]{0}', space=sflag, size = 0x4, scoped, tag = 'scoped memory for tpu_custom_call.1']
    #allocation11 [shape = 'u8[262144]{0}', space=vmem, size = 0x40000, scoped, tag = 'output window, operand 0']
    %12 = vsyncpa [#allocation4], 0
    %s13 = scalar_lea.sflag [#allocation4], 1
    %14 = vsyncpa %s13, 0
    %15 = vsyncpa [#allocation7], 0
    %16 = vsyncpa [#allocation10], 0
    %17 = vsyncpa [#allocation5], 0
    %s18 = scalar_lea.sflag [#allocation5], 1
    %19 = vsyncpa %s18, 0
    loop: start=0, step=1, limit=4
    $region2: #{tpu_custom_call.1} parent=1 // loop_pre_header
      _
    $region3: #{tpu_custom_call.1} parent=1 // loop_header
      %s21 = sphi 0, %s25
      %p22 = scmp.ge.s32.totalorder %s21, 4
      %s31 = sphi 0, %s33
      %s34 = sphi 0, %s31
      %s35 = sphi 0, %s34
      %s51 = sphi 0, %s35
      %s55 = sphi 0, %s55
      %s57 = sphi 0, %s55
      %s58 = sphi 0, %s57
      %s72 = sphi 0, %s58
      %s76 = sphi 0, %s76
      %s78 = sphi 0, %s76
      %s79 = sphi 0, %s78
      %s93 = sphi 0, %s79
      %s97 = sphi 0, %s97
      %s99 = sphi 0, %s97
      %s100 = sphi 0, %s99
      %s114 = sphi 0, %s100
      %s118 = sphi 0, %s118
      %s120 = sphi 0, %s118
      %s121 = sphi 0, %s120
      %s135 = sphi 0, %s121
      %s139 = sphi 0, %s139
      %s141 = sphi 0, %s139
      %s142 = sphi 0, %s141
      %s156 = sphi 0, %s142
      %s160 = sphi 0, %s160
      %s162 = sphi 0, %s160
      %s163 = sphi 0, %s162
      %s177 = sphi 0, %s163
      %s183 = sphi 0, %s185
      %s186 = sphi 0, %s183
      %s187 = sphi 0, %s186
      %s203 = sphi 0, %s187
    $region4: #{tpu_custom_call.1} parent=1 // loop_header_branch
      %24 = sbr.rel (%p22) target = $region8
    $region5: #{tpu_custom_call.1} parent=1 // loop_body
      %s26 = ssub.s32 %s21, 1
      %s27 = ssub.s32 %s21, 2
      %s28 = sadd.s32 %s21, 1
      %s29 = ssub.s32 %s21, %s28
      %p30 = scmp.eq.s32.totalorder %s29, 0
      %s32 = sadd.s32 %s31, 1
      %s33 = scalar_select %p30, %s31, %s32
      %p36 = pneg %p30
      %p37 = scmp.eq.s32.totalorder %s21, 1
      %p38 = por %p36, %p37
      %p39 = scmp.ne.s32.totalorder %s31, %s34
      %p40 = scmp.eq.s32.totalorder %s21, 0
      %p41 = por %p39, %p40
      %p42 = scmp.ne.s32.totalorder %s31, %s34
      %p43 = scmp.eq.s32.totalorder %s26, 1
      %p44 = por %p42, %p43
      %p45 = scmp.ne.s32.totalorder %s34, %s35
      %p46 = scmp.eq.s32.totalorder %s26, 0
      %p47 = por %p45, %p46
      %p48 = scmp.ne.s32.totalorder %s34, %s35
      %p49 = scmp.eq.s32.totalorder %s27, 1
      %p50 = por %p48, %p49
      %p52 = scmp.ne.s32.totalorder %s35, %s51
      %p53 = scmp.eq.s32.totalorder %s27, 0
      %p54 = por %p52, %p53
      %s56 = sadd.s32 %s55, 1
      %p59 = scmp.eq.s32.totalorder %s21, 1
      %p60 = scmp.ne.s32.totalorder %s55, %s57
      %p61 = scmp.eq.s32.totalorder %s21, 0
      %p62 = por %p60, %p61
      %p63 = scmp.ne.s32.totalorder %s55, %s57
      %p64 = scmp.eq.s32.totalorder %s26, 1
      %p65 = por %p63, %p64
      %p66 = scmp.ne.s32.totalorder %s57, %s58
      %p67 = scmp.eq.s32.totalorder %s26, 0
      %p68 = por %p66, %p67
      %p69 = scmp.ne.s32.totalorder %s57, %s58
      %p70 = scmp.eq.s32.totalorder %s27, 1
      %p71 = por %p69, %p70
      %p73 = scmp.ne.s32.totalorder %s58, %s72
      %p74 = scmp.eq.s32.totalorder %s27, 0
      %p75 = por %p73, %p74
      %s77 = sadd.s32 %s76, 1
      %p80 = scmp.eq.s32.totalorder %s21, 1
      %p81 = scmp.ne.s32.totalorder %s76, %s78
      %p82 = scmp.eq.s32.totalorder %s21, 0
      %p83 = por %p81, %p82
      %p84 = scmp.ne.s32.totalorder %s76, %s78
      %p85 = scmp.eq.s32.totalorder %s26, 1
      %p86 = por %p84, %p85
      %p87 = scmp.ne.s32.totalorder %s78, %s79
      %p88 = scmp.eq.s32.totalorder %s26, 0
      %p89 = por %p87, %p88
      %p90 = scmp.ne.s32.totalorder %s78, %s79
      %p91 = scmp.eq.s32.totalorder %s27, 1
      %p92 = por %p90, %p91
      %p94 = scmp.ne.s32.totalorder %s79, %s93
      %p95 = scmp.eq.s32.totalorder %s27, 0
      %p96 = por %p94, %p95
      %s98 = sadd.s32 %s97, 1
      %p101 = scmp.eq.s32.totalorder %s21, 1
      %p102 = scmp.ne.s32.totalorder %s97, %s99
      %p103 = scmp.eq.s32.totalorder %s21, 0
      %p104 = por %p102, %p103
      %p105 = scmp.ne.s32.totalorder %s97, %s99
      %p106 = scmp.eq.s32.totalorder %s26, 1
      %p107 = por %p105, %p106
      %p108 = scmp.ne.s32.totalorder %s99, %s100
      %p109 = scmp.eq.s32.totalorder %s26, 0
      %p110 = por %p108, %p109
      %p111 = scmp.ne.s32.totalorder %s99, %s100
      %p112 = scmp.eq.s32.totalorder %s27, 1
      %p113 = por %p111, %p112
      %p115 = scmp.ne.s32.totalorder %s100, %s114
      %p116 = scmp.eq.s32.totalorder %s27, 0
      %p117 = por %p115, %p116
      %s119 = sadd.s32 %s118, 1
      %p122 = scmp.eq.s32.totalorder %s21, 1
      %p123 = scmp.ne.s32.totalorder %s118, %s120
      %p124 = scmp.eq.s32.totalorder %s21, 0
      %p125 = por %p123, %p124
      %p126 = scmp.ne.s32.totalorder %s118, %s120
      %p127 = scmp.eq.s32.totalorder %s26, 1
      %p128 = por %p126, %p127
      %p129 = scmp.ne.s32.totalorder %s120, %s121
      %p130 = scmp.eq.s32.totalorder %s26, 0
      %p131 = por %p129, %p130
      %p132 = scmp.ne.s32.totalorder %s120, %s121
      %p133 = scmp.eq.s32.totalorder %s27, 1
      %p134 = por %p132, %p133
      %p136 = scmp.ne.s32.totalorder %s121, %s135
      %p137 = scmp.eq.s32.totalorder %s27, 0
      %p138 = por %p136, %p137
      %s140 = sadd.s32 %s139, 1
      %p143 = scmp.eq.s32.totalorder %s21, 1
      %p144 = scmp.ne.s32.totalorder %s139, %s141
      %p145 = scmp.eq.s32.totalorder %s21, 0
      %p146 = por %p144, %p145
      %p147 = scmp.ne.s32.totalorder %s139, %s141
      %p148 = scmp.eq.s32.totalorder %s26, 1
      %p149 = por %p147, %p148
      %p150 = scmp.ne.s32.totalorder %s141, %s142
      %p151 = scmp.eq.s32.totalorder %s26, 0
      %p152 = por %p150, %p151
      %p153 = scmp.ne.s32.totalorder %s141, %s142
      %p154 = scmp.eq.s32.totalorder %s27, 1
      %p155 = por %p153, %p154
      %p157 = scmp.ne.s32.totalorder %s142, %s156
      %p158 = scmp.eq.s32.totalorder %s27, 0
      %p159 = por %p157, %p158
      %s161 = sadd.s32 %s160, 1
      %p164 = scmp.eq.s32.totalorder %s21, 1
      %p165 = scmp.ne.s32.totalorder %s160, %s162
      %p166 = scmp.eq.s32.totalorder %s21, 0
      %p167 = por %p165, %p166
      %p168 = scmp.ne.s32.totalorder %s160, %s162
      %p169 = scmp.eq.s32.totalorder %s26, 1
      %p170 = por %p168, %p169
      %p171 = scmp.ne.s32.totalorder %s162, %s163
      %p172 = scmp.eq.s32.totalorder %s26, 0
      %p173 = por %p171, %p172
      %p174 = scmp.ne.s32.totalorder %s162, %s163
      %p175 = scmp.eq.s32.totalorder %s27, 1
      %p176 = por %p174, %p175
      %p178 = scmp.ne.s32.totalorder %s163, %s177
      %p179 = scmp.eq.s32.totalorder %s27, 0
      %p180 = por %p178, %p179
      %s181 = ssub.s32 %s21, %s28
      %p182 = scmp.eq.s32.totalorder %s181, 0
      %s184 = sadd.s32 %s183, 1
      %s185 = scalar_select %p182, %s183, %s184
      %p188 = pneg %p182
      %p189 = scmp.eq.s32.totalorder %s21, 1
      %p190 = por %p188, %p189
      %p191 = scmp.ne.s32.totalorder %s183, %s186
      %p192 = scmp.eq.s32.totalorder %s21, 0
      %p193 = por %p191, %p192
      %p194 = scmp.ne.s32.totalorder %s183, %s186
      %p195 = scmp.eq.s32.totalorder %s26, 1
      %p196 = por %p194, %p195
      %p197 = scmp.ne.s32.totalorder %s186, %s187
      %p198 = scmp.eq.s32.totalorder %s26, 0
      %p199 = por %p197, %p198
      %p200 = scmp.ne.s32.totalorder %s186, %s187
      %p201 = scmp.eq.s32.totalorder %s27, 1
      %p202 = por %p200, %p201
      %p204 = scmp.ne.s32.totalorder %s187, %s203
      %p205 = scmp.eq.s32.totalorder %s27, 0
      %p206 = por %p204, %p205
      %p207 = scmp.le.s32.totalorder 1, %s21
      %p208 = scmp.lt.s32.totalorder %s21, 3
      %p209 = pnand %p207, %p208
      %p210 = pneg %p209
      // Predicated region
      $region9: #{tpu_custom_call.1} parent=5 // pred_check
        _
      $region10: #{tpu_custom_call.1} parent=5 // pred_check_branch
        %212 = sbr.rel (%p209) target = $region12
      $region11: #{tpu_custom_call.1} parent=5 // pred_region
        %s213 = ssub.s32 %s21, 1
        // Predicated region
        $region13: #{tpu_custom_call.1} parent=11 // pred_check
          %p214 = pneg %p68
        $region14: #{tpu_custom_call.1} parent=11 // pred_check_branch
          %216 = sbr.rel (%p214) target = $region16
        $region15: #{tpu_custom_call.1} parent=11 // pred_region
          %s218 = ssub.s32 1024, 1024
          %219 = vsyncadd [#allocation7], %s218
          %s220 = sshll.u32 [#allocation6], 4
          %s221 = int_to_ptr.vmem [resolvable:$true] %s220
          %226 = dma.hbm_to_vmem [thread:$0]  %s1, 1024, %s221, [#allocation7], 64, 64, 4
        $region16: #{tpu_custom_call.1} parent=11 // pred_fallthru
          _
        // Predicated region
        $region17: #{tpu_custom_call.1} parent=11 // pred_check
          %p227 = pneg %p89
        $region18: #{tpu_custom_call.1} parent=11 // pred_check_branch
          %229 = sbr.rel (%p227) target = $region20
        $region19: #{tpu_custom_call.1} parent=11 // pred_region
          _
        $region20: #{tpu_custom_call.1} parent=11 // pred_fallthru
          _
        // Predicated region
        $region21: #{tpu_custom_call.1} parent=11 // pred_check
          %p230 = pneg %p110
        $region22: #{tpu_custom_call.1} parent=11 // pred_check_branch
          %232 = sbr.rel (%p230) target = $region24
        $region23: #{tpu_custom_call.1} parent=11 // pred_region
          %s234 = ssub.s32 256, 256
          %235 = vsyncadd [#allocation7], %s234
          %s236 = sshll.u32 [#allocation8], 4
          %s237 = int_to_ptr.vmem [resolvable:$true] %s236
          %242 = dma.hbm_to_vmem [thread:$0]  %s3, 256, %s237, [#allocation7], 128, 128, 8
        $region24: #{tpu_custom_call.1} parent=11 // pred_fallthru
          _
        // Predicated region
        $region25: #{tpu_custom_call.1} parent=11 // pred_check
          %p243 = pneg %p131
        $region26: #{tpu_custom_call.1} parent=11 // pred_check_branch
          %245 = sbr.rel (%p243) target = $region28
        $region27: #{tpu_custom_call.1} parent=11 // pred_region
          _
        $region28: #{tpu_custom_call.1} parent=11 // pred_fallthru
          _
        // Predicated region
        $region29: #{tpu_custom_call.1} parent=11 // pred_check
          %p246 = pneg %p152
        $region30: #{tpu_custom_call.1} parent=11 // pred_check_branch
          %248 = sbr.rel (%p246) target = $region32
        $region31: #{tpu_custom_call.1} parent=11 // pred_region
          %s250 = ssub.s32 1024, 1024
          %251 = vsyncadd [#allocation10], %s250
          %s252 = sshll.u32 [#allocation9], 4
          %s253 = int_to_ptr.vmem [resolvable:$true] %s252
          %258 = dma.hbm_to_vmem [thread:$0]  %s5, 1024, %s253, [#allocation10], 64, 64, 4
        $region32: #{tpu_custom_call.1} parent=11 // pred_fallthru
          _
        // Predicated region
        $region33: #{tpu_custom_call.1} parent=11 // pred_check
          %p259 = pneg %p173
        $region34: #{tpu_custom_call.1} parent=11 // pred_check_branch
          %261 = sbr.rel (%p259) target = $region36
        $region35: #{tpu_custom_call.1} parent=11 // pred_region
          _
        $region36: #{tpu_custom_call.1} parent=11 // pred_fallthru
          _
      $region12: #{tpu_custom_call.1} parent=5 // pred_fallthru
        _
      %p262 = scmp.lt.s32.totalorder %s21, 2
      // Predicated region
      $region37: #{tpu_custom_call.1} parent=5 // pred_check
        %p263 = pneg %p262
      $region38: #{tpu_custom_call.1} parent=5 // pred_check_branch
        %265 = sbr.rel (%p263) target = $region40
      $region39: #{tpu_custom_call.1} parent=5 // pred_region
        // Predicated region
        $region41: #{tpu_custom_call.1} parent=39 // pred_check
          %p266 = pneg %p41
        $region42: #{tpu_custom_call.1} parent=39 // pred_check_branch
          %268 = sbr.rel (%p266) target = $region44
        $region43: #{tpu_custom_call.1} parent=39 // pred_region
          %s269 = sand.u32 %s31, 1
          %s270 = scalar_lea.sflag [#allocation4], %s269
          %s271 = sand.u32 %s31, 1
          %s272 = smul.addr %s271, 128
          %s273 = scalar_lea.vmem [#allocation3], %s272
          %s275 = ssub.s32 2048, 2048
          %276 = vsyncadd %s270, %s275
          %s277 = smul.addr %s21, 32
          %s278 = smul.addr %s277, 64
          %s279 = scalar_lea.hbm %s0, %s278
          %s280 = sshll.u32 %s273, 4
          %s281 = int_to_ptr.vmem [resolvable:$true] %s280
          %286 = dma.hbm_to_vmem [thread:$0]  %s279, 2048, %s281, %s270, 64, 64, 4
        $region44: #{tpu_custom_call.1} parent=39 // pred_fallthru
          _
      $region40: #{tpu_custom_call.1} parent=5 // pred_fallthru
        _
      %p287 = scmp.le.s32.totalorder 1, %s21
      %p288 = scmp.lt.s32.totalorder %s21, 3
      %p289 = pnand %p287, %p288
      %p290 = pneg %p289
      // Predicated region
      $region45: #{tpu_custom_call.1} parent=5 // pred_check
        _
      $region46: #{tpu_custom_call.1} parent=5 // pred_check_branch
        %292 = sbr.rel (%p289) target = $region48
      $region47: #{tpu_custom_call.1} parent=5 // pred_region
        %s293 = ssub.s32 %s21, 1
        %s294 = sand.u32 %s34, 1
        %s295 = scalar_lea.sflag [#allocation4], %s294
        %s296 = sand.u32 %s34, 1
        %s297 = smul.addr %s296, 128
        %s298 = scalar_lea.vmem [#allocation3], %s297
        // Predicated region
        $region49: #{tpu_custom_call.1} parent=47 // pred_check
          %p299 = pneg %p47
        $region50: #{tpu_custom_call.1} parent=47 // pred_check_branch
          %301 = sbr.rel (%p299) target = $region52
        $region51: #{tpu_custom_call.1} parent=47 // pred_region
          %302 = dma.done %s295, 2048
        $region52: #{tpu_custom_call.1} parent=47 // pred_fallthru
          _
        // Predicated region
        $region53: #{tpu_custom_call.1} parent=47 // pred_check
          %p303 = pneg %p68
        $region54: #{tpu_custom_call.1} parent=47 // pred_check_branch
          %305 = sbr.rel (%p303) target = $region56
        $region55: #{tpu_custom_call.1} parent=47 // pred_region
          %306 = dma.done [#allocation7], 1024
        $region56: #{tpu_custom_call.1} parent=47 // pred_fallthru
          _
        // Predicated region
        $region57: #{tpu_custom_call.1} parent=47 // pred_check
          %p307 = pneg %p110
        $region58: #{tpu_custom_call.1} parent=47 // pred_check_branch
          %309 = sbr.rel (%p307) target = $region60
        $region59: #{tpu_custom_call.1} parent=47 // pred_region
          %310 = dma.done [#allocation7], 256
        $region60: #{tpu_custom_call.1} parent=47 // pred_fallthru
          _
        // Predicated region
        $region61: #{tpu_custom_call.1} parent=47 // pred_check
          %p311 = pneg %p152
        $region62: #{tpu_custom_call.1} parent=47 // pred_check_branch
          %313 = sbr.rel (%p311) target = $region64
        $region63: #{tpu_custom_call.1} parent=47 // pred_region
          %314 = dma.done [#allocation10], 1024
        $region64: #{tpu_custom_call.1} parent=47 // pred_fallthru
          _
        %s315 = sand.u32 %s34, 1
        %s316 = scalar_lea.sflag [#allocation4], %s315
        %s317 = sand.u32 %s34, 1
        %s318 = smul.addr %s317, 128
        %s319 = scalar_lea.vmem [#allocation3], %s318
        %p320 = pneg %p47
        %p321 = pneg %p44
        %p322 = pneg %p68
        %p323 = pneg %p65
        %p324 = pneg %p89
        %p325 = pneg %p86
        %p326 = pneg %p110
        %p327 = pneg %p107
        %p328 = pneg %p131
        %p329 = pneg %p128
        %p330 = pneg %p152
        %p331 = pneg %p149
        %p332 = pneg %p173
        %p333 = pneg %p170
        %p334 = pneg %p199
        %p335 = pneg %p196
        %s336 = sand.u32 %s186, 1
        %s337 = scalar_lea.sflag [#allocation5], %s336
        %s338 = sand.u32 %s186, 1
        %s339 = smul.addr %s338, 256
        %s340 = scalar_lea.vmem [#allocation11], %s339
        %342 = vst [vmem:[#allocation2] sm:$0xff] 0
        %343 = vst [vmem:[#allocation2 + $0x8] sm:$0xff] 0
        %s344 = scalar_lea.vmem [#allocation2], 272
        %345 = vst [vmem:[%s344] sm:$0xff] 0
        %346 = vst [vmem:[%s344 + $0x8] sm:$0xff] 0
        %347 = vst [vmem:[#allocation2] sm:$0xf] 0
        %348 = vst [vmem:[#allocation2 + $0x10] sm:$0xf] 0
        %349 = vst [vmem:[#allocation2 + $0x20] sm:$0xf] 0
        %350 = vst [vmem:[#allocation2 + $0x30] sm:$0xf] 0
        %351 = vst [vmem:[#allocation2 + $0x40] sm:$0xf] 0
        %352 = vst [vmem:[#allocation2 + $0x50] sm:$0xf] 0
        %353 = vst [vmem:[#allocation2 + $0x60] sm:$0xf] 0
        %354 = vst [vmem:[#allocation2 + $0x70] sm:$0xf] 0
        %355 = vst [vmem:[#allocation2 + $0x80] sm:$0xf] 0
        %356 = vst [vmem:[#allocation2 + $0x90] sm:$0xf] 0
        %357 = vst [vmem:[#allocation2 + $0xa0] sm:$0xf] 0
        %358 = vst [vmem:[#allocation2 + $0xb0] sm:$0xf] 0
        %359 = vst [vmem:[#allocation2 + $0xc0] sm:$0xf] 0
        %360 = vst [vmem:[#allocation2 + $0xd0] sm:$0xf] 0
        %361 = vst [vmem:[#allocation2 + $0xe0] sm:$0xf] 0
        %362 = vst [vmem:[#allocation2 + $0xf0] sm:$0xf] 0
        %363 = vst [vmem:[#allocation2 + $0x100] sm:$0xf] 0
        %364 = vst [vmem:[#allocation2 + $0x110] sm:$0xf] 0
        %365 = vst [vmem:[#allocation2 + $0x8] sm:$0xf0] 0
        %366 = vst [vmem:[#allocation2 + $0x18] sm:$0xf0] 0
        %367 = vst [vmem:[#allocation2 + $0x28] sm:$0xf0] 0
        %368 = vst [vmem:[#allocation2 + $0x38] sm:$0xf0] 0
        %369 = vst [vmem:[#allocation2 + $0x48] sm:$0xf0] 0
        %370 = vst [vmem:[#allocation2 + $0x58] sm:$0xf0] 0
        %371 = vst [vmem:[#allocation2 + $0x68] sm:$0xf0] 0
        %372 = vst [vmem:[#allocation2 + $0x78] sm:$0xf0] 0
        %373 = vst [vmem:[#allocation2 + $0x88] sm:$0xf0] 0
        %374 = vst [vmem:[#allocation2 + $0x98] sm:$0xf0] 0
        %375 = vst [vmem:[#allocation2 + $0xa8] sm:$0xf0] 0
        %376 = vst [vmem:[#allocation2 + $0xb8] sm:$0xf0] 0
        %377 = vst [vmem:[#allocation2 + $0xc8] sm:$0xf0] 0
        %378 = vst [vmem:[#allocation2 + $0xd8] sm:$0xf0] 0
        %379 = vst [vmem:[#allocation2 + $0xe8] sm:$0xf0] 0
        %380 = vst [vmem:[#allocation2 + $0xf8] sm:$0xf0] 0
        %381 = vst [vmem:[#allocation2 + $0x108] sm:$0xf0] 0
        %382 = vst [vmem:[#allocation2 + $0x118] sm:$0xf0] 0
        %v383 = vld [vmem:[%s298] sm:$0xf]
        %v384 = vld [vmem:[%s298 + $0x4] sm:$0xf]
        %v385 = vld [vmem:[%s298 + $0x8] sm:$0xf]
        %v386 = vld [vmem:[%s298 + $0xc] sm:$0xf]
        %v387 = vld [vmem:[%s298 + $0x10] sm:$0xf]
        %v388 = vld [vmem:[%s298 + $0x14] sm:$0xf]
        %v389 = vld [vmem:[%s298 + $0x18] sm:$0xf]
        %v390 = vld [vmem:[%s298 + $0x1c] sm:$0xf]
        %v391 = vld [vmem:[%s298 + $0x20] sm:$0xf]
        %v392 = vld [vmem:[%s298 + $0x24] sm:$0xf]
        %v393 = vld [vmem:[%s298 + $0x28] sm:$0xf]
        %v394 = vld [vmem:[%s298 + $0x2c] sm:$0xf]
        %v395 = vld [vmem:[%s298 + $0x30] sm:$0xf]
        %v396 = vld [vmem:[%s298 + $0x34] sm:$0xf]
        %v397 = vld [vmem:[%s298 + $0x38] sm:$0xf]
        %v398 = vld [vmem:[%s298 + $0x3c] sm:$0xf]
        %v399 = vld [vmem:[%s298 + $0x40] sm:$0xf]
        %v400 = vld [vmem:[%s298 + $0x44] sm:$0xf]
        %v401 = vld [vmem:[%s298 + $0x48] sm:$0xf]
        %v402 = vld [vmem:[%s298 + $0x4c] sm:$0xf]
        %v403 = vld [vmem:[%s298 + $0x50] sm:$0xf]
        %v404 = vld [vmem:[%s298 + $0x54] sm:$0xf]
        %v405 = vld [vmem:[%s298 + $0x58] sm:$0xf]
        %v406 = vld [vmem:[%s298 + $0x5c] sm:$0xf]
        %v407 = vld [vmem:[%s298 + $0x60] sm:$0xf]
        %v408 = vld [vmem:[%s298 + $0x64] sm:$0xf]
        %v409 = vld [vmem:[%s298 + $0x68] sm:$0xf]
        %v410 = vld [vmem:[%s298 + $0x6c] sm:$0xf]
        %v411 = vld [vmem:[%s298 + $0x70] sm:$0xf]
        %v412 = vld [vmem:[%s298 + $0x74] sm:$0xf]
        %v413 = vld [vmem:[%s298 + $0x78] sm:$0xf]
        %v414 = vld [vmem:[%s298 + $0x7c] sm:$0xf]
        %v415 = vld [vmem:[#allocation6] sm:$0xf]
        %v416 = vld [vmem:[#allocation6 + $0x4] sm:$0xf]
        %v417 = vld [vmem:[#allocation6 + $0x8] sm:$0xf]
        %v418 = vld [vmem:[#allocation6 + $0xc] sm:$0xf]
        %v419 = vld [vmem:[#allocation6 + $0x10] sm:$0xf]
        %v420 = vld [vmem:[#allocation6 + $0x14] sm:$0xf]
        %v421 = vld [vmem:[#allocation6 + $0x18] sm:$0xf]
        %v422 = vld [vmem:[#allocation6 + $0x1c] sm:$0xf]
        %v423 = vld [vmem:[#allocation6 + $0x20] sm:$0xf]
        %v424 = vld [vmem:[#allocation6 + $0x24] sm:$0xf]
        %v425 = vld [vmem:[#allocation6 + $0x28] sm:$0xf]
        %v426 = vld [vmem:[#allocation6 + $0x2c] sm:$0xf]
        %v427 = vld [vmem:[#allocation6 + $0x30] sm:$0xf]
        %v428 = vld [vmem:[#allocation6 + $0x34] sm:$0xf]
        %v429 = vld [vmem:[#allocation6 + $0x38] sm:$0xf]
        %v430 = vld [vmem:[#allocation6 + $0x3c] sm:$0xf]
        %v431 = vld [vmem:[%s2] sm:$0x1]
        %v433 = vlaneseq
        %v434 = vshrl.u32 %v433, 7
        %v435 = vsub.s32 0, %v434
        %v436 = vrot.slane %v431, %v435
        %v470 = vunpack.c.l.b16 %v383
        %v471 = vunpack.c.l.b16 %v384
        %v472 = vunpack.c.l.b16 %v385
        %v473 = vunpack.c.l.b16 %v386
        %v474 = vunpack.c.l.b16 %v387
        %v475 = vunpack.c.l.b16 %v388
        %v476 = vunpack.c.l.b16 %v389
        %v477 = vunpack.c.l.b16 %v390
        %v478 = vunpack.c.l.b16 %v391
        %v479 = vunpack.c.l.b16 %v392
        %v480 = vunpack.c.l.b16 %v393
        %v481 = vunpack.c.l.b16 %v394
        %v482 = vunpack.c.l.b16 %v395
        %v483 = vunpack.c.l.b16 %v396
        %v484 = vunpack.c.l.b16 %v397
        %v485 = vunpack.c.l.b16 %v398
        %v486 = vunpack.c.l.b16 %v399
        %v487 = vunpack.c.l.b16 %v400
        %v488 = vunpack.c.l.b16 %v401
        %v489 = vunpack.c.l.b16 %v402
        %v490 = vunpack.c.l.b16 %v403
        %v491 = vunpack.c.l.b16 %v404
        %v492 = vunpack.c.l.b16 %v405
        %v493 = vunpack.c.l.b16 %v406
        %v494 = vunpack.c.l.b16 %v407
        %v495 = vunpack.c.l.b16 %v408
        %v496 = vunpack.c.l.b16 %v409
        %v497 = vunpack.c.l.b16 %v410
        %v498 = vunpack.c.l.b16 %v411
        %v499 = vunpack.c.l.b16 %v412
        %v500 = vunpack.c.l.b16 %v413
        %v501 = vunpack.c.l.b16 %v414
        %v502 = vpack.c.b16 %v471, %v470
        %v503 = vpack.c.b16 %v473, %v472
        %v504 = vpack.c.b16 %v475, %v474
        %v505 = vpack.c.b16 %v477, %v476
        %v506 = vpack.c.b16 %v479, %v478
        %v507 = vpack.c.b16 %v481, %v480
        %v508 = vpack.c.b16 %v483, %v482
        %v509 = vpack.c.b16 %v485, %v484
        %v510 = vpack.c.b16 %v487, %v486
        %v511 = vpack.c.b16 %v489, %v488
        %v512 = vpack.c.b16 %v491, %v490
        %v513 = vpack.c.b16 %v493, %v492
        %v514 = vpack.c.b16 %v495, %v494
        %v515 = vpack.c.b16 %v497, %v496
        %v516 = vpack.c.b16 %v499, %v498
        %v517 = vpack.c.b16 %v501, %v500
        %v550 = vunpack.c.l.b16 %v415
        %v551 = vunpack.c.l.b16 %v416
        %v552 = vunpack.c.l.b16 %v417
        %v553 = vunpack.c.l.b16 %v418
        %v554 = vunpack.c.l.b16 %v419
        %v555 = vunpack.c.l.b16 %v420
        %v556 = vunpack.c.l.b16 %v421
        %v557 = vunpack.c.l.b16 %v422
        %v558 = vunpack.c.l.b16 %v423
        %v559 = vunpack.c.l.b16 %v424
        %v560 = vunpack.c.l.b16 %v425
        %v561 = vunpack.c.l.b16 %v426
        %v562 = vunpack.c.l.b16 %v427
        %v563 = vunpack.c.l.b16 %v428
        %v564 = vunpack.c.l.b16 %v429
        %v565 = vunpack.c.l.b16 %v430
        %v566 = vpack.c.b16 %v551, %v550
        %v567 = vpack.c.b16 %v553, %v552
        %v568 = vpack.c.b16 %v555, %v554
        %v569 = vpack.c.b16 %v557, %v556
        %v570 = vpack.c.b16 %v559, %v558
        %v571 = vpack.c.b16 %v561, %v560
        %v572 = vpack.c.b16 %v563, %v562
        %v573 = vpack.c.b16 %v565, %v564
        %582 = vmatprep.subr.bf16.mxu0 0
        %583 = vmatpush1.bf16.msra.mxu0 %v566
        %584 = vmatprep.subr.bf16.mxu0 0
        %585 = vmatpush1.bf16.msra.mxu0 %v567
        %586 = vmatprep.subr.bf16.mxu0 0
        %587 = vmatpush1.bf16.msra.mxu0 %v568
        %588 = vmatprep.subr.bf16.mxu0 0
        %589 = vmatpush1.bf16.msra.mxu0 %v569
        %590 = vmatprep.subr.bf16.mxu0 0
        %591 = vmatpush1.bf16.msra.mxu0 %v570
        %592 = vmatprep.subr.bf16.mxu0 0
        %593 = vmatpush1.bf16.msra.mxu0 %v571
        %594 = vmatprep.subr.bf16.mxu0 0
        %595 = vmatpush1.bf16.msra.mxu0 %v572
        %596 = vmatprep.subr.bf16.mxu0 0
        %597 = vmatpush1.bf16.msra.mxu0 %v573
        %598 = vmatprep.subr.bf16.mxu0 0
        %599 = vmatpush1.bf16.msra.mxu0 0
        %600 = vmatprep.subr.bf16.mxu0 0
        %601 = vmatpush1.bf16.msra.mxu0 0
        %602 = vmatprep.subr.bf16.mxu0 0
        %603 = vmatpush1.bf16.msra.mxu0 0
        %604 = vmatprep.subr.bf16.mxu0 0
        %605 = vmatpush1.bf16.msra.mxu0 0
        %606 = vmatprep.subr.bf16.mxu0 0
        %607 = vmatpush1.bf16.msra.mxu0 0
        %608 = vmatprep.subr.bf16.mxu0 0
        %609 = vmatpush1.bf16.msra.mxu0 0
        %610 = vmatprep.subr.bf16.mxu0 0
        %611 = vmatpush1.bf16.msra.mxu0 0
        %612 = vmatprep.subr.bf16.mxu0 0
        %613 = vmatpush1.bf16.msra.mxu0 0
        %614 = vmatprep.mubr.bf16.mxu0 0
        %615 = vmatmul.mubr.bf16.gmra.mrb[0].mxu0 %v502
        %v616 = vpop.f32.mrb[0].mxu0
        %v617 = vadd.f32 %v436, %v616
        %v618 = vpop.f32.mrb[0].mxu0
        %v619 = vpop.f32.mrb[0].mxu0
        %v620 = vadd.f32 %v436, %v619
        %v621 = vpop.f32.mrb[0].mxu0
        %622 = vmatprep.mubr.bf16.mxu0 0
        %623 = vmatmul.mubr.bf16.gmra.mrb[0].mxu0 %v503
        %v624 = vpop.f32.mrb[0].mxu0
        %v625 = vadd.f32 %v436, %v624
        %v626 = vpop.f32.mrb[0].mxu0
        %v627 = vpop.f32.mrb[0].mxu0
        %v628 = vadd.f32 %v436, %v627
        %v629 = vpop.f32.mrb[0].mxu0
        %630 = vmatprep.mubr.bf16.mxu0 0
        %631 = vmatmul.mubr.bf16.gmra.mrb[0].mxu0 %v504
        %v632 = vpop.f32.mrb[0].mxu0
        %v633 = vadd.f32 %v436, %v632
        %v634 = vpop.f32.mrb[0].mxu0
        %v635 = vpop.f32.mrb[0].mxu0
        %v636 = vadd.f32 %v436, %v635
        %v637 = vpop.f32.mrb[0].mxu0
        %638 = vmatprep.mubr.bf16.mxu0 0
        %639 = vmatmul.mubr.bf16.gmra.mrb[0].mxu0 %v505
        %v640 = vpop.f32.mrb[0].mxu0
        %v641 = vadd.f32 %v436, %v640
        %v642 = vpop.f32.mrb[0].mxu0
        %v643 = vpop.f32.mrb[0].mxu0
        %v644 = vadd.f32 %v436, %v643
        %v645 = vpop.f32.mrb[0].mxu0
        %646 = vmatprep.mubr.bf16.mxu0 0
        %647 = vmatmul.mubr.bf16.gmra.mrb[0].mxu0 %v506
        %v648 = vpop.f32.mrb[0].mxu0
        %v649 = vadd.f32 %v436, %v648
        %v650 = vpop.f32.mrb[0].mxu0
        %v651 = vpop.f32.mrb[0].mxu0
        %v652 = vadd.f32 %v436, %v651
        %v653 = vpop.f32.mrb[0].mxu0
        %654 = vmatprep.mubr.bf16.mxu0 0
        %655 = vmatmul.mubr.bf16.gmra.mrb[0].mxu0 %v507
        %v656 = vpop.f32.mrb[0].mxu0
        %v657 = vadd.f32 %v436, %v656
        %v658 = vpop.f32.mrb[0].mxu0
        %v659 = vpop.f32.mrb[0].mxu0
        %v660 = vadd.f32 %v436, %v659
        %v661 = vpop.f32.mrb[0].mxu0
        %662 = vmatprep.mubr.bf16.mxu0 0
        %663 = vmatmul.mubr.bf16.gmra.mrb[0].mxu0 %v508
        %v664 = vpop.f32.mrb[0].mxu0
        %v665 = vadd.f32 %v436, %v664
        %v666 = vpop.f32.mrb[0].mxu0
        %v667 = vpop.f32.mrb[0].mxu0
        %v668 = vadd.f32 %v436, %v667
        %v669 = vpop.f32.mrb[0].mxu0
        %670 = vmatprep.mubr.bf16.mxu0 0
        %671 = vmatmul.mubr.bf16.gmra.mrb[0].mxu0 %v509
        %v672 = vpop.f32.mrb[0].mxu0
        %v673 = vadd.f32 %v436, %v672
        %v674 = vpop.f32.mrb[0].mxu0
        %v675 = vpop.f32.mrb[0].mxu0
        %v676 = vadd.f32 %v436, %v675
        %v677 = vpop.f32.mrb[0].mxu0
        %678 = vmatprep.mubr.bf16.mxu0 0
        %679 = vmatmul.mubr.bf16.gmra.mrb[0].mxu0 %v510
        %v680 = vpop.f32.mrb[0].mxu0
        %v681 = vadd.f32 %v436, %v680
        %v682 = vpop.f32.mrb[0].mxu0
        %v683 = vpop.f32.mrb[0].mxu0
        %v684 = vadd.f32 %v436, %v683
        %v685 = vpop.f32.mrb[0].mxu0
        %686 = vmatprep.mubr.bf16.mxu0 0
        %687 = vmatmul.mubr.bf16.gmra.mrb[0].mxu0 %v511
        %v688 = vpop.f32.mrb[0].mxu0
        %v689 = vadd.f32 %v436, %v688
        %v690 = vpop.f32.mrb[0].mxu0
        %v691 = vpop.f32.mrb[0].mxu0
        %v692 = vadd.f32 %v436, %v691
        %v693 = vpop.f32.mrb[0].mxu0
        %694 = vmatprep.mubr.bf16.mxu0 0
        %695 = vmatmul.mubr.bf16.gmra.mrb[0].mxu0 %v512
        %v696 = vpop.f32.mrb[0].mxu0
        %v697 = vadd.f32 %v436, %v696
        %v698 = vpop.f32.mrb[0].mxu0
        %v699 = vpop.f32.mrb[0].mxu0
        %v700 = vadd.f32 %v436, %v699
        %v701 = vpop.f32.mrb[0].mxu0
        %702 = vmatprep.mubr.bf16.mxu0 0
        %703 = vmatmul.mubr.bf16.gmra.mrb[0].mxu0 %v513
        %v704 = vpop.f32.mrb[0].mxu0
        %v705 = vadd.f32 %v436, %v704
        %v706 = vpop.f32.mrb[0].mxu0
        %v707 = vpop.f32.mrb[0].mxu0
        %v708 = vadd.f32 %v436, %v707
        %v709 = vpop.f32.mrb[0].mxu0
        %710 = vmatprep.mubr.bf16.mxu0 0
        %711 = vmatmul.mubr.bf16.gmra.mrb[0].mxu0 %v514
        %v712 = vpop.f32.mrb[0].mxu0
        %v713 = vadd.f32 %v436, %v712
        %v714 = vpop.f32.mrb[0].mxu0
        %v715 = vpop.f32.mrb[0].mxu0
        %v716 = vadd.f32 %v436, %v715
        %v717 = vpop.f32.mrb[0].mxu0
        %718 = vmatprep.mubr.bf16.mxu0 0
        %719 = vmatmul.mubr.bf16.gmra.mrb[0].mxu0 %v515
        %v720 = vpop.f32.mrb[0].mxu0
        %v721 = vadd.f32 %v436, %v720
        %v722 = vpop.f32.mrb[0].mxu0
        %v723 = vpop.f32.mrb[0].mxu0
        %v724 = vadd.f32 %v436, %v723
        %v725 = vpop.f32.mrb[0].mxu0
        %726 = vmatprep.mubr.bf16.mxu0 0
        %727 = vmatmul.mubr.bf16.gmra.mrb[0].mxu0 %v516
        %v728 = vpop.f32.mrb[0].mxu0
        %v729 = vadd.f32 %v436, %v728
        %v730 = vpop.f32.mrb[0].mxu0
        %v731 = vpop.f32.mrb[0].mxu0
        %v732 = vadd.f32 %v436, %v731
        %v733 = vpop.f32.mrb[0].mxu0
        %734 = vmatprep.mubr.bf16.mxu0 0
        %735 = vmatmul.mubr.bf16.gmra.mrb[0].mxu0 %v517
        %v736 = vpop.f32.mrb[0].mxu0
        %v737 = vadd.f32 %v436, %v736
        %v738 = vpop.f32.mrb[0].mxu0
        %v739 = vpop.f32.mrb[0].mxu0
        %v740 = vadd.f32 %v436, %v739
        %v741 = vpop.f32.mrb[0].mxu0
        %742 = vdwg.mxu0
        %v743 = vmax.f32 %v617, 0.0
        %v744 = vmax.f32 %v620, 0.0
        %v745 = vmax.f32 %v625, 0.0
        %v746 = vmax.f32 %v628, 0.0
        %v747 = vmax.f32 %v633, 0.0
        %v748 = vmax.f32 %v636, 0.0
        %v749 = vmax.f32 %v641, 0.0
        %v750 = vmax.f32 %v644, 0.0
        %v751 = vmax.f32 %v649, 0.0
        %v752 = vmax.f32 %v652, 0.0
        %v753 = vmax.f32 %v657, 0.0
        %v754 = vmax.f32 %v660, 0.0
        %v755 = vmax.f32 %v665, 0.0
        %v756 = vmax.f32 %v668, 0.0
        %v757 = vmax.f32 %v673, 0.0
        %v758 = vmax.f32 %v676, 0.0
        %v759 = vmax.f32 %v681, 0.0
        %v760 = vmax.f32 %v684, 0.0
        %v761 = vmax.f32 %v689, 0.0
        %v762 = vmax.f32 %v692, 0.0
        %v763 = vmax.f32 %v697, 0.0
        %v764 = vmax.f32 %v700, 0.0
        %v765 = vmax.f32 %v705, 0.0
        %v766 = vmax.f32 %v708, 0.0
        %v767 = vmax.f32 %v713, 0.0
        %v768 = vmax.f32 %v716, 0.0
        %v769 = vmax.f32 %v721, 0.0
        %v770 = vmax.f32 %v724, 0.0
        %v771 = vmax.f32 %v729, 0.0
        %v772 = vmax.f32 %v732, 0.0
        %v773 = vmax.f32 %v737, 0.0
        %v774 = vmax.f32 %v740, 0.0
        %v775 = vmin.f32 %v743, 6.0
        %v776 = vmin.f32 %v744, 6.0
        %v777 = vmin.f32 %v745, 6.0
        %v778 = vmin.f32 %v746, 6.0
        %v779 = vmin.f32 %v747, 6.0
        %v780 = vmin.f32 %v748, 6.0
        %v781 = vmin.f32 %v749, 6.0
        %v782 = vmin.f32 %v750, 6.0
        %v783 = vmin.f32 %v751, 6.0
        %v784 = vmin.f32 %v752, 6.0
        %v785 = vmin.f32 %v753, 6.0
        %v786 = vmin.f32 %v754, 6.0
        %v787 = vmin.f32 %v755, 6.0
        %v788 = vmin.f32 %v756, 6.0
        %v789 = vmin.f32 %v757, 6.0
        %v790 = vmin.f32 %v758, 6.0
        %v791 = vmin.f32 %v759, 6.0
        %v792 = vmin.f32 %v760, 6.0
        %v793 = vmin.f32 %v761, 6.0
        %v794 = vmin.f32 %v762, 6.0
        %v795 = vmin.f32 %v763, 6.0
        %v796 = vmin.f32 %v764, 6.0
        %v797 = vmin.f32 %v765, 6.0
        %v798 = vmin.f32 %v766, 6.0
        %v799 = vmin.f32 %v767, 6.0
        %v800 = vmin.f32 %v768, 6.0
        %v801 = vmin.f32 %v769, 6.0
        %v802 = vmin.f32 %v770, 6.0
        %v803 = vmin.f32 %v771, 6.0
        %v804 = vmin.f32 %v772, 6.0
        %v805 = vmin.f32 %v773, 6.0
        %v806 = vmin.f32 %v774, 6.0
        %v807 = vpack.c.bf16 %v776, %v775
        %v808 = vpack.c.bf16 %v778, %v777
        %v809 = vpack.c.bf16 %v780, %v779
        %v810 = vpack.c.bf16 %v782, %v781
        %v811 = vpack.c.bf16 %v784, %v783
        %v812 = vpack.c.bf16 %v786, %v785
        %v813 = vpack.c.bf16 %v788, %v787
        %v814 = vpack.c.bf16 %v790, %v789
        %v815 = vpack.c.bf16 %v792, %v791
        %v816 = vpack.c.bf16 %v794, %v793
        %v817 = vpack.c.bf16 %v796, %v795
        %v818 = vpack.c.bf16 %v798, %v797
        %v819 = vpack.c.bf16 %v800, %v799
        %v820 = vpack.c.bf16 %v802, %v801
        %v821 = vpack.c.bf16 %v804, %v803
        %v822 = vpack.c.bf16 %v806, %v805
        %v839 = vrot.slane %v807, 4
        %v840 = vrot.slane %v808, 4
        %v841 = vrot.slane %v809, 4
        %v842 = vrot.slane %v810, 4
        %v843 = vrot.slane %v811, 4
        %v844 = vrot.slane %v812, 4
        %v845 = vrot.slane %v813, 4
        %v846 = vrot.slane %v814, 4
        %v847 = vrot.slane %v815, 4
        %v848 = vrot.slane %v816, 4
        %v849 = vrot.slane %v817, 4
        %v850 = vrot.slane %v818, 4
        %v851 = vrot.slane %v819, 4
        %v852 = vrot.slane %v820, 4
        %v853 = vrot.slane %v821, 4
        %v854 = vrot.slane %v822, 4
        %s871 = scalar_lea.vmem [#allocation2], 16
        %872 = vst [vmem:[%s871] sm:$0xf0] %v839
        %873 = vst [vmem:[%s871 + $0x8] sm:$0xf] %v839
        %874 = vst [vmem:[%s871 + $0x10] sm:$0xf0] %v840
        %875 = vst [vmem:[%s871 + $0x18] sm:$0xf] %v840
        %876 = vst [vmem:[%s871 + $0x20] sm:$0xf0] %v841
        %877 = vst [vmem:[%s871 + $0x28] sm:$0xf] %v841
        %878 = vst [vmem:[%s871 + $0x30] sm:$0xf0] %v842
        %879 = vst [vmem:[%s871 + $0x38] sm:$0xf] %v842
        %880 = vst [vmem:[%s871 + $0x40] sm:$0xf0] %v843
        %881 = vst [vmem:[%s871 + $0x48] sm:$0xf] %v843
        %882 = vst [vmem:[%s871 + $0x50] sm:$0xf0] %v844
        %883 = vst [vmem:[%s871 + $0x58] sm:$0xf] %v844
        %884 = vst [vmem:[%s871 + $0x60] sm:$0xf0] %v845
        %885 = vst [vmem:[%s871 + $0x68] sm:$0xf] %v845
        %886 = vst [vmem:[%s871 + $0x70] sm:$0xf0] %v846
        %887 = vst [vmem:[%s871 + $0x78] sm:$0xf] %v846
        %888 = vst [vmem:[%s871 + $0x80] sm:$0xf0] %v847
        %889 = vst [vmem:[%s871 + $0x88] sm:$0xf] %v847
        %890 = vst [vmem:[%s871 + $0x90] sm:$0xf0] %v848
        %891 = vst [vmem:[%s871 + $0x98] sm:$0xf] %v848
        %892 = vst [vmem:[%s871 + $0xa0] sm:$0xf0] %v849
        %893 = vst [vmem:[%s871 + $0xa8] sm:$0xf] %v849
        %894 = vst [vmem:[%s871 + $0xb0] sm:$0xf0] %v850
        %895 = vst [vmem:[%s871 + $0xb8] sm:$0xf] %v850
        %896 = vst [vmem:[%s871 + $0xc0] sm:$0xf0] %v851
        %897 = vst [vmem:[%s871 + $0xc8] sm:$0xf] %v851
        %898 = vst [vmem:[%s871 + $0xd0] sm:$0xf0] %v852
        %899 = vst [vmem:[%s871 + $0xd8] sm:$0xf] %v852
        %900 = vst [vmem:[%s871 + $0xe0] sm:$0xf0] %v853
        %901 = vst [vmem:[%s871 + $0xe8] sm:$0xf] %v853
        %902 = vst [vmem:[%s871 + $0xf0] sm:$0xf0] %v854
        %903 = vst [vmem:[%s871 + $0xf8] sm:$0xf] %v854
        %v904 = vld [vmem:[#allocation8] sm:$0xff]
        %v905 = vld [vmem:[#allocation8 + $0x8] sm:$0x1]
        %v906 = vld [vmem:[%s4] sm:$0x1]
        %v908 = vlaneseq
        %v909 = vshrl.u32 %v908, 7
        %v910 = vsub.s32 0, %v909
        %v911 = vrot.slane %v906, %v910
        %v913 = vld [vmem:[#allocation2] sm:$0xf8]
        %v914 = vld [vmem:[#allocation2 + $0x8] sm:$0xf]
        %v915 = vld [vmem:[#allocation2 + $0x10] sm:$0xf8]
        %v916 = vld [vmem:[#allocation2 + $0x18] sm:$0xf]
        %v917 = vld [vmem:[#allocation2 + $0x20] sm:$0xf8]
        %v918 = vld [vmem:[#allocation2 + $0x28] sm:$0xf]
        %v919 = vld [vmem:[#allocation2 + $0x30] sm:$0xf8]
        %v920 = vld [vmem:[#allocation2 + $0x38] sm:$0xf]
        %v921 = vld [vmem:[#allocation2 + $0x40] sm:$0xf8]
        %v922 = vld [vmem:[#allocation2 + $0x48] sm:$0xf]
        %v923 = vld [vmem:[#allocation2 + $0x50] sm:$0xf8]
        %v924 = vld [vmem:[#allocation2 + $0x58] sm:$0xf]
        %v925 = vld [vmem:[#allocation2 + $0x60] sm:$0xf8]
        %v926 = vld [vmem:[#allocation2 + $0x68] sm:$0xf]
        %v927 = vld [vmem:[#allocation2 + $0x70] sm:$0xf8]
        %v928 = vld [vmem:[#allocation2 + $0x78] sm:$0xf]
        %v929 = vld [vmem:[#allocation2 + $0x80] sm:$0xf8]
        %v930 = vld [vmem:[#allocation2 + $0x88] sm:$0xf]
        %v931 = vld [vmem:[#allocation2 + $0x90] sm:$0xf8]
        %v932 = vld [vmem:[#allocation2 + $0x98] sm:$0xf]
        %v933 = vld [vmem:[#allocation2 + $0xa0] sm:$0xf8]
        %v934 = vld [vmem:[#allocation2 + $0xa8] sm:$0xf]
        %v935 = vld [vmem:[#allocation2 + $0xb0] sm:$0xf8]
        %v936 = vld [vmem:[#allocation2 + $0xb8] sm:$0xf]
        %v937 = vld [vmem:[#allocation2 + $0xc0] sm:$0xf8]
        %v938 = vld [vmem:[#allocation2 + $0xc8] sm:$0xf]
        %v939 = vld [vmem:[#allocation2 + $0xd0] sm:$0xf8]
        %v940 = vld [vmem:[#allocation2 + $0xd8] sm:$0xf]
        %v941 = vld [vmem:[#allocation2 + $0xe0] sm:$0xf8]
        %v942 = vld [vmem:[#allocation2 + $0xe8] sm:$0xf]
        %v943 = vld [vmem:[#allocation2 + $0xf0] sm:$0xf8]
        %v944 = vld [vmem:[#allocation2 + $0xf8] sm:$0xf]
        %v945 = vunpack.c.l.bf16 %v913
        %v946 = vunpack.c.h.bf16 %v913
        %v947 = vunpack.c.l.bf16 %v914
        %v948 = vunpack.c.l.bf16 %v915
        %v949 = vunpack.c.h.bf16 %v915
        %v950 = vunpack.c.l.bf16 %v916
        %v951 = vunpack.c.l.bf16 %v917
        %v952 = vunpack.c.h.bf16 %v917
        %v953 = vunpack.c.l.bf16 %v918
        %v954 = vunpack.c.l.bf16 %v919
        %v955 = vunpack.c.h.bf16 %v919
        %v956 = vunpack.c.l.bf16 %v920
        %v957 = vunpack.c.l.bf16 %v921
        %v958 = vunpack.c.h.bf16 %v921
        %v959 = vunpack.c.l.bf16 %v922
        %v960 = vunpack.c.l.bf16 %v923
        %v961 = vunpack.c.h.bf16 %v923
        %v962 = vunpack.c.l.bf16 %v924
        %v963 = vunpack.c.l.bf16 %v925
        %v964 = vunpack.c.h.bf16 %v925
        %v965 = vunpack.c.l.bf16 %v926
        %v966 = vunpack.c.l.bf16 %v927
        %v967 = vunpack.c.h.bf16 %v927
        %v968 = vunpack.c.l.bf16 %v928
        %v969 = vunpack.c.l.bf16 %v929
        %v970 = vunpack.c.h.bf16 %v929
        %v971 = vunpack.c.l.bf16 %v930
        %v972 = vunpack.c.l.bf16 %v931
        %v973 = vunpack.c.h.bf16 %v931
        %v974 = vunpack.c.l.bf16 %v932
        %v975 = vunpack.c.l.bf16 %v933
        %v976 = vunpack.c.h.bf16 %v933
        %v977 = vunpack.c.l.bf16 %v934
        %v978 = vunpack.c.l.bf16 %v935
        %v979 = vunpack.c.h.bf16 %v935
        %v980 = vunpack.c.l.bf16 %v936
        %v981 = vunpack.c.l.bf16 %v937
        %v982 = vunpack.c.h.bf16 %v937
        %v983 = vunpack.c.l.bf16 %v938
        %v984 = vunpack.c.l.bf16 %v939
        %v985 = vunpack.c.h.bf16 %v939
        %v986 = vunpack.c.l.bf16 %v940
        %v987 = vunpack.c.l.bf16 %v941
        %v988 = vunpack.c.h.bf16 %v941
        %v989 = vunpack.c.l.bf16 %v942
        %v990 = vunpack.c.l.bf16 %v943
        %v991 = vunpack.c.h.bf16 %v943
        %v992 = vunpack.c.l.bf16 %v944
        %v993 = vlaneseq
        %v994 = vshrl.u32 %v993, 7
        %v995 = vsub.s32 0, %v994
        %v996 = vrot.slane %v904, %v995
        %v997 = vmul.f32 %v945, %v996
        %v998 = vmul.f32 %v946, %v996
        %v999 = vmul.f32 %v947, %v996
        %v1000 = vmul.f32 %v948, %v996
        %v1001 = vmul.f32 %v949, %v996
        %v1002 = vmul.f32 %v950, %v996
        %v1003 = vmul.f32 %v951, %v996
        %v1004 = vmul.f32 %v952, %v996
        %v1005 = vmul.f32 %v953, %v996
        %v1006 = vmul.f32 %v954, %v996
        %v1007 = vmul.f32 %v955, %v996
        %v1008 = vmul.f32 %v956, %v996
        %v1009 = vmul.f32 %v957, %v996
        %v1010 = vmul.f32 %v958, %v996
        %v1011 = vmul.f32 %v959, %v996
        %v1012 = vmul.f32 %v960, %v996
        %v1013 = vmul.f32 %v961, %v996
        %v1014 = vmul.f32 %v962, %v996
        %v1015 = vmul.f32 %v963, %v996
        %v1016 = vmul.f32 %v964, %v996
        %v1017 = vmul.f32 %v965, %v996
        %v1018 = vmul.f32 %v966, %v996
        %v1019 = vmul.f32 %v967, %v996
        %v1020 = vmul.f32 %v968, %v996
        %v1021 = vmul.f32 %v969, %v996
        %v1022 = vmul.f32 %v970, %v996
        %v1023 = vmul.f32 %v971, %v996
        %v1024 = vmul.f32 %v972, %v996
        %v1025 = vmul.f32 %v973, %v996
        %v1026 = vmul.f32 %v974, %v996
        %v1027 = vmul.f32 %v975, %v996
        %v1028 = vmul.f32 %v976, %v996
        %v1029 = vmul.f32 %v977, %v996
        %v1030 = vmul.f32 %v978, %v996
        %v1031 = vmul.f32 %v979, %v996
        %v1032 = vmul.f32 %v980, %v996
        %v1033 = vmul.f32 %v981, %v996
        %v1034 = vmul.f32 %v982, %v996
        %v1035 = vmul.f32 %v983, %v996
        %v1036 = vmul.f32 %v984, %v996
        %v1037 = vmul.f32 %v985, %v996
        %v1038 = vmul.f32 %v986, %v996
        %v1039 = vmul.f32 %v987, %v996
        %v1040 = vmul.f32 %v988, %v996
        %v1041 = vmul.f32 %v989, %v996
        %v1042 = vmul.f32 %v990, %v996
        %v1043 = vmul.f32 %v991, %v996
        %v1044 = vmul.f32 %v992, %v996
        %v1045 = vadd.f32 %v911, %v997
        %v1046 = vadd.f32 %v911, %v998
        %v1047 = vadd.f32 %v911, %v999
        %v1048 = vadd.f32 %v911, %v1000
        %v1049 = vadd.f32 %v911, %v1001
        %v1050 = vadd.f32 %v911, %v1002
        %v1051 = vadd.f32 %v911, %v1003
        %v1052 = vadd.f32 %v911, %v1004
        %v1053 = vadd.f32 %v911, %v1005
        %v1054 = vadd.f32 %v911, %v1006
        %v1055 = vadd.f32 %v911, %v1007
        %v1056 = vadd.f32 %v911, %v1008
        %v1057 = vadd.f32 %v911, %v1009
        %v1058 = vadd.f32 %v911, %v1010
        %v1059 = vadd.f32 %v911, %v1011
        %v1060 = vadd.f32 %v911, %v1012
        %v1061 = vadd.f32 %v911, %v1013
        %v1062 = vadd.f32 %v911, %v1014
        %v1063 = vadd.f32 %v911, %v1015
        %v1064 = vadd.f32 %v911, %v1016
        %v1065 = vadd.f32 %v911, %v1017
        %v1066 = vadd.f32 %v911, %v1018
        %v1067 = vadd.f32 %v911, %v1019
        %v1068 = vadd.f32 %v911, %v1020
        %v1069 = vadd.f32 %v911, %v1021
        %v1070 = vadd.f32 %v911, %v1022
        %v1071 = vadd.f32 %v911, %v1023
        %v1072 = vadd.f32 %v911, %v1024
        %v1073 = vadd.f32 %v911, %v1025
        %v1074 = vadd.f32 %v911, %v1026
        %v1075 = vadd.f32 %v911, %v1027
        %v1076 = vadd.f32 %v911, %v1028
        %v1077 = vadd.f32 %v911, %v1029
        %v1078 = vadd.f32 %v911, %v1030
        %v1079 = vadd.f32 %v911, %v1031
        %v1080 = vadd.f32 %v911, %v1032
        %v1081 = vadd.f32 %v911, %v1033
        %v1082 = vadd.f32 %v911, %v1034
        %v1083 = vadd.f32 %v911, %v1035
        %v1084 = vadd.f32 %v911, %v1036
        %v1085 = vadd.f32 %v911, %v1037
        %v1086 = vadd.f32 %v911, %v1038
        %v1087 = vadd.f32 %v911, %v1039
        %v1088 = vadd.f32 %v911, %v1040
        %v1089 = vadd.f32 %v911, %v1041
        %v1090 = vadd.f32 %v911, %v1042
        %v1091 = vadd.f32 %v911, %v1043
        %v1092 = vadd.f32 %v911, %v1044
        %v1093 = vld [vmem:[#allocation2] sm:$0xf0]
        %v1094 = vld [vmem:[#allocation2 + $0x10] sm:$0xf0]
        %v1095 = vld [vmem:[#allocation2 + $0x20] sm:$0xf0]
        %v1096 = vld [vmem:[#allocation2 + $0x30] sm:$0xf0]
        %v1097 = vld [vmem:[#allocation2 + $0x40] sm:$0xf0]
        %v1098 = vld [vmem:[#allocation2 + $0x50] sm:$0xf0]
        %v1099 = vld [vmem:[#allocation2 + $0x60] sm:$0xf0]
        %v1100 = vld [vmem:[#allocation2 + $0x70] sm:$0xf0]
        %v1101 = vld [vmem:[#allocation2 + $0x80] sm:$0xf0]
        %v1102 = vld [vmem:[#allocation2 + $0x90] sm:$0xf0]
        %v1103 = vld [vmem:[#allocation2 + $0xa0] sm:$0xf0]
        %v1104 = vld [vmem:[#allocation2 + $0xb0] sm:$0xf0]
        %v1105 = vld [vmem:[#allocation2 + $0xc0] sm:$0xf0]
        %v1106 = vld [vmem:[#allocation2 + $0xd0] sm:$0xf0]
        %v1107 = vld [vmem:[#allocation2 + $0xe0] sm:$0xf0]
        %v1108 = vld [vmem:[#allocation2 + $0xf0] sm:$0xf0]
        %vm1141 = vcmask 1043456
        %v1142 = vrot.slane %v1093, 4
        %v1143 = vrot.slane %v914, 4
        %v1144 = vsel %vm1141, %v1142, %v1143
        %v1145 = vrot.slane %v1094, 4
        %v1146 = vrot.slane %v916, 4
        %v1147 = vsel %vm1141, %v1145, %v1146
        %v1148 = vrot.slane %v1095, 4
        %v1149 = vrot.slane %v918, 4
        %v1150 = vsel %vm1141, %v1148, %v1149
        %v1151 = vrot.slane %v1096, 4
        %v1152 = vrot.slane %v920, 4
        %v1153 = vsel %vm1141, %v1151, %v1152
        %v1154 = vrot.slane %v1097, 4
        %v1155 = vrot.slane %v922, 4
        %v1156 = vsel %vm1141, %v1154, %v1155
        %v1157 = vrot.slane %v1098, 4
        %v1158 = vrot.slane %v924, 4
        %v1159 = vsel %vm1141, %v1157, %v1158
        %v1160 = vrot.slane %v1099, 4
        %v1161 = vrot.slane %v926, 4
        %v1162 = vsel %vm1141, %v1160, %v1161
        %v1163 = vrot.slane %v1100, 4
        %v1164 = vrot.slane %v928, 4
        %v1165 = vsel %vm1141, %v1163, %v1164
        %v1166 = vrot.slane %v1101, 4
        %v1167 = vrot.slane %v930, 4
        %v1168 = vsel %vm1141, %v1166, %v1167
        %v1169 = vrot.slane %v1102, 4
        %v1170 = vrot.slane %v932, 4
        %v1171 = vsel %vm1141, %v1169, %v1170
        %v1172 = vrot.slane %v1103, 4
        %v1173 = vrot.slane %v934, 4
        %v1174 = vsel %vm1141, %v1172, %v1173
        %v1175 = vrot.slane %v1104, 4
        %v1176 = vrot.slane %v936, 4
        %v1177 = vsel %vm1141, %v1175, %v1176
        %v1178 = vrot.slane %v1105, 4
        %v1179 = vrot.slane %v938, 4
        %v1180 = vsel %vm1141, %v1178, %v1179
        %v1181 = vrot.slane %v1106, 4
        %v1182 = vrot.slane %v940, 4
        %v1183 = vsel %vm1141, %v1181, %v1182
        %v1184 = vrot.slane %v1107, 4
        %v1185 = vrot.slane %v942, 4
        %v1186 = vsel %vm1141, %v1184, %v1185
        %v1187 = vrot.slane %v1108, 4
        %v1188 = vrot.slane %v944, 4
        %v1189 = vsel %vm1141, %v1187, %v1188
        %v1206 = vunpack.c.l.bf16 %v1144
        %v1207 = vunpack.c.h.bf16 %v1144
        %v1208 = vunpack.c.l.bf16 %v1147
        %v1209 = vunpack.c.h.bf16 %v1147
        %v1210 = vunpack.c.l.bf16 %v1150
        %v1211 = vunpack.c.h.bf16 %v1150
        %v1212 = vunpack.c.l.bf16 %v1153
        %v1213 = vunpack.c.h.bf16 %v1153
        %v1214 = vunpack.c.l.bf16 %v1156
        %v1215 = vunpack.c.h.bf16 %v1156
        %v1216 = vunpack.c.l.bf16 %v1159
        %v1217 = vunpack.c.h.bf16 %v1159
        %v1218 = vunpack.c.l.bf16 %v1162
        %v1219 = vunpack.c.h.bf16 %v1162
        %v1220 = vunpack.c.l.bf16 %v1165
        %v1221 = vunpack.c.h.bf16 %v1165
        %v1222 = vunpack.c.l.bf16 %v1168
        %v1223 = vunpack.c.h.bf16 %v1168
        %v1224 = vunpack.c.l.bf16 %v1171
        %v1225 = vunpack.c.h.bf16 %v1171
        %v1226 = vunpack.c.l.bf16 %v1174
        %v1227 = vunpack.c.h.bf16 %v1174
        %v1228 = vunpack.c.l.bf16 %v1177
        %v1229 = vunpack.c.h.bf16 %v1177
        %v1230 = vunpack.c.l.bf16 %v1180
        %v1231 = vunpack.c.h.bf16 %v1180
        %v1232 = vunpack.c.l.bf16 %v1183
        %v1233 = vunpack.c.h.bf16 %v1183
        %v1234 = vunpack.c.l.bf16 %v1186
        %v1235 = vunpack.c.h.bf16 %v1186
        %v1236 = vunpack.c.l.bf16 %v1189
        %v1237 = vunpack.c.h.bf16 %v1189
        %v1238 = vlaneseq
        %v1239 = vshrl.u32 %v1238, 7
        %v1240 = vsub.s32 1, %v1239
        %v1241 = vrot.slane %v904, %v1240
        %v1242 = vmul.f32 %v1206, %v1241
        %v1243 = vmul.f32 %v1207, %v1241
        %v1244 = vmul.f32 %v1208, %v1241
        %v1245 = vmul.f32 %v1209, %v1241
        %v1246 = vmul.f32 %v1210, %v1241
        %v1247 = vmul.f32 %v1211, %v1241
        %v1248 = vmul.f32 %v1212, %v1241
        %v1249 = vmul.f32 %v1213, %v1241
        %v1250 = vmul.f32 %v1214, %v1241
        %v1251 = vmul.f32 %v1215, %v1241
        %v1252 = vmul.f32 %v1216, %v1241
        %v1253 = vmul.f32 %v1217, %v1241
        %v1254 = vmul.f32 %v1218, %v1241
        %v1255 = vmul.f32 %v1219, %v1241
        %v1256 = vmul.f32 %v1220, %v1241
        %v1257 = vmul.f32 %v1221, %v1241
        %v1258 = vmul.f32 %v1222, %v1241
        %v1259 = vmul.f32 %v1223, %v1241
        %v1260 = vmul.f32 %v1224, %v1241
        %v1261 = vmul.f32 %v1225, %v1241
        %v1262 = vmul.f32 %v1226, %v1241
        %v1263 = vmul.f32 %v1227, %v1241
        %v1264 = vmul.f32 %v1228, %v1241
        %v1265 = vmul.f32 %v1229, %v1241
        %v1266 = vmul.f32 %v1230, %v1241
        %v1267 = vmul.f32 %v1231, %v1241
        %v1268 = vmul.f32 %v1232, %v1241
        %v1269 = vmul.f32 %v1233, %v1241
        %v1270 = vmul.f32 %v1234, %v1241
        %v1271 = vmul.f32 %v1235, %v1241
        %v1272 = vmul.f32 %v1236, %v1241
        %v1273 = vmul.f32 %v1237, %v1241
        %vm1306 = vcmask 1046528
        %v1307 = vrot.slane %v1242, 1
        %v1308 = vrot.slane %v1243, 1
        %v1309 = vsel %vm1306, %v1307, %v1308
        %v1310 = vrot.slane %v1244, 1
        %v1311 = vrot.slane %v1245, 1
        %v1312 = vsel %vm1306, %v1310, %v1311
        %v1313 = vrot.slane %v1246, 1
        %v1314 = vrot.slane %v1247, 1
        %v1315 = vsel %vm1306, %v1313, %v1314
        %v1316 = vrot.slane %v1248, 1
        %v1317 = vrot.slane %v1249, 1
        %v1318 = vsel %vm1306, %v1316, %v1317
        %v1319 = vrot.slane %v1250, 1
        %v1320 = vrot.slane %v1251, 1
        %v1321 = vsel %vm1306, %v1319, %v1320
        %v1322 = vrot.slane %v1252, 1
        %v1323 = vrot.slane %v1253, 1
        %v1324 = vsel %vm1306, %v1322, %v1323
        %v1325 = vrot.slane %v1254, 1
        %v1326 = vrot.slane %v1255, 1
        %v1327 = vsel %vm1306, %v1325, %v1326
        %v1328 = vrot.slane %v1256, 1
        %v1329 = vrot.slane %v1257, 1
        %v1330 = vsel %vm1306, %v1328, %v1329
        %v1331 = vrot.slane %v1258, 1
        %v1332 = vrot.slane %v1259, 1
        %v1333 = vsel %vm1306, %v1331, %v1332
        %v1334 = vrot.slane %v1260, 1
        %v1335 = vrot.slane %v1261, 1
        %v1336 = vsel %vm1306, %v1334, %v1335
        %v1337 = vrot.slane %v1262, 1
        %v1338 = vrot.slane %v1263, 1
        %v1339 = vsel %vm1306, %v1337, %v1338
        %v1340 = vrot.slane %v1264, 1
        %v1341 = vrot.slane %v1265, 1
        %v1342 = vsel %vm1306, %v1340, %v1341
        %v1343 = vrot.slane %v1266, 1
        %v1344 = vrot.slane %v1267, 1
        %v1345 = vsel %vm1306, %v1343, %v1344
        %v1346 = vrot.slane %v1268, 1
        %v1347 = vrot.slane %v1269, 1
        %v1348 = vsel %vm1306, %v1346, %v1347
        %v1349 = vrot.slane %v1270, 1
        %v1350 = vrot.slane %v1271, 1
        %v1351 = vsel %vm1306, %v1349, %v1350
        %v1352 = vrot.slane %v1272, 1
        %v1353 = vrot.slane %v1273, 1
        %v1354 = vsel %vm1306, %v1352, %v1353
        %v1403 = vadd.f32 %v1045, %v1307
        %v1404 = vadd.f32 %v1046, %v1309
        %v1405 = vadd.f32 %v1047, %v1308
        %v1406 = vadd.f32 %v1048, %v1310
        %v1407 = vadd.f32 %v1049, %v1312
        %v1408 = vadd.f32 %v1050, %v1311
        %v1409 = vadd.f32 %v1051, %v1313
        %v1410 = vadd.f32 %v1052, %v1315
        %v1411 = vadd.f32 %v1053, %v1314
        %v1412 = vadd.f32 %v1054, %v1316
        %v1413 = vadd.f32 %v1055, %v1318
        %v1414 = vadd.f32 %v1056, %v1317
        %v1415 = vadd.f32 %v1057, %v1319
        %v1416 = vadd.f32 %v1058, %v1321
        %v1417 = vadd.f32 %v1059, %v1320
        %v1418 = vadd.f32 %v1060, %v1322
        %v1419 = vadd.f32 %v1061, %v1324
        %v1420 = vadd.f32 %v1062, %v1323
        %v1421 = vadd.f32 %v1063, %v1325
        %v1422 = vadd.f32 %v1064, %v1327
        %v1423 = vadd.f32 %v1065, %v1326
        %v1424 = vadd.f32 %v1066, %v1328
        %v1425 = vadd.f32 %v1067, %v1330
        %v1426 = vadd.f32 %v1068, %v1329
        %v1427 = vadd.f32 %v1069, %v1331
        %v1428 = vadd.f32 %v1070, %v1333
        %v1429 = vadd.f32 %v1071, %v1332
        %v1430 = vadd.f32 %v1072, %v1334
        %v1431 = vadd.f32 %v1073, %v1336
        %v1432 = vadd.f32 %v1074, %v1335
        %v1433 = vadd.f32 %v1075, %v1337
        %v1434 = vadd.f32 %v1076, %v1339
        %v1435 = vadd.f32 %v1077, %v1338
        %v1436 = vadd.f32 %v1078, %v1340
        %v1437 = vadd.f32 %v1079, %v1342
        %v1438 = vadd.f32 %v1080, %v1341
        %v1439 = vadd.f32 %v1081, %v1343
        %v1440 = vadd.f32 %v1082, %v1345
        %v1441 = vadd.f32 %v1083, %v1344
        %v1442 = vadd.f32 %v1084, %v1346
        %v1443 = vadd.f32 %v1085, %v1348
        %v1444 = vadd.f32 %v1086, %v1347
        %v1445 = vadd.f32 %v1087, %v1349
        %v1446 = vadd.f32 %v1088, %v1351
        %v1447 = vadd.f32 %v1089, %v1350
        %v1448 = vadd.f32 %v1090, %v1352
        %v1449 = vadd.f32 %v1091, %v1354
        %v1450 = vadd.f32 %v1092, %v1353
        %v1451 = vld [vmem:[#allocation2 + $0x8] sm:$0x1f]
        %v1452 = vld [vmem:[#allocation2 + $0x18] sm:$0x1f]
        %v1453 = vld [vmem:[#allocation2 + $0x28] sm:$0x1f]
        %v1454 = vld [vmem:[#allocation2 + $0x38] sm:$0x1f]
        %v1455 = vld [vmem:[#allocation2 + $0x48] sm:$0x1f]
        %v1456 = vld [vmem:[#allocation2 + $0x58] sm:$0x1f]
        %v1457 = vld [vmem:[#allocation2 + $0x68] sm:$0x1f]
        %v1458 = vld [vmem:[#allocation2 + $0x78] sm:$0x1f]
        %v1459 = vld [vmem:[#allocation2 + $0x88] sm:$0x1f]
        %v1460 = vld [vmem:[#allocation2 + $0x98] sm:$0x1f]
        %v1461 = vld [vmem:[#allocation2 + $0xa8] sm:$0x1f]
        %v1462 = vld [vmem:[#allocation2 + $0xb8] sm:$0x1f]
        %v1463 = vld [vmem:[#allocation2 + $0xc8] sm:$0x1f]
        %v1464 = vld [vmem:[#allocation2 + $0xd8] sm:$0x1f]
        %v1465 = vld [vmem:[#allocation2 + $0xe8] sm:$0x1f]
        %v1466 = vld [vmem:[#allocation2 + $0xf8] sm:$0x1f]
        %v1483 = vrot.slane %v1451, 4
        %v1484 = vsel %vm1141, %v1142, %v1483
        %v1485 = vrot.slane %v1452, 4
        %v1486 = vsel %vm1141, %v1145, %v1485
        %v1487 = vrot.slane %v1453, 4
        %v1488 = vsel %vm1141, %v1148, %v1487
        %v1489 = vrot.slane %v1454, 4
        %v1490 = vsel %vm1141, %v1151, %v1489
        %v1491 = vrot.slane %v1455, 4
        %v1492 = vsel %vm1141, %v1154, %v1491
        %v1493 = vrot.slane %v1456, 4
        %v1494 = vsel %vm1141, %v1157, %v1493
        %v1495 = vrot.slane %v1457, 4
        %v1496 = vsel %vm1141, %v1160, %v1495
        %v1497 = vrot.slane %v1458, 4
        %v1498 = vsel %vm1141, %v1163, %v1497
        %v1499 = vrot.slane %v1459, 4
        %v1500 = vsel %vm1141, %v1166, %v1499
        %v1501 = vrot.slane %v1460, 4
        %v1502 = vsel %vm1141, %v1169, %v1501
        %v1503 = vrot.slane %v1461, 4
        %v1504 = vsel %vm1141, %v1172, %v1503
        %v1505 = vrot.slane %v1462, 4
        %v1506 = vsel %vm1141, %v1175, %v1505
        %v1507 = vrot.slane %v1463, 4
        %v1508 = vsel %vm1141, %v1178, %v1507
        %v1509 = vrot.slane %v1464, 4
        %v1510 = vsel %vm1141, %v1181, %v1509
        %v1511 = vrot.slane %v1465, 4
        %v1512 = vsel %vm1141, %v1184, %v1511
        %v1513 = vrot.slane %v1466, 4
        %v1514 = vsel %vm1141, %v1187, %v1513
        %v1547 = vunpack.c.l.bf16 %v1484
        %v1548 = vunpack.c.h.bf16 %v1484
        %v1549 = vunpack.c.l.bf16 %v1483
        %v1550 = vunpack.c.l.bf16 %v1486
        %v1551 = vunpack.c.h.bf16 %v1486
        %v1552 = vunpack.c.l.bf16 %v1485
        %v1553 = vunpack.c.l.bf16 %v1488
        %v1554 = vunpack.c.h.bf16 %v1488
        %v1555 = vunpack.c.l.bf16 %v1487
        %v1556 = vunpack.c.l.bf16 %v1490
        %v1557 = vunpack.c.h.bf16 %v1490
        %v1558 = vunpack.c.l.bf16 %v1489
        %v1559 = vunpack.c.l.bf16 %v1492
        %v1560 = vunpack.c.h.bf16 %v1492
        %v1561 = vunpack.c.l.bf16 %v1491
        %v1562 = vunpack.c.l.bf16 %v1494
        %v1563 = vunpack.c.h.bf16 %v1494
        %v1564 = vunpack.c.l.bf16 %v1493
        %v1565 = vunpack.c.l.bf16 %v1496
        %v1566 = vunpack.c.h.bf16 %v1496
        %v1567 = vunpack.c.l.bf16 %v1495
        %v1568 = vunpack.c.l.bf16 %v1498
        %v1569 = vunpack.c.h.bf16 %v1498
        %v1570 = vunpack.c.l.bf16 %v1497
        %v1571 = vunpack.c.l.bf16 %v1500
        %v1572 = vunpack.c.h.bf16 %v1500
        %v1573 = vunpack.c.l.bf16 %v1499
        %v1574 = vunpack.c.l.bf16 %v1502
        %v1575 = vunpack.c.h.bf16 %v1502
        %v1576 = vunpack.c.l.bf16 %v1501
        %v1577 = vunpack.c.l.bf16 %v1504
        %v1578 = vunpack.c.h.bf16 %v1504
        %v1579 = vunpack.c.l.bf16 %v1503
        %v1580 = vunpack.c.l.bf16 %v1506
        %v1581 = vunpack.c.h.bf16 %v1506
        %v1582 = vunpack.c.l.bf16 %v1505
        %v1583 = vunpack.c.l.bf16 %v1508
        %v1584 = vunpack.c.h.bf16 %v1508
        %v1585 = vunpack.c.l.bf16 %v1507
        %v1586 = vunpack.c.l.bf16 %v1510
        %v1587 = vunpack.c.h.bf16 %v1510
        %v1588 = vunpack.c.l.bf16 %v1509
        %v1589 = vunpack.c.l.bf16 %v1512
        %v1590 = vunpack.c.h.bf16 %v1512
        %v1591 = vunpack.c.l.bf16 %v1511
        %v1592 = vunpack.c.l.bf16 %v1514
        %v1593 = vunpack.c.h.bf16 %v1514
        %v1594 = vunpack.c.l.bf16 %v1513
        %v1595 = vlaneseq
        %v1596 = vshrl.u32 %v1595, 7
        %v1597 = vsub.s32 2, %v1596
        %v1598 = vrot.slane %v904, %v1597
        %v1599 = vmul.f32 %v1547, %v1598
        %v1600 = vmul.f32 %v1548, %v1598
        %v1601 = vmul.f32 %v1549, %v1598
        %v1602 = vmul.f32 %v1550, %v1598
        %v1603 = vmul.f32 %v1551, %v1598
        %v1604 = vmul.f32 %v1552, %v1598
        %v1605 = vmul.f32 %v1553, %v1598
        %v1606 = vmul.f32 %v1554, %v1598
        %v1607 = vmul.f32 %v1555, %v1598
        %v1608 = vmul.f32 %v1556, %v1598
        %v1609 = vmul.f32 %v1557, %v1598
        %v1610 = vmul.f32 %v1558, %v1598
        %v1611 = vmul.f32 %v1559, %v1598
        %v1612 = vmul.f32 %v1560, %v1598
        %v1613 = vmul.f32 %v1561, %v1598
        %v1614 = vmul.f32 %v1562, %v1598
        %v1615 = vmul.f32 %v1563, %v1598
        %v1616 = vmul.f32 %v1564, %v1598
        %v1617 = vmul.f32 %v1565, %v1598
        %v1618 = vmul.f32 %v1566, %v1598
        %v1619 = vmul.f32 %v1567, %v1598
        %v1620 = vmul.f32 %v1568, %v1598
        %v1621 = vmul.f32 %v1569, %v1598
        %v1622 = vmul.f32 %v1570, %v1598
        %v1623 = vmul.f32 %v1571, %v1598
        %v1624 = vmul.f32 %v1572, %v1598
        %v1625 = vmul.f32 %v1573, %v1598
        %v1626 = vmul.f32 %v1574, %v1598
        %v1627 = vmul.f32 %v1575, %v1598
        %v1628 = vmul.f32 %v1576, %v1598
        %v1629 = vmul.f32 %v1577, %v1598
        %v1630 = vmul.f32 %v1578, %v1598
        %v1631 = vmul.f32 %v1579, %v1598
        %v1632 = vmul.f32 %v1580, %v1598
        %v1633 = vmul.f32 %v1581, %v1598
        %v1634 = vmul.f32 %v1582, %v1598
        %v1635 = vmul.f32 %v1583, %v1598
        %v1636 = vmul.f32 %v1584, %v1598
        %v1637 = vmul.f32 %v1585, %v1598
        %v1638 = vmul.f32 %v1586, %v1598
        %v1639 = vmul.f32 %v1587, %v1598
        %v1640 = vmul.f32 %v1588, %v1598
        %v1641 = vmul.f32 %v1589, %v1598
        %v1642 = vmul.f32 %v1590, %v1598
        %v1643 = vmul.f32 %v1591, %v1598
        %v1644 = vmul.f32 %v1592, %v1598
        %v1645 = vmul.f32 %v1593, %v1598
        %v1646 = vmul.f32 %v1594, %v1598
        %vm1695 = vcmask 1045504
        %v1696 = vrot.slane %v1599, 2
        %v1697 = vrot.slane %v1600, 2
        %v1698 = vsel %vm1695, %v1696, %v1697
        %v1699 = vrot.slane %v1601, 2
        %v1700 = vsel %vm1695, %v1697, %v1699
        %v1701 = vrot.slane %v1602, 2
        %v1702 = vrot.slane %v1603, 2
        %v1703 = vsel %vm1695, %v1701, %v1702
        %v1704 = vrot.slane %v1604, 2
        %v1705 = vsel %vm1695, %v1702, %v1704
        %v1706 = vrot.slane %v1605, 2
        %v1707 = vrot.slane %v1606, 2
        %v1708 = vsel %vm1695, %v1706, %v1707
        %v1709 = vrot.slane %v1607, 2
        %v1710 = vsel %vm1695, %v1707, %v1709
        %v1711 = vrot.slane %v1608, 2
        %v1712 = vrot.slane %v1609, 2
        %v1713 = vsel %vm1695, %v1711, %v1712
        %v1714 = vrot.slane %v1610, 2
        %v1715 = vsel %vm1695, %v1712, %v1714
        %v1716 = vrot.slane %v1611, 2
        %v1717 = vrot.slane %v1612, 2
        %v1718 = vsel %vm1695, %v1716, %v1717
        %v1719 = vrot.slane %v1613, 2
        %v1720 = vsel %vm1695, %v1717, %v1719
        %v1721 = vrot.slane %v1614, 2
        %v1722 = vrot.slane %v1615, 2
        %v1723 = vsel %vm1695, %v1721, %v1722
        %v1724 = vrot.slane %v1616, 2
        %v1725 = vsel %vm1695, %v1722, %v1724
        %v1726 = vrot.slane %v1617, 2
        %v1727 = vrot.slane %v1618, 2
        %v1728 = vsel %vm1695, %v1726, %v1727
        %v1729 = vrot.slane %v1619, 2
        %v1730 = vsel %vm1695, %v1727, %v1729
        %v1731 = vrot.slane %v1620, 2
        %v1732 = vrot.slane %v1621, 2
        %v1733 = vsel %vm1695, %v1731, %v1732
        %v1734 = vrot.slane %v1622, 2
        %v1735 = vsel %vm1695, %v1732, %v1734
        %v1736 = vrot.slane %v1623, 2
        %v1737 = vrot.slane %v1624, 2
        %v1738 = vsel %vm1695, %v1736, %v1737
        %v1739 = vrot.slane %v1625, 2
        %v1740 = vsel %vm1695, %v1737, %v1739
        %v1741 = vrot.slane %v1626, 2
        %v1742 = vrot.slane %v1627, 2
        %v1743 = vsel %vm1695, %v1741, %v1742
        %v1744 = vrot.slane %v1628, 2
        %v1745 = vsel %vm1695, %v1742, %v1744
        %v1746 = vrot.slane %v1629, 2
        %v1747 = vrot.slane %v1630, 2
        %v1748 = vsel %vm1695, %v1746, %v1747
        %v1749 = vrot.slane %v1631, 2
        %v1750 = vsel %vm1695, %v1747, %v1749
        %v1751 = vrot.slane %v1632, 2
        %v1752 = vrot.slane %v1633, 2
        %v1753 = vsel %vm1695, %v1751, %v1752
        %v1754 = vrot.slane %v1634, 2
        %v1755 = vsel %vm1695, %v1752, %v1754
        %v1756 = vrot.slane %v1635, 2
        %v1757 = vrot.slane %v1636, 2
        %v1758 = vsel %vm1695, %v1756, %v1757
        %v1759 = vrot.slane %v1637, 2
        %v1760 = vsel %vm1695, %v1757, %v1759
        %v1761 = vrot.slane %v1638, 2
        %v1762 = vrot.slane %v1639, 2
        %v1763 = vsel %vm1695, %v1761, %v1762
        %v1764 = vrot.slane %v1640, 2
        %v1765 = vsel %vm1695, %v1762, %v1764
        %v1766 = vrot.slane %v1641, 2
        %v1767 = vrot.slane %v1642, 2
        %v1768 = vsel %vm1695, %v1766, %v1767
        %v1769 = vrot.slane %v1643, 2
        %v1770 = vsel %vm1695, %v1767, %v1769
        %v1771 = vrot.slane %v1644, 2
        %v1772 = vrot.slane %v1645, 2
        %v1773 = vsel %vm1695, %v1771, %v1772
        %v1774 = vrot.slane %v1646, 2
        %v1775 = vsel %vm1695, %v1772, %v1774
        %v1824 = vadd.f32 %v1403, %v1696
        %v1825 = vadd.f32 %v1404, %v1698
        %v1826 = vadd.f32 %v1405, %v1700
        %v1827 = vadd.f32 %v1406, %v1701
        %v1828 = vadd.f32 %v1407, %v1703
        %v1829 = vadd.f32 %v1408, %v1705
        %v1830 = vadd.f32 %v1409, %v1706
        %v1831 = vadd.f32 %v1410, %v1708
        %v1832 = vadd.f32 %v1411, %v1710
        %v1833 = vadd.f32 %v1412, %v1711
        %v1834 = vadd.f32 %v1413, %v1713
        %v1835 = vadd.f32 %v1414, %v1715
        %v1836 = vadd.f32 %v1415, %v1716
        %v1837 = vadd.f32 %v1416, %v1718
        %v1838 = vadd.f32 %v1417, %v1720
        %v1839 = vadd.f32 %v1418, %v1721
        %v1840 = vadd.f32 %v1419, %v1723
        %v1841 = vadd.f32 %v1420, %v1725
        %v1842 = vadd.f32 %v1421, %v1726
        %v1843 = vadd.f32 %v1422, %v1728
        %v1844 = vadd.f32 %v1423, %v1730
        %v1845 = vadd.f32 %v1424, %v1731
        %v1846 = vadd.f32 %v1425, %v1733
        %v1847 = vadd.f32 %v1426, %v1735
        %v1848 = vadd.f32 %v1427, %v1736
        %v1849 = vadd.f32 %v1428, %v1738
        %v1850 = vadd.f32 %v1429, %v1740
        %v1851 = vadd.f32 %v1430, %v1741
        %v1852 = vadd.f32 %v1431, %v1743
        %v1853 = vadd.f32 %v1432, %v1745
        %v1854 = vadd.f32 %v1433, %v1746
        %v1855 = vadd.f32 %v1434, %v1748
        %v1856 = vadd.f32 %v1435, %v1750
        %v1857 = vadd.f32 %v1436, %v1751
        %v1858 = vadd.f32 %v1437, %v1753
        %v1859 = vadd.f32 %v1438, %v1755
        %v1860 = vadd.f32 %v1439, %v1756
        %v1861 = vadd.f32 %v1440, %v1758
        %v1862 = vadd.f32 %v1441, %v1760
        %v1863 = vadd.f32 %v1442, %v1761
        %v1864 = vadd.f32 %v1443, %v1763
        %v1865 = vadd.f32 %v1444, %v1765
        %v1866 = vadd.f32 %v1445, %v1766
        %v1867 = vadd.f32 %v1446, %v1768
        %v1868 = vadd.f32 %v1447, %v1770
        %v1869 = vadd.f32 %v1448, %v1771
        %v1870 = vadd.f32 %v1449, %v1773
        %v1871 = vadd.f32 %v1450, %v1775
        %v1872 = vld [vmem:[%s871] sm:$0xf8]
        %v1873 = vld [vmem:[%s871 + $0x8] sm:$0xf]
        %v1874 = vld [vmem:[%s871 + $0x10] sm:$0xf8]
        %v1875 = vld [vmem:[%s871 + $0x18] sm:$0xf]
        %v1876 = vld [vmem:[%s871 + $0x20] sm:$0xf8]
        %v1877 = vld [vmem:[%s871 + $0x28] sm:$0xf]
        %v1878 = vld [vmem:[%s871 + $0x30] sm:$0xf8]
        %v1879 = vld [vmem:[%s871 + $0x38] sm:$0xf]
        %v1880 = vld [vmem:[%s871 + $0x40] sm:$0xf8]
        %v1881 = vld [vmem:[%s871 + $0x48] sm:$0xf]
        %v1882 = vld [vmem:[%s871 + $0x50] sm:$0xf8]
        %v1883 = vld [vmem:[%s871 + $0x58] sm:$0xf]
        %v1884 = vld [vmem:[%s871 + $0x60] sm:$0xf8]
        %v1885 = vld [vmem:[%s871 + $0x68] sm:$0xf]
        %v1886 = vld [vmem:[%s871 + $0x70] sm:$0xf8]
        %v1887 = vld [vmem:[%s871 + $0x78] sm:$0xf]
        %v1888 = vld [vmem:[%s871 + $0x80] sm:$0xf8]
        %v1889 = vld [vmem:[%s871 + $0x88] sm:$0xf]
        %v1890 = vld [vmem:[%s871 + $0x90] sm:$0xf8]
        %v1891 = vld [vmem:[%s871 + $0x98] sm:$0xf]
        %v1892 = vld [vmem:[%s871 + $0xa0] sm:$0xf8]
        %v1893 = vld [vmem:[%s871 + $0xa8] sm:$0xf]
        %v1894 = vld [vmem:[%s871 + $0xb0] sm:$0xf8]
        %v1895 = vld [vmem:[%s871 + $0xb8] sm:$0xf]
        %v1896 = vld [vmem:[%s871 + $0xc0] sm:$0xf8]
        %v1897 = vld [vmem:[%s871 + $0xc8] sm:$0xf]
        %v1898 = vld [vmem:[%s871 + $0xd0] sm:$0xf8]
        %v1899 = vld [vmem:[%s871 + $0xd8] sm:$0xf]
        %v1900 = vld [vmem:[%s871 + $0xe0] sm:$0xf8]
        %v1901 = vld [vmem:[%s871 + $0xe8] sm:$0xf]
        %v1902 = vld [vmem:[%s871 + $0xf0] sm:$0xf8]
        %v1903 = vld [vmem:[%s871 + $0xf8] sm:$0xf]
        %v1904 = vunpack.c.l.bf16 %v1872
        %v1905 = vunpack.c.h.bf16 %v1872
        %v1906 = vunpack.c.l.bf16 %v1873
        %v1907 = vunpack.c.l.bf16 %v1874
        %v1908 = vunpack.c.h.bf16 %v1874
        %v1909 = vunpack.c.l.bf16 %v1875
        %v1910 = vunpack.c.l.bf16 %v1876
        %v1911 = vunpack.c.h.bf16 %v1876
        %v1912 = vunpack.c.l.bf16 %v1877
        %v1913 = vunpack.c.l.bf16 %v1878
        %v1914 = vunpack.c.h.bf16 %v1878
        %v1915 = vunpack.c.l.bf16 %v1879
        %v1916 = vunpack.c.l.bf16 %v1880
        %v1917 = vunpack.c.h.bf16 %v1880
        %v1918 = vunpack.c.l.bf16 %v1881
        %v1919 = vunpack.c.l.bf16 %v1882
        %v1920 = vunpack.c.h.bf16 %v1882
        %v1921 = vunpack.c.l.bf16 %v1883
        %v1922 = vunpack.c.l.bf16 %v1884
        %v1923 = vunpack.c.h.bf16 %v1884
        %v1924 = vunpack.c.l.bf16 %v1885
        %v1925 = vunpack.c.l.bf16 %v1886
        %v1926 = vunpack.c.h.bf16 %v1886
        %v1927 = vunpack.c.l.bf16 %v1887
        %v1928 = vunpack.c.l.bf16 %v1888
        %v1929 = vunpack.c.h.bf16 %v1888
        %v1930 = vunpack.c.l.bf16 %v1889
        %v1931 = vunpack.c.l.bf16 %v1890
        %v1932 = vunpack.c.h.bf16 %v1890
        %v1933 = vunpack.c.l.bf16 %v1891
        %v1934 = vunpack.c.l.bf16 %v1892
        %v1935 = vunpack.c.h.bf16 %v1892
        %v1936 = vunpack.c.l.bf16 %v1893
        %v1937 = vunpack.c.l.bf16 %v1894
        %v1938 = vunpack.c.h.bf16 %v1894
        %v1939 = vunpack.c.l.bf16 %v1895
        %v1940 = vunpack.c.l.bf16 %v1896
        %v1941 = vunpack.c.h.bf16 %v1896
        %v1942 = vunpack.c.l.bf16 %v1897
        %v1943 = vunpack.c.l.bf16 %v1898
        %v1944 = vunpack.c.h.bf16 %v1898
        %v1945 = vunpack.c.l.bf16 %v1899
        %v1946 = vunpack.c.l.bf16 %v1900
        %v1947 = vunpack.c.h.bf16 %v1900
        %v1948 = vunpack.c.l.bf16 %v1901
        %v1949 = vunpack.c.l.bf16 %v1902
        %v1950 = vunpack.c.h.bf16 %v1902
        %v1951 = vunpack.c.l.bf16 %v1903
        %v1952 = vlaneseq
        %v1953 = vshrl.u32 %v1952, 7
        %v1954 = vsub.s32 3, %v1953
        %v1955 = vrot.slane %v904, %v1954
        %v1956 = vmul.f32 %v1904, %v1955
        %v1957 = vmul.f32 %v1905, %v1955
        %v1958 = vmul.f32 %v1906, %v1955
        %v1959 = vmul.f32 %v1907, %v1955
        %v1960 = vmul.f32 %v1908, %v1955
        %v1961 = vmul.f32 %v1909, %v1955
        %v1962 = vmul.f32 %v1910, %v1955
        %v1963 = vmul.f32 %v1911, %v1955
        %v1964 = vmul.f32 %v1912, %v1955
        %v1965 = vmul.f32 %v1913, %v1955
        %v1966 = vmul.f32 %v1914, %v1955
        %v1967 = vmul.f32 %v1915, %v1955
        %v1968 = vmul.f32 %v1916, %v1955
        %v1969 = vmul.f32 %v1917, %v1955
        %v1970 = vmul.f32 %v1918, %v1955
        %v1971 = vmul.f32 %v1919, %v1955
        %v1972 = vmul.f32 %v1920, %v1955
        %v1973 = vmul.f32 %v1921, %v1955
        %v1974 = vmul.f32 %v1922, %v1955
        %v1975 = vmul.f32 %v1923, %v1955
        %v1976 = vmul.f32 %v1924, %v1955
        %v1977 = vmul.f32 %v1925, %v1955
        %v1978 = vmul.f32 %v1926, %v1955
        %v1979 = vmul.f32 %v1927, %v1955
        %v1980 = vmul.f32 %v1928, %v1955
        %v1981 = vmul.f32 %v1929, %v1955
        %v1982 = vmul.f32 %v1930, %v1955
        %v1983 = vmul.f32 %v1931, %v1955
        %v1984 = vmul.f32 %v1932, %v1955
        %v1985 = vmul.f32 %v1933, %v1955
        %v1986 = vmul.f32 %v1934, %v1955
        %v1987 = vmul.f32 %v1935, %v1955
        %v1988 = vmul.f32 %v1936, %v1955
        %v1989 = vmul.f32 %v1937, %v1955
        %v1990 = vmul.f32 %v1938, %v1955
        %v1991 = vmul.f32 %v1939, %v1955
        %v1992 = vmul.f32 %v1940, %v1955
        %v1993 = vmul.f32 %v1941, %v1955
        %v1994 = vmul.f32 %v1942, %v1955
        %v1995 = vmul.f32 %v1943, %v1955
        %v1996 = vmul.f32 %v1944, %v1955
        %v1997 = vmul.f32 %v1945, %v1955
        %v1998 = vmul.f32 %v1946, %v1955
        %v1999 = vmul.f32 %v1947, %v1955
        %v2000 = vmul.f32 %v1948, %v1955
        %v2001 = vmul.f32 %v1949, %v1955
        %v2002 = vmul.f32 %v1950, %v1955
        %v2003 = vmul.f32 %v1951, %v1955
        %v2004 = vadd.f32 %v1824, %v1956
        %v2005 = vadd.f32 %v1825, %v1957
        %v2006 = vadd.f32 %v1826, %v1958
        %v2007 = vadd.f32 %v1827, %v1959
        %v2008 = vadd.f32 %v1828, %v1960
        %v2009 = vadd.f32 %v1829, %v1961
        %v2010 = vadd.f32 %v1830, %v1962
        %v2011 = vadd.f32 %v1831, %v1963
        %v2012 = vadd.f32 %v1832, %v1964
        %v2013 = vadd.f32 %v1833, %v1965
        %v2014 = vadd.f32 %v1834, %v1966
        %v2015 = vadd.f32 %v1835, %v1967
        %v2016 = vadd.f32 %v1836, %v1968
        %v2017 = vadd.f32 %v1837, %v1969
        %v2018 = vadd.f32 %v1838, %v1970
        %v2019 = vadd.f32 %v1839, %v1971
        %v2020 = vadd.f32 %v1840, %v1972
        %v2021 = vadd.f32 %v1841, %v1973
        %v2022 = vadd.f32 %v1842, %v1974
        %v2023 = vadd.f32 %v1843, %v1975
        %v2024 = vadd.f32 %v1844, %v1976
        %v2025 = vadd.f32 %v1845, %v1977
        %v2026 = vadd.f32 %v1846, %v1978
        %v2027 = vadd.f32 %v1847, %v1979
        %v2028 = vadd.f32 %v1848, %v1980
        %v2029 = vadd.f32 %v1849, %v1981
        %v2030 = vadd.f32 %v1850, %v1982
        %v2031 = vadd.f32 %v1851, %v1983
        %v2032 = vadd.f32 %v1852, %v1984
        %v2033 = vadd.f32 %v1853, %v1985
        %v2034 = vadd.f32 %v1854, %v1986
        %v2035 = vadd.f32 %v1855, %v1987
        %v2036 = vadd.f32 %v1856, %v1988
        %v2037 = vadd.f32 %v1857, %v1989
        %v2038 = vadd.f32 %v1858, %v1990
        %v2039 = vadd.f32 %v1859, %v1991
        %v2040 = vadd.f32 %v1860, %v1992
        %v2041 = vadd.f32 %v1861, %v1993
        %v2042 = vadd.f32 %v1862, %v1994
        %v2043 = vadd.f32 %v1863, %v1995
        %v2044 = vadd.f32 %v1864, %v1996
        %v2045 = vadd.f32 %v1865, %v1997
        %v2046 = vadd.f32 %v1866, %v1998
        %v2047 = vadd.f32 %v1867, %v1999
        %v2048 = vadd.f32 %v1868, %v2000
        %v2049 = vadd.f32 %v1869, %v2001
        %v2050 = vadd.f32 %v1870, %v2002
        %v2051 = vadd.f32 %v1871, %v2003
        %v2052 = vld [vmem:[%s871] sm:$0xf0]
        %v2053 = vld [vmem:[%s871 + $0x10] sm:$0xf0]
        %v2054 = vld [vmem:[%s871 + $0x20] sm:$0xf0]
        %v2055 = vld [vmem:[%s871 + $0x30] sm:$0xf0]
        %v2056 = vld [vmem:[%s871 + $0x40] sm:$0xf0]
        %v2057 = vld [vmem:[%s871 + $0x50] sm:$0xf0]
        %v2058 = vld [vmem:[%s871 + $0x60] sm:$0xf0]
        %v2059 = vld [vmem:[%s871 + $0x70] sm:$0xf0]
        %v2060 = vld [vmem:[%s871 + $0x80] sm:$0xf0]
        %v2061 = vld [vmem:[%s871 + $0x90] sm:$0xf0]
        %v2062 = vld [vmem:[%s871 + $0xa0] sm:$0xf0]
        %v2063 = vld [vmem:[%s871 + $0xb0] sm:$0xf0]
        %v2064 = vld [vmem:[%s871 + $0xc0] sm:$0xf0]
        %v2065 = vld [vmem:[%s871 + $0xd0] sm:$0xf0]
        %v2066 = vld [vmem:[%s871 + $0xe0] sm:$0xf0]
        %v2067 = vld [vmem:[%s871 + $0xf0] sm:$0xf0]
        %v2100 = vrot.slane %v2052, 4
        %v2101 = vrot.slane %v1873, 4
        %v2102 = vsel %vm1141, %v2100, %v2101
        %v2103 = vrot.slane %v2053, 4
        %v2104 = vrot.slane %v1875, 4
        %v2105 = vsel %vm1141, %v2103, %v2104
        %v2106 = vrot.slane %v2054, 4
        %v2107 = vrot.slane %v1877, 4
        %v2108 = vsel %vm1141, %v2106, %v2107
        %v2109 = vrot.slane %v2055, 4
        %v2110 = vrot.slane %v1879, 4
        %v2111 = vsel %vm1141, %v2109, %v2110
        %v2112 = vrot.slane %v2056, 4
        %v2113 = vrot.slane %v1881, 4
        %v2114 = vsel %vm1141, %v2112, %v2113
        %v2115 = vrot.slane %v2057, 4
        %v2116 = vrot.slane %v1883, 4
        %v2117 = vsel %vm1141, %v2115, %v2116
        %v2118 = vrot.slane %v2058, 4
        %v2119 = vrot.slane %v1885, 4
        %v2120 = vsel %vm1141, %v2118, %v2119
        %v2121 = vrot.slane %v2059, 4
        %v2122 = vrot.slane %v1887, 4
        %v2123 = vsel %vm1141, %v2121, %v2122
        %v2124 = vrot.slane %v2060, 4
        %v2125 = vrot.slane %v1889, 4
        %v2126 = vsel %vm1141, %v2124, %v2125
        %v2127 = vrot.slane %v2061, 4
        %v2128 = vrot.slane %v1891, 4
        %v2129 = vsel %vm1141, %v2127, %v2128
        %v2130 = vrot.slane %v2062, 4
        %v2131 = vrot.slane %v1893, 4
        %v2132 = vsel %vm1141, %v2130, %v2131
        %v2133 = vrot.slane %v2063, 4
        %v2134 = vrot.slane %v1895, 4
        %v2135 = vsel %vm1141, %v2133, %v2134
        %v2136 = vrot.slane %v2064, 4
        %v2137 = vrot.slane %v1897, 4
        %v2138 = vsel %vm1141, %v2136, %v2137
        %v2139 = vrot.slane %v2065, 4
        %v2140 = vrot.slane %v1899, 4
        %v2141 = vsel %vm1141, %v2139, %v2140
        %v2142 = vrot.slane %v2066, 4
        %v2143 = vrot.slane %v1901, 4
        %v2144 = vsel %vm1141, %v2142, %v2143
        %v2145 = vrot.slane %v2067, 4
        %v2146 = vrot.slane %v1903, 4
        %v2147 = vsel %vm1141, %v2145, %v2146
        %v2164 = vunpack.c.l.bf16 %v2102
        %v2165 = vunpack.c.h.bf16 %v2102
        %v2166 = vunpack.c.l.bf16 %v2105
        %v2167 = vunpack.c.h.bf16 %v2105
        %v2168 = vunpack.c.l.bf16 %v2108
        %v2169 = vunpack.c.h.bf16 %v2108
        %v2170 = vunpack.c.l.bf16 %v2111
        %v2171 = vunpack.c.h.bf16 %v2111
        %v2172 = vunpack.c.l.bf16 %v2114
        %v2173 = vunpack.c.h.bf16 %v2114
        %v2174 = vunpack.c.l.bf16 %v2117
        %v2175 = vunpack.c.h.bf16 %v2117
        %v2176 = vunpack.c.l.bf16 %v2120
        %v2177 = vunpack.c.h.bf16 %v2120
        %v2178 = vunpack.c.l.bf16 %v2123
        %v2179 = vunpack.c.h.bf16 %v2123
        %v2180 = vunpack.c.l.bf16 %v2126
        %v2181 = vunpack.c.h.bf16 %v2126
        %v2182 = vunpack.c.l.bf16 %v2129
        %v2183 = vunpack.c.h.bf16 %v2129
        %v2184 = vunpack.c.l.bf16 %v2132
        %v2185 = vunpack.c.h.bf16 %v2132
        %v2186 = vunpack.c.l.bf16 %v2135
        %v2187 = vunpack.c.h.bf16 %v2135
        %v2188 = vunpack.c.l.bf16 %v2138
        %v2189 = vunpack.c.h.bf16 %v2138
        %v2190 = vunpack.c.l.bf16 %v2141
        %v2191 = vunpack.c.h.bf16 %v2141
        %v2192 = vunpack.c.l.bf16 %v2144
        %v2193 = vunpack.c.h.bf16 %v2144
        %v2194 = vunpack.c.l.bf16 %v2147
        %v2195 = vunpack.c.h.bf16 %v2147
        %v2196 = vlaneseq
        %v2197 = vshrl.u32 %v2196, 7
        %v2198 = vsub.s32 4, %v2197
        %v2199 = vrot.slane %v904, %v2198
        %v2200 = vmul.f32 %v2164, %v2199
        %v2201 = vmul.f32 %v2165, %v2199
        %v2202 = vmul.f32 %v2166, %v2199
        %v2203 = vmul.f32 %v2167, %v2199
        %v2204 = vmul.f32 %v2168, %v2199
        %v2205 = vmul.f32 %v2169, %v2199
        %v2206 = vmul.f32 %v2170, %v2199
        %v2207 = vmul.f32 %v2171, %v2199
        %v2208 = vmul.f32 %v2172, %v2199
        %v2209 = vmul.f32 %v2173, %v2199
        %v2210 = vmul.f32 %v2174, %v2199
        %v2211 = vmul.f32 %v2175, %v2199
        %v2212 = vmul.f32 %v2176, %v2199
        %v2213 = vmul.f32 %v2177, %v2199
        %v2214 = vmul.f32 %v2178, %v2199
        %v2215 = vmul.f32 %v2179, %v2199
        %v2216 = vmul.f32 %v2180, %v2199
        %v2217 = vmul.f32 %v2181, %v2199
        %v2218 = vmul.f32 %v2182, %v2199
        %v2219 = vmul.f32 %v2183, %v2199
        %v2220 = vmul.f32 %v2184, %v2199
        %v2221 = vmul.f32 %v2185, %v2199
        %v2222 = vmul.f32 %v2186, %v2199
        %v2223 = vmul.f32 %v2187, %v2199
        %v2224 = vmul.f32 %v2188, %v2199
        %v2225 = vmul.f32 %v2189, %v2199
        %v2226 = vmul.f32 %v2190, %v2199
        %v2227 = vmul.f32 %v2191, %v2199
        %v2228 = vmul.f32 %v2192, %v2199
        %v2229 = vmul.f32 %v2193, %v2199
        %v2230 = vmul.f32 %v2194, %v2199
        %v2231 = vmul.f32 %v2195, %v2199
        %v2264 = vrot.slane %v2200, 1
        %v2265 = vrot.slane %v2201, 1
        %v2266 = vsel %vm1306, %v2264, %v2265
        %v2267 = vrot.slane %v2202, 1
        %v2268 = vrot.slane %v2203, 1
        %v2269 = vsel %vm1306, %v2267, %v2268
        %v2270 = vrot.slane %v2204, 1
        %v2271 = vrot.slane %v2205, 1
        %v2272 = vsel %vm1306, %v2270, %v2271
        %v2273 = vrot.slane %v2206, 1
        %v2274 = vrot.slane %v2207, 1
        %v2275 = vsel %vm1306, %v2273, %v2274
        %v2276 = vrot.slane %v2208, 1
        %v2277 = vrot.slane %v2209, 1
        %v2278 = vsel %vm1306, %v2276, %v2277
        %v2279 = vrot.slane %v2210, 1
        %v2280 = vrot.slane %v2211, 1
        %v2281 = vsel %vm1306, %v2279, %v2280
        %v2282 = vrot.slane %v2212, 1
        %v2283 = vrot.slane %v2213, 1
        %v2284 = vsel %vm1306, %v2282, %v2283
        %v2285 = vrot.slane %v2214, 1
        %v2286 = vrot.slane %v2215, 1
        %v2287 = vsel %vm1306, %v2285, %v2286
        %v2288 = vrot.slane %v2216, 1
        %v2289 = vrot.slane %v2217, 1
        %v2290 = vsel %vm1306, %v2288, %v2289
        %v2291 = vrot.slane %v2218, 1
        %v2292 = vrot.slane %v2219, 1
        %v2293 = vsel %vm1306, %v2291, %v2292
        %v2294 = vrot.slane %v2220, 1
        %v2295 = vrot.slane %v2221, 1
        %v2296 = vsel %vm1306, %v2294, %v2295
        %v2297 = vrot.slane %v2222, 1
        %v2298 = vrot.slane %v2223, 1
        %v2299 = vsel %vm1306, %v2297, %v2298
        %v2300 = vrot.slane %v2224, 1
        %v2301 = vrot.slane %v2225, 1
        %v2302 = vsel %vm1306, %v2300, %v2301
        %v2303 = vrot.slane %v2226, 1
        %v2304 = vrot.slane %v2227, 1
        %v2305 = vsel %vm1306, %v2303, %v2304
        %v2306 = vrot.slane %v2228, 1
        %v2307 = vrot.slane %v2229, 1
        %v2308 = vsel %vm1306, %v2306, %v2307
        %v2309 = vrot.slane %v2230, 1
        %v2310 = vrot.slane %v2231, 1
        %v2311 = vsel %vm1306, %v2309, %v2310
        %v2360 = vadd.f32 %v2004, %v2264
        %v2361 = vadd.f32 %v2005, %v2266
        %v2362 = vadd.f32 %v2006, %v2265
        %v2363 = vadd.f32 %v2007, %v2267
        %v2364 = vadd.f32 %v2008, %v2269
        %v2365 = vadd.f32 %v2009, %v2268
        %v2366 = vadd.f32 %v2010, %v2270
        %v2367 = vadd.f32 %v2011, %v2272
        %v2368 = vadd.f32 %v2012, %v2271
        %v2369 = vadd.f32 %v2013, %v2273
        %v2370 = vadd.f32 %v2014, %v2275
        %v2371 = vadd.f32 %v2015, %v2274
        %v2372 = vadd.f32 %v2016, %v2276
        %v2373 = vadd.f32 %v2017, %v2278
        %v2374 = vadd.f32 %v2018, %v2277
        %v2375 = vadd.f32 %v2019, %v2279
        %v2376 = vadd.f32 %v2020, %v2281
        %v2377 = vadd.f32 %v2021, %v2280
        %v2378 = vadd.f32 %v2022, %v2282
        %v2379 = vadd.f32 %v2023, %v2284
        %v2380 = vadd.f32 %v2024, %v2283
        %v2381 = vadd.f32 %v2025, %v2285
        %v2382 = vadd.f32 %v2026, %v2287
        %v2383 = vadd.f32 %v2027, %v2286
        %v2384 = vadd.f32 %v2028, %v2288
        %v2385 = vadd.f32 %v2029, %v2290
        %v2386 = vadd.f32 %v2030, %v2289
        %v2387 = vadd.f32 %v2031, %v2291
        %v2388 = vadd.f32 %v2032, %v2293
        %v2389 = vadd.f32 %v2033, %v2292
        %v2390 = vadd.f32 %v2034, %v2294
        %v2391 = vadd.f32 %v2035, %v2296
        %v2392 = vadd.f32 %v2036, %v2295
        %v2393 = vadd.f32 %v2037, %v2297
        %v2394 = vadd.f32 %v2038, %v2299
        %v2395 = vadd.f32 %v2039, %v2298
        %v2396 = vadd.f32 %v2040, %v2300
        %v2397 = vadd.f32 %v2041, %v2302
        %v2398 = vadd.f32 %v2042, %v2301
        %v2399 = vadd.f32 %v2043, %v2303
        %v2400 = vadd.f32 %v2044, %v2305
        %v2401 = vadd.f32 %v2045, %v2304
        %v2402 = vadd.f32 %v2046, %v2306
        %v2403 = vadd.f32 %v2047, %v2308
        %v2404 = vadd.f32 %v2048, %v2307
        %v2405 = vadd.f32 %v2049, %v2309
        %v2406 = vadd.f32 %v2050, %v2311
        %v2407 = vadd.f32 %v2051, %v2310
        %v2408 = vld [vmem:[%s871 + $0x8] sm:$0x1f]
        %v2409 = vld [vmem:[%s871 + $0x18] sm:$0x1f]
        %v2410 = vld [vmem:[%s871 + $0x28] sm:$0x1f]
        %v2411 = vld [vmem:[%s871 + $0x38] sm:$0x1f]
        %v2412 = vld [vmem:[%s871 + $0x48] sm:$0x1f]
        %v2413 = vld [vmem:[%s871 + $0x58] sm:$0x1f]
        %v2414 = vld [vmem:[%s871 + $0x68] sm:$0x1f]
        %v2415 = vld [vmem:[%s871 + $0x78] sm:$0x1f]
        %v2416 = vld [vmem:[%s871 + $0x88] sm:$0x1f]
        %v2417 = vld [vmem:[%s871 + $0x98] sm:$0x1f]
        %v2418 = vld [vmem:[%s871 + $0xa8] sm:$0x1f]
        %v2419 = vld [vmem:[%s871 + $0xb8] sm:$0x1f]
        %v2420 = vld [vmem:[%s871 + $0xc8] sm:$0x1f]
        %v2421 = vld [vmem:[%s871 + $0xd8] sm:$0x1f]
        %v2422 = vld [vmem:[%s871 + $0xe8] sm:$0x1f]
        %v2423 = vld [vmem:[%s871 + $0xf8] sm:$0x1f]
        %v2440 = vrot.slane %v2408, 4
        %v2441 = vsel %vm1141, %v2100, %v2440
        %v2442 = vrot.slane %v2409, 4
        %v2443 = vsel %vm1141, %v2103, %v2442
        %v2444 = vrot.slane %v2410, 4
        %v2445 = vsel %vm1141, %v2106, %v2444
        %v2446 = vrot.slane %v2411, 4
        %v2447 = vsel %vm1141, %v2109, %v2446
        %v2448 = vrot.slane %v2412, 4
        %v2449 = vsel %vm1141, %v2112, %v2448
        %v2450 = vrot.slane %v2413, 4
        %v2451 = vsel %vm1141, %v2115, %v2450
        %v2452 = vrot.slane %v2414, 4
        %v2453 = vsel %vm1141, %v2118, %v2452
        %v2454 = vrot.slane %v2415, 4
        %v2455 = vsel %vm1141, %v2121, %v2454
        %v2456 = vrot.slane %v2416, 4
        %v2457 = vsel %vm1141, %v2124, %v2456
        %v2458 = vrot.slane %v2417, 4
        %v2459 = vsel %vm1141, %v2127, %v2458
        %v2460 = vrot.slane %v2418, 4
        %v2461 = vsel %vm1141, %v2130, %v2460
        %v2462 = vrot.slane %v2419, 4
        %v2463 = vsel %vm1141, %v2133, %v2462
        %v2464 = vrot.slane %v2420, 4
        %v2465 = vsel %vm1141, %v2136, %v2464
        %v2466 = vrot.slane %v2421, 4
        %v2467 = vsel %vm1141, %v2139, %v2466
        %v2468 = vrot.slane %v2422, 4
        %v2469 = vsel %vm1141, %v2142, %v2468
        %v2470 = vrot.slane %v2423, 4
        %v2471 = vsel %vm1141, %v2145, %v2470
        %v2504 = vunpack.c.l.bf16 %v2441
        %v2505 = vunpack.c.h.bf16 %v2441
        %v2506 = vunpack.c.l.bf16 %v2440
        %v2507 = vunpack.c.l.bf16 %v2443
        %v2508 = vunpack.c.h.bf16 %v2443
        %v2509 = vunpack.c.l.bf16 %v2442
        %v2510 = vunpack.c.l.bf16 %v2445
        %v2511 = vunpack.c.h.bf16 %v2445
        %v2512 = vunpack.c.l.bf16 %v2444
        %v2513 = vunpack.c.l.bf16 %v2447
        %v2514 = vunpack.c.h.bf16 %v2447
        %v2515 = vunpack.c.l.bf16 %v2446
        %v2516 = vunpack.c.l.bf16 %v2449
        %v2517 = vunpack.c.h.bf16 %v2449
        %v2518 = vunpack.c.l.bf16 %v2448
        %v2519 = vunpack.c.l.bf16 %v2451
        %v2520 = vunpack.c.h.bf16 %v2451
        %v2521 = vunpack.c.l.bf16 %v2450
        %v2522 = vunpack.c.l.bf16 %v2453
        %v2523 = vunpack.c.h.bf16 %v2453
        %v2524 = vunpack.c.l.bf16 %v2452
        %v2525 = vunpack.c.l.bf16 %v2455
        %v2526 = vunpack.c.h.bf16 %v2455
        %v2527 = vunpack.c.l.bf16 %v2454
        %v2528 = vunpack.c.l.bf16 %v2457
        %v2529 = vunpack.c.h.bf16 %v2457
        %v2530 = vunpack.c.l.bf16 %v2456
        %v2531 = vunpack.c.l.bf16 %v2459
        %v2532 = vunpack.c.h.bf16 %v2459
        %v2533 = vunpack.c.l.bf16 %v2458
        %v2534 = vunpack.c.l.bf16 %v2461
        %v2535 = vunpack.c.h.bf16 %v2461
        %v2536 = vunpack.c.l.bf16 %v2460
        %v2537 = vunpack.c.l.bf16 %v2463
        %v2538 = vunpack.c.h.bf16 %v2463
        %v2539 = vunpack.c.l.bf16 %v2462
        %v2540 = vunpack.c.l.bf16 %v2465
        %v2541 = vunpack.c.h.bf16 %v2465
        %v2542 = vunpack.c.l.bf16 %v2464
        %v2543 = vunpack.c.l.bf16 %v2467
        %v2544 = vunpack.c.h.bf16 %v2467
        %v2545 = vunpack.c.l.bf16 %v2466
        %v2546 = vunpack.c.l.bf16 %v2469
        %v2547 = vunpack.c.h.bf16 %v2469
        %v2548 = vunpack.c.l.bf16 %v2468
        %v2549 = vunpack.c.l.bf16 %v2471
        %v2550 = vunpack.c.h.bf16 %v2471
        %v2551 = vunpack.c.l.bf16 %v2470
        %v2552 = vlaneseq
        %v2553 = vshrl.u32 %v2552, 7
        %v2554 = vsub.s32 5, %v2553
        %v2555 = vrot.slane %v904, %v2554
        %v2556 = vmul.f32 %v2504, %v2555
        %v2557 = vmul.f32 %v2505, %v2555
        %v2558 = vmul.f32 %v2506, %v2555
        %v2559 = vmul.f32 %v2507, %v2555
        %v2560 = vmul.f32 %v2508, %v2555
        %v2561 = vmul.f32 %v2509, %v2555
        %v2562 = vmul.f32 %v2510, %v2555
        %v2563 = vmul.f32 %v2511, %v2555
        %v2564 = vmul.f32 %v2512, %v2555
        %v2565 = vmul.f32 %v2513, %v2555
        %v2566 = vmul.f32 %v2514, %v2555
        %v2567 = vmul.f32 %v2515, %v2555
        %v2568 = vmul.f32 %v2516, %v2555
        %v2569 = vmul.f32 %v2517, %v2555
        %v2570 = vmul.f32 %v2518, %v2555
        %v2571 = vmul.f32 %v2519, %v2555
        %v2572 = vmul.f32 %v2520, %v2555
        %v2573 = vmul.f32 %v2521, %v2555
        %v2574 = vmul.f32 %v2522, %v2555
        %v2575 = vmul.f32 %v2523, %v2555
        %v2576 = vmul.f32 %v2524, %v2555
        %v2577 = vmul.f32 %v2525, %v2555
        %v2578 = vmul.f32 %v2526, %v2555
        %v2579 = vmul.f32 %v2527, %v2555
        %v2580 = vmul.f32 %v2528, %v2555
        %v2581 = vmul.f32 %v2529, %v2555
        %v2582 = vmul.f32 %v2530, %v2555
        %v2583 = vmul.f32 %v2531, %v2555
        %v2584 = vmul.f32 %v2532, %v2555
        %v2585 = vmul.f32 %v2533, %v2555
        %v2586 = vmul.f32 %v2534, %v2555
        %v2587 = vmul.f32 %v2535, %v2555
        %v2588 = vmul.f32 %v2536, %v2555
        %v2589 = vmul.f32 %v2537, %v2555
        %v2590 = vmul.f32 %v2538, %v2555
        %v2591 = vmul.f32 %v2539, %v2555
        %v2592 = vmul.f32 %v2540, %v2555
        %v2593 = vmul.f32 %v2541, %v2555
        %v2594 = vmul.f32 %v2542, %v2555
        %v2595 = vmul.f32 %v2543, %v2555
        %v2596 = vmul.f32 %v2544, %v2555
        %v2597 = vmul.f32 %v2545, %v2555
        %v2598 = vmul.f32 %v2546, %v2555
        %v2599 = vmul.f32 %v2547, %v2555
        %v2600 = vmul.f32 %v2548, %v2555
        %v2601 = vmul.f32 %v2549, %v2555
        %v2602 = vmul.f32 %v2550, %v2555
        %v2603 = vmul.f32 %v2551, %v2555
        %v2652 = vrot.slane %v2556, 2
        %v2653 = vrot.slane %v2557, 2
        %v2654 = vsel %vm1695, %v2652, %v2653
        %v2655 = vrot.slane %v2558, 2
        %v2656 = vsel %vm1695, %v2653, %v2655
        %v2657 = vrot.slane %v2559, 2
        %v2658 = vrot.slane %v2560, 2
        %v2659 = vsel %vm1695, %v2657, %v2658
        %v2660 = vrot.slane %v2561, 2
        %v2661 = vsel %vm1695, %v2658, %v2660
        %v2662 = vrot.slane %v2562, 2
        %v2663 = vrot.slane %v2563, 2
        %v2664 = vsel %vm1695, %v2662, %v2663
        %v2665 = vrot.slane %v2564, 2
        %v2666 = vsel %vm1695, %v2663, %v2665
        %v2667 = vrot.slane %v2565, 2
        %v2668 = vrot.slane %v2566, 2
        %v2669 = vsel %vm1695, %v2667, %v2668
        %v2670 = vrot.slane %v2567, 2
        %v2671 = vsel %vm1695, %v2668, %v2670
        %v2672 = vrot.slane %v2568, 2
        %v2673 = vrot.slane %v2569, 2
        %v2674 = vsel %vm1695, %v2672, %v2673
        %v2675 = vrot.slane %v2570, 2
        %v2676 = vsel %vm1695, %v2673, %v2675
        %v2677 = vrot.slane %v2571, 2
        %v2678 = vrot.slane %v2572, 2
        %v2679 = vsel %vm1695, %v2677, %v2678
        %v2680 = vrot.slane %v2573, 2
        %v2681 = vsel %vm1695, %v2678, %v2680
        %v2682 = vrot.slane %v2574, 2
        %v2683 = vrot.slane %v2575, 2
        %v2684 = vsel %vm1695, %v2682, %v2683
        %v2685 = vrot.slane %v2576, 2
        %v2686 = vsel %vm1695, %v2683, %v2685
        %v2687 = vrot.slane %v2577, 2
        %v2688 = vrot.slane %v2578, 2
        %v2689 = vsel %vm1695, %v2687, %v2688
        %v2690 = vrot.slane %v2579, 2
        %v2691 = vsel %vm1695, %v2688, %v2690
        %v2692 = vrot.slane %v2580, 2
        %v2693 = vrot.slane %v2581, 2
        %v2694 = vsel %vm1695, %v2692, %v2693
        %v2695 = vrot.slane %v2582, 2
        %v2696 = vsel %vm1695, %v2693, %v2695
        %v2697 = vrot.slane %v2583, 2
        %v2698 = vrot.slane %v2584, 2
        %v2699 = vsel %vm1695, %v2697, %v2698
        %v2700 = vrot.slane %v2585, 2
        %v2701 = vsel %vm1695, %v2698, %v2700
        %v2702 = vrot.slane %v2586, 2
        %v2703 = vrot.slane %v2587, 2
        %v2704 = vsel %vm1695, %v2702, %v2703
        %v2705 = vrot.slane %v2588, 2
        %v2706 = vsel %vm1695, %v2703, %v2705
        %v2707 = vrot.slane %v2589, 2
        %v2708 = vrot.slane %v2590, 2
        %v2709 = vsel %vm1695, %v2707, %v2708
        %v2710 = vrot.slane %v2591, 2
        %v2711 = vsel %vm1695, %v2708, %v2710
        %v2712 = vrot.slane %v2592, 2
        %v2713 = vrot.slane %v2593, 2
        %v2714 = vsel %vm1695, %v2712, %v2713
        %v2715 = vrot.slane %v2594, 2
        %v2716 = vsel %vm1695, %v2713, %v2715
        %v2717 = vrot.slane %v2595, 2
        %v2718 = vrot.slane %v2596, 2
        %v2719 = vsel %vm1695, %v2717, %v2718
        %v2720 = vrot.slane %v2597, 2
        %v2721 = vsel %vm1695, %v2718, %v2720
        %v2722 = vrot.slane %v2598, 2
        %v2723 = vrot.slane %v2599, 2
        %v2724 = vsel %vm1695, %v2722, %v2723
        %v2725 = vrot.slane %v2600, 2
        %v2726 = vsel %vm1695, %v2723, %v2725
        %v2727 = vrot.slane %v2601, 2
        %v2728 = vrot.slane %v2602, 2
        %v2729 = vsel %vm1695, %v2727, %v2728
        %v2730 = vrot.slane %v2603, 2
        %v2731 = vsel %vm1695, %v2728, %v2730
        %v2780 = vadd.f32 %v2360, %v2652
        %v2781 = vadd.f32 %v2361, %v2654
        %v2782 = vadd.f32 %v2362, %v2656
        %v2783 = vadd.f32 %v2363, %v2657
        %v2784 = vadd.f32 %v2364, %v2659
        %v2785 = vadd.f32 %v2365, %v2661
        %v2786 = vadd.f32 %v2366, %v2662
        %v2787 = vadd.f32 %v2367, %v2664
        %v2788 = vadd.f32 %v2368, %v2666
        %v2789 = vadd.f32 %v2369, %v2667
        %v2790 = vadd.f32 %v2370, %v2669
        %v2791 = vadd.f32 %v2371, %v2671
        %v2792 = vadd.f32 %v2372, %v2672
        %v2793 = vadd.f32 %v2373, %v2674
        %v2794 = vadd.f32 %v2374, %v2676
        %v2795 = vadd.f32 %v2375, %v2677
        %v2796 = vadd.f32 %v2376, %v2679
        %v2797 = vadd.f32 %v2377, %v2681
        %v2798 = vadd.f32 %v2378, %v2682
        %v2799 = vadd.f32 %v2379, %v2684
        %v2800 = vadd.f32 %v2380, %v2686
        %v2801 = vadd.f32 %v2381, %v2687
        %v2802 = vadd.f32 %v2382, %v2689
        %v2803 = vadd.f32 %v2383, %v2691
        %v2804 = vadd.f32 %v2384, %v2692
        %v2805 = vadd.f32 %v2385, %v2694
        %v2806 = vadd.f32 %v2386, %v2696
        %v2807 = vadd.f32 %v2387, %v2697
        %v2808 = vadd.f32 %v2388, %v2699
        %v2809 = vadd.f32 %v2389, %v2701
        %v2810 = vadd.f32 %v2390, %v2702
        %v2811 = vadd.f32 %v2391, %v2704
        %v2812 = vadd.f32 %v2392, %v2706
        %v2813 = vadd.f32 %v2393, %v2707
        %v2814 = vadd.f32 %v2394, %v2709
        %v2815 = vadd.f32 %v2395, %v2711
        %v2816 = vadd.f32 %v2396, %v2712
        %v2817 = vadd.f32 %v2397, %v2714
        %v2818 = vadd.f32 %v2398, %v2716
        %v2819 = vadd.f32 %v2399, %v2717
        %v2820 = vadd.f32 %v2400, %v2719
        %v2821 = vadd.f32 %v2401, %v2721
        %v2822 = vadd.f32 %v2402, %v2722
        %v2823 = vadd.f32 %v2403, %v2724
        %v2824 = vadd.f32 %v2404, %v2726
        %v2825 = vadd.f32 %v2405, %v2727
        %v2826 = vadd.f32 %v2406, %v2729
        %v2827 = vadd.f32 %v2407, %v2731
        %s2828 = scalar_lea.vmem [#allocation2], 32
        %v2829 = vld [vmem:[%s2828] sm:$0xf8]
        %v2830 = vld [vmem:[%s2828 + $0x8] sm:$0xf]
        %v2831 = vld [vmem:[%s2828 + $0x10] sm:$0xf8]
        %v2832 = vld [vmem:[%s2828 + $0x18] sm:$0xf]
        %v2833 = vld [vmem:[%s2828 + $0x20] sm:$0xf8]
        %v2834 = vld [vmem:[%s2828 + $0x28] sm:$0xf]
        %v2835 = vld [vmem:[%s2828 + $0x30] sm:$0xf8]
        %v2836 = vld [vmem:[%s2828 + $0x38] sm:$0xf]
        %v2837 = vld [vmem:[%s2828 + $0x40] sm:$0xf8]
        %v2838 = vld [vmem:[%s2828 + $0x48] sm:$0xf]
        %v2839 = vld [vmem:[%s2828 + $0x50] sm:$0xf8]
        %v2840 = vld [vmem:[%s2828 + $0x58] sm:$0xf]
        %v2841 = vld [vmem:[%s2828 + $0x60] sm:$0xf8]
        %v2842 = vld [vmem:[%s2828 + $0x68] sm:$0xf]
        %v2843 = vld [vmem:[%s2828 + $0x70] sm:$0xf8]
        %v2844 = vld [vmem:[%s2828 + $0x78] sm:$0xf]
        %v2845 = vld [vmem:[%s2828 + $0x80] sm:$0xf8]
        %v2846 = vld [vmem:[%s2828 + $0x88] sm:$0xf]
        %v2847 = vld [vmem:[%s2828 + $0x90] sm:$0xf8]
        %v2848 = vld [vmem:[%s2828 + $0x98] sm:$0xf]
        %v2849 = vld [vmem:[%s2828 + $0xa0] sm:$0xf8]
        %v2850 = vld [vmem:[%s2828 + $0xa8] sm:$0xf]
        %v2851 = vld [vmem:[%s2828 + $0xb0] sm:$0xf8]
        %v2852 = vld [vmem:[%s2828 + $0xb8] sm:$0xf]
        %v2853 = vld [vmem:[%s2828 + $0xc0] sm:$0xf8]
        %v2854 = vld [vmem:[%s2828 + $0xc8] sm:$0xf]
        %v2855 = vld [vmem:[%s2828 + $0xd0] sm:$0xf8]
        %v2856 = vld [vmem:[%s2828 + $0xd8] sm:$0xf]
        %v2857 = vld [vmem:[%s2828 + $0xe0] sm:$0xf8]
        %v2858 = vld [vmem:[%s2828 + $0xe8] sm:$0xf]
        %v2859 = vld [vmem:[%s2828 + $0xf0] sm:$0xf8]
        %v2860 = vld [vmem:[%s2828 + $0xf8] sm:$0xf]
        %v2861 = vunpack.c.l.bf16 %v2829
        %v2862 = vunpack.c.h.bf16 %v2829
        %v2863 = vunpack.c.l.bf16 %v2830
        %v2864 = vunpack.c.l.bf16 %v2831
        %v2865 = vunpack.c.h.bf16 %v2831
        %v2866 = vunpack.c.l.bf16 %v2832
        %v2867 = vunpack.c.l.bf16 %v2833
        %v2868 = vunpack.c.h.bf16 %v2833
        %v2869 = vunpack.c.l.bf16 %v2834
        %v2870 = vunpack.c.l.bf16 %v2835
        %v2871 = vunpack.c.h.bf16 %v2835
        %v2872 = vunpack.c.l.bf16 %v2836
        %v2873 = vunpack.c.l.bf16 %v2837
        %v2874 = vunpack.c.h.bf16 %v2837
        %v2875 = vunpack.c.l.bf16 %v2838
        %v2876 = vunpack.c.l.bf16 %v2839
        %v2877 = vunpack.c.h.bf16 %v2839
        %v2878 = vunpack.c.l.bf16 %v2840
        %v2879 = vunpack.c.l.bf16 %v2841
        %v2880 = vunpack.c.h.bf16 %v2841
        %v2881 = vunpack.c.l.bf16 %v2842
        %v2882 = vunpack.c.l.bf16 %v2843
        %v2883 = vunpack.c.h.bf16 %v2843
        %v2884 = vunpack.c.l.bf16 %v2844
        %v2885 = vunpack.c.l.bf16 %v2845
        %v2886 = vunpack.c.h.bf16 %v2845
        %v2887 = vunpack.c.l.bf16 %v2846
        %v2888 = vunpack.c.l.bf16 %v2847
        %v2889 = vunpack.c.h.bf16 %v2847
        %v2890 = vunpack.c.l.bf16 %v2848
        %v2891 = vunpack.c.l.bf16 %v2849
        %v2892 = vunpack.c.h.bf16 %v2849
        %v2893 = vunpack.c.l.bf16 %v2850
        %v2894 = vunpack.c.l.bf16 %v2851
        %v2895 = vunpack.c.h.bf16 %v2851
        %v2896 = vunpack.c.l.bf16 %v2852
        %v2897 = vunpack.c.l.bf16 %v2853
        %v2898 = vunpack.c.h.bf16 %v2853
        %v2899 = vunpack.c.l.bf16 %v2854
        %v2900 = vunpack.c.l.bf16 %v2855
        %v2901 = vunpack.c.h.bf16 %v2855
        %v2902 = vunpack.c.l.bf16 %v2856
        %v2903 = vunpack.c.l.bf16 %v2857
        %v2904 = vunpack.c.h.bf16 %v2857
        %v2905 = vunpack.c.l.bf16 %v2858
        %v2906 = vunpack.c.l.bf16 %v2859
        %v2907 = vunpack.c.h.bf16 %v2859
        %v2908 = vunpack.c.l.bf16 %v2860
        %v2909 = vlaneseq
        %v2910 = vshrl.u32 %v2909, 7
        %v2911 = vsub.s32 6, %v2910
        %v2912 = vrot.slane %v904, %v2911
        %v2913 = vmul.f32 %v2861, %v2912
        %v2914 = vmul.f32 %v2862, %v2912
        %v2915 = vmul.f32 %v2863, %v2912
        %v2916 = vmul.f32 %v2864, %v2912
        %v2917 = vmul.f32 %v2865, %v2912
        %v2918 = vmul.f32 %v2866, %v2912
        %v2919 = vmul.f32 %v2867, %v2912
        %v2920 = vmul.f32 %v2868, %v2912
        %v2921 = vmul.f32 %v2869, %v2912
        %v2922 = vmul.f32 %v2870, %v2912
        %v2923 = vmul.f32 %v2871, %v2912
        %v2924 = vmul.f32 %v2872, %v2912
        %v2925 = vmul.f32 %v2873, %v2912
        %v2926 = vmul.f32 %v2874, %v2912
        %v2927 = vmul.f32 %v2875, %v2912
        %v2928 = vmul.f32 %v2876, %v2912
        %v2929 = vmul.f32 %v2877, %v2912
        %v2930 = vmul.f32 %v2878, %v2912
        %v2931 = vmul.f32 %v2879, %v2912
        %v2932 = vmul.f32 %v2880, %v2912
        %v2933 = vmul.f32 %v2881, %v2912
        %v2934 = vmul.f32 %v2882, %v2912
        %v2935 = vmul.f32 %v2883, %v2912
        %v2936 = vmul.f32 %v2884, %v2912
        %v2937 = vmul.f32 %v2885, %v2912
        %v2938 = vmul.f32 %v2886, %v2912
        %v2939 = vmul.f32 %v2887, %v2912
        %v2940 = vmul.f32 %v2888, %v2912
        %v2941 = vmul.f32 %v2889, %v2912
        %v2942 = vmul.f32 %v2890, %v2912
        %v2943 = vmul.f32 %v2891, %v2912
        %v2944 = vmul.f32 %v2892, %v2912
        %v2945 = vmul.f32 %v2893, %v2912
        %v2946 = vmul.f32 %v2894, %v2912
        %v2947 = vmul.f32 %v2895, %v2912
        %v2948 = vmul.f32 %v2896, %v2912
        %v2949 = vmul.f32 %v2897, %v2912
        %v2950 = vmul.f32 %v2898, %v2912
        %v2951 = vmul.f32 %v2899, %v2912
        %v2952 = vmul.f32 %v2900, %v2912
        %v2953 = vmul.f32 %v2901, %v2912
        %v2954 = vmul.f32 %v2902, %v2912
        %v2955 = vmul.f32 %v2903, %v2912
        %v2956 = vmul.f32 %v2904, %v2912
        %v2957 = vmul.f32 %v2905, %v2912
        %v2958 = vmul.f32 %v2906, %v2912
        %v2959 = vmul.f32 %v2907, %v2912
        %v2960 = vmul.f32 %v2908, %v2912
        %v2961 = vadd.f32 %v2780, %v2913
        %v2962 = vadd.f32 %v2781, %v2914
        %v2963 = vadd.f32 %v2782, %v2915
        %v2964 = vadd.f32 %v2783, %v2916
        %v2965 = vadd.f32 %v2784, %v2917
        %v2966 = vadd.f32 %v2785, %v2918
        %v2967 = vadd.f32 %v2786, %v2919
        %v2968 = vadd.f32 %v2787, %v2920
        %v2969 = vadd.f32 %v2788, %v2921
        %v2970 = vadd.f32 %v2789, %v2922
        %v2971 = vadd.f32 %v2790, %v2923
        %v2972 = vadd.f32 %v2791, %v2924
        %v2973 = vadd.f32 %v2792, %v2925
        %v2974 = vadd.f32 %v2793, %v2926
        %v2975 = vadd.f32 %v2794, %v2927
        %v2976 = vadd.f32 %v2795, %v2928
        %v2977 = vadd.f32 %v2796, %v2929
        %v2978 = vadd.f32 %v2797, %v2930
        %v2979 = vadd.f32 %v2798, %v2931
        %v2980 = vadd.f32 %v2799, %v2932
        %v2981 = vadd.f32 %v2800, %v2933
        %v2982 = vadd.f32 %v2801, %v2934
        %v2983 = vadd.f32 %v2802, %v2935
        %v2984 = vadd.f32 %v2803, %v2936
        %v2985 = vadd.f32 %v2804, %v2937
        %v2986 = vadd.f32 %v2805, %v2938
        %v2987 = vadd.f32 %v2806, %v2939
        %v2988 = vadd.f32 %v2807, %v2940
        %v2989 = vadd.f32 %v2808, %v2941
        %v2990 = vadd.f32 %v2809, %v2942
        %v2991 = vadd.f32 %v2810, %v2943
        %v2992 = vadd.f32 %v2811, %v2944
        %v2993 = vadd.f32 %v2812, %v2945
        %v2994 = vadd.f32 %v2813, %v2946
        %v2995 = vadd.f32 %v2814, %v2947
        %v2996 = vadd.f32 %v2815, %v2948
        %v2997 = vadd.f32 %v2816, %v2949
        %v2998 = vadd.f32 %v2817, %v2950
        %v2999 = vadd.f32 %v2818, %v2951
        %v3000 = vadd.f32 %v2819, %v2952
        %v3001 = vadd.f32 %v2820, %v2953
        %v3002 = vadd.f32 %v2821, %v2954
        %v3003 = vadd.f32 %v2822, %v2955
        %v3004 = vadd.f32 %v2823, %v2956
        %v3005 = vadd.f32 %v2824, %v2957
        %v3006 = vadd.f32 %v2825, %v2958
        %v3007 = vadd.f32 %v2826, %v2959
        %v3008 = vadd.f32 %v2827, %v2960
        %v3009 = vld [vmem:[%s2828] sm:$0xf0]
        %v3010 = vld [vmem:[%s2828 + $0x10] sm:$0xf0]
        %v3011 = vld [vmem:[%s2828 + $0x20] sm:$0xf0]
        %v3012 = vld [vmem:[%s2828 + $0x30] sm:$0xf0]
        %v3013 = vld [vmem:[%s2828 + $0x40] sm:$0xf0]
        %v3014 = vld [vmem:[%s2828 + $0x50] sm:$0xf0]
        %v3015 = vld [vmem:[%s2828 + $0x60] sm:$0xf0]
        %v3016 = vld [vmem:[%s2828 + $0x70] sm:$0xf0]
        %v3017 = vld [vmem:[%s2828 + $0x80] sm:$0xf0]
        %v3018 = vld [vmem:[%s2828 + $0x90] sm:$0xf0]
        %v3019 = vld [vmem:[%s2828 + $0xa0] sm:$0xf0]
        %v3020 = vld [vmem:[%s2828 + $0xb0] sm:$0xf0]
        %v3021 = vld [vmem:[%s2828 + $0xc0] sm:$0xf0]
        %v3022 = vld [vmem:[%s2828 + $0xd0] sm:$0xf0]
        %v3023 = vld [vmem:[%s2828 + $0xe0] sm:$0xf0]
        %v3024 = vld [vmem:[%s2828 + $0xf0] sm:$0xf0]
        %v3057 = vrot.slane %v3009, 4
        %v3058 = vrot.slane %v2830, 4
        %v3059 = vsel %vm1141, %v3057, %v3058
        %v3060 = vrot.slane %v3010, 4
        %v3061 = vrot.slane %v2832, 4
        %v3062 = vsel %vm1141, %v3060, %v3061
        %v3063 = vrot.slane %v3011, 4
        %v3064 = vrot.slane %v2834, 4
        %v3065 = vsel %vm1141, %v3063, %v3064
        %v3066 = vrot.slane %v3012, 4
        %v3067 = vrot.slane %v2836, 4
        %v3068 = vsel %vm1141, %v3066, %v3067
        %v3069 = vrot.slane %v3013, 4
        %v3070 = vrot.slane %v2838, 4
        %v3071 = vsel %vm1141, %v3069, %v3070
        %v3072 = vrot.slane %v3014, 4
        %v3073 = vrot.slane %v2840, 4
        %v3074 = vsel %vm1141, %v3072, %v3073
        %v3075 = vrot.slane %v3015, 4
        %v3076 = vrot.slane %v2842, 4
        %v3077 = vsel %vm1141, %v3075, %v3076
        %v3078 = vrot.slane %v3016, 4
        %v3079 = vrot.slane %v2844, 4
        %v3080 = vsel %vm1141, %v3078, %v3079
        %v3081 = vrot.slane %v3017, 4
        %v3082 = vrot.slane %v2846, 4
        %v3083 = vsel %vm1141, %v3081, %v3082
        %v3084 = vrot.slane %v3018, 4
        %v3085 = vrot.slane %v2848, 4
        %v3086 = vsel %vm1141, %v3084, %v3085
        %v3087 = vrot.slane %v3019, 4
        %v3088 = vrot.slane %v2850, 4
        %v3089 = vsel %vm1141, %v3087, %v3088
        %v3090 = vrot.slane %v3020, 4
        %v3091 = vrot.slane %v2852, 4
        %v3092 = vsel %vm1141, %v3090, %v3091
        %v3093 = vrot.slane %v3021, 4
        %v3094 = vrot.slane %v2854, 4
        %v3095 = vsel %vm1141, %v3093, %v3094
        %v3096 = vrot.slane %v3022, 4
        %v3097 = vrot.slane %v2856, 4
        %v3098 = vsel %vm1141, %v3096, %v3097
        %v3099 = vrot.slane %v3023, 4
        %v3100 = vrot.slane %v2858, 4
        %v3101 = vsel %vm1141, %v3099, %v3100
        %v3102 = vrot.slane %v3024, 4
        %v3103 = vrot.slane %v2860, 4
        %v3104 = vsel %vm1141, %v3102, %v3103
        %v3121 = vunpack.c.l.bf16 %v3059
        %v3122 = vunpack.c.h.bf16 %v3059
        %v3123 = vunpack.c.l.bf16 %v3062
        %v3124 = vunpack.c.h.bf16 %v3062
        %v3125 = vunpack.c.l.bf16 %v3065
        %v3126 = vunpack.c.h.bf16 %v3065
        %v3127 = vunpack.c.l.bf16 %v3068
        %v3128 = vunpack.c.h.bf16 %v3068
        %v3129 = vunpack.c.l.bf16 %v3071
        %v3130 = vunpack.c.h.bf16 %v3071
        %v3131 = vunpack.c.l.bf16 %v3074
        %v3132 = vunpack.c.h.bf16 %v3074
        %v3133 = vunpack.c.l.bf16 %v3077
        %v3134 = vunpack.c.h.bf16 %v3077
        %v3135 = vunpack.c.l.bf16 %v3080
        %v3136 = vunpack.c.h.bf16 %v3080
        %v3137 = vunpack.c.l.bf16 %v3083
        %v3138 = vunpack.c.h.bf16 %v3083
        %v3139 = vunpack.c.l.bf16 %v3086
        %v3140 = vunpack.c.h.bf16 %v3086
        %v3141 = vunpack.c.l.bf16 %v3089
        %v3142 = vunpack.c.h.bf16 %v3089
        %v3143 = vunpack.c.l.bf16 %v3092
        %v3144 = vunpack.c.h.bf16 %v3092
        %v3145 = vunpack.c.l.bf16 %v3095
        %v3146 = vunpack.c.h.bf16 %v3095
        %v3147 = vunpack.c.l.bf16 %v3098
        %v3148 = vunpack.c.h.bf16 %v3098
        %v3149 = vunpack.c.l.bf16 %v3101
        %v3150 = vunpack.c.h.bf16 %v3101
        %v3151 = vunpack.c.l.bf16 %v3104
        %v3152 = vunpack.c.h.bf16 %v3104
        %v3153 = vlaneseq
        %v3154 = vshrl.u32 %v3153, 7
        %v3155 = vsub.s32 7, %v3154
        %v3156 = vrot.slane %v904, %v3155
        %v3157 = vmul.f32 %v3121, %v3156
        %v3158 = vmul.f32 %v3122, %v3156
        %v3159 = vmul.f32 %v3123, %v3156
        %v3160 = vmul.f32 %v3124, %v3156
        %v3161 = vmul.f32 %v3125, %v3156
        %v3162 = vmul.f32 %v3126, %v3156
        %v3163 = vmul.f32 %v3127, %v3156
        %v3164 = vmul.f32 %v3128, %v3156
        %v3165 = vmul.f32 %v3129, %v3156
        %v3166 = vmul.f32 %v3130, %v3156
        %v3167 = vmul.f32 %v3131, %v3156
        %v3168 = vmul.f32 %v3132, %v3156
        %v3169 = vmul.f32 %v3133, %v3156
        %v3170 = vmul.f32 %v3134, %v3156
        %v3171 = vmul.f32 %v3135, %v3156
        %v3172 = vmul.f32 %v3136, %v3156
        %v3173 = vmul.f32 %v3137, %v3156
        %v3174 = vmul.f32 %v3138, %v3156
        %v3175 = vmul.f32 %v3139, %v3156
        %v3176 = vmul.f32 %v3140, %v3156
        %v3177 = vmul.f32 %v3141, %v3156
        %v3178 = vmul.f32 %v3142, %v3156
        %v3179 = vmul.f32 %v3143, %v3156
        %v3180 = vmul.f32 %v3144, %v3156
        %v3181 = vmul.f32 %v3145, %v3156
        %v3182 = vmul.f32 %v3146, %v3156
        %v3183 = vmul.f32 %v3147, %v3156
        %v3184 = vmul.f32 %v3148, %v3156
        %v3185 = vmul.f32 %v3149, %v3156
        %v3186 = vmul.f32 %v3150, %v3156
        %v3187 = vmul.f32 %v3151, %v3156
        %v3188 = vmul.f32 %v3152, %v3156
        %v3221 = vrot.slane %v3157, 1
        %v3222 = vrot.slane %v3158, 1
        %v3223 = vsel %vm1306, %v3221, %v3222
        %v3224 = vrot.slane %v3159, 1
        %v3225 = vrot.slane %v3160, 1
        %v3226 = vsel %vm1306, %v3224, %v3225
        %v3227 = vrot.slane %v3161, 1
        %v3228 = vrot.slane %v3162, 1
        %v3229 = vsel %vm1306, %v3227, %v3228
        %v3230 = vrot.slane %v3163, 1
        %v3231 = vrot.slane %v3164, 1
        %v3232 = vsel %vm1306, %v3230, %v3231
        %v3233 = vrot.slane %v3165, 1
        %v3234 = vrot.slane %v3166, 1
        %v3235 = vsel %vm1306, %v3233, %v3234
        %v3236 = vrot.slane %v3167, 1
        %v3237 = vrot.slane %v3168, 1
        %v3238 = vsel %vm1306, %v3236, %v3237
        %v3239 = vrot.slane %v3169, 1
        %v3240 = vrot.slane %v3170, 1
        %v3241 = vsel %vm1306, %v3239, %v3240
        %v3242 = vrot.slane %v3171, 1
        %v3243 = vrot.slane %v3172, 1
        %v3244 = vsel %vm1306, %v3242, %v3243
        %v3245 = vrot.slane %v3173, 1
        %v3246 = vrot.slane %v3174, 1
        %v3247 = vsel %vm1306, %v3245, %v3246
        %v3248 = vrot.slane %v3175, 1
        %v3249 = vrot.slane %v3176, 1
        %v3250 = vsel %vm1306, %v3248, %v3249
        %v3251 = vrot.slane %v3177, 1
        %v3252 = vrot.slane %v3178, 1
        %v3253 = vsel %vm1306, %v3251, %v3252
        %v3254 = vrot.slane %v3179, 1
        %v3255 = vrot.slane %v3180, 1
        %v3256 = vsel %vm1306, %v3254, %v3255
        %v3257 = vrot.slane %v3181, 1
        %v3258 = vrot.slane %v3182, 1
        %v3259 = vsel %vm1306, %v3257, %v3258
        %v3260 = vrot.slane %v3183, 1
        %v3261 = vrot.slane %v3184, 1
        %v3262 = vsel %vm1306, %v3260, %v3261
        %v3263 = vrot.slane %v3185, 1
        %v3264 = vrot.slane %v3186, 1
        %v3265 = vsel %vm1306, %v3263, %v3264
        %v3266 = vrot.slane %v3187, 1
        %v3267 = vrot.slane %v3188, 1
        %v3268 = vsel %vm1306, %v3266, %v3267
        %v3317 = vadd.f32 %v2961, %v3221
        %v3318 = vadd.f32 %v2962, %v3223
        %v3319 = vadd.f32 %v2963, %v3222
        %v3320 = vadd.f32 %v2964, %v3224
        %v3321 = vadd.f32 %v2965, %v3226
        %v3322 = vadd.f32 %v2966, %v3225
        %v3323 = vadd.f32 %v2967, %v3227
        %v3324 = vadd.f32 %v2968, %v3229
        %v3325 = vadd.f32 %v2969, %v3228
        %v3326 = vadd.f32 %v2970, %v3230
        %v3327 = vadd.f32 %v2971, %v3232
        %v3328 = vadd.f32 %v2972, %v3231
        %v3329 = vadd.f32 %v2973, %v3233
        %v3330 = vadd.f32 %v2974, %v3235
        %v3331 = vadd.f32 %v2975, %v3234
        %v3332 = vadd.f32 %v2976, %v3236
        %v3333 = vadd.f32 %v2977, %v3238
        %v3334 = vadd.f32 %v2978, %v3237
        %v3335 = vadd.f32 %v2979, %v3239
        %v3336 = vadd.f32 %v2980, %v3241
        %v3337 = vadd.f32 %v2981, %v3240
        %v3338 = vadd.f32 %v2982, %v3242
        %v3339 = vadd.f32 %v2983, %v3244
        %v3340 = vadd.f32 %v2984, %v3243
        %v3341 = vadd.f32 %v2985, %v3245
        %v3342 = vadd.f32 %v2986, %v3247
        %v3343 = vadd.f32 %v2987, %v3246
        %v3344 = vadd.f32 %v2988, %v3248
        %v3345 = vadd.f32 %v2989, %v3250
        %v3346 = vadd.f32 %v2990, %v3249
        %v3347 = vadd.f32 %v2991, %v3251
        %v3348 = vadd.f32 %v2992, %v3253
        %v3349 = vadd.f32 %v2993, %v3252
        %v3350 = vadd.f32 %v2994, %v3254
        %v3351 = vadd.f32 %v2995, %v3256
        %v3352 = vadd.f32 %v2996, %v3255
        %v3353 = vadd.f32 %v2997, %v3257
        %v3354 = vadd.f32 %v2998, %v3259
        %v3355 = vadd.f32 %v2999, %v3258
        %v3356 = vadd.f32 %v3000, %v3260
        %v3357 = vadd.f32 %v3001, %v3262
        %v3358 = vadd.f32 %v3002, %v3261
        %v3359 = vadd.f32 %v3003, %v3263
        %v3360 = vadd.f32 %v3004, %v3265
        %v3361 = vadd.f32 %v3005, %v3264
        %v3362 = vadd.f32 %v3006, %v3266
        %v3363 = vadd.f32 %v3007, %v3268
        %v3364 = vadd.f32 %v3008, %v3267
        %v3365 = vld [vmem:[%s2828 + $0x8] sm:$0x1f]
        %v3366 = vld [vmem:[%s2828 + $0x18] sm:$0x1f]
        %v3367 = vld [vmem:[%s2828 + $0x28] sm:$0x1f]
        %v3368 = vld [vmem:[%s2828 + $0x38] sm:$0x1f]
        %v3369 = vld [vmem:[%s2828 + $0x48] sm:$0x1f]
        %v3370 = vld [vmem:[%s2828 + $0x58] sm:$0x1f]
        %v3371 = vld [vmem:[%s2828 + $0x68] sm:$0x1f]
        %v3372 = vld [vmem:[%s2828 + $0x78] sm:$0x1f]
        %v3373 = vld [vmem:[%s2828 + $0x88] sm:$0x1f]
        %v3374 = vld [vmem:[%s2828 + $0x98] sm:$0x1f]
        %v3375 = vld [vmem:[%s2828 + $0xa8] sm:$0x1f]
        %v3376 = vld [vmem:[%s2828 + $0xb8] sm:$0x1f]
        %v3377 = vld [vmem:[%s2828 + $0xc8] sm:$0x1f]
        %v3378 = vld [vmem:[%s2828 + $0xd8] sm:$0x1f]
        %v3379 = vld [vmem:[%s2828 + $0xe8] sm:$0x1f]
        %v3380 = vld [vmem:[%s2828 + $0xf8] sm:$0x1f]
        %v3397 = vrot.slane %v3365, 4
        %v3398 = vsel %vm1141, %v3057, %v3397
        %v3399 = vrot.slane %v3366, 4
        %v3400 = vsel %vm1141, %v3060, %v3399
        %v3401 = vrot.slane %v3367, 4
        %v3402 = vsel %vm1141, %v3063, %v3401
        %v3403 = vrot.slane %v3368, 4
        %v3404 = vsel %vm1141, %v3066, %v3403
        %v3405 = vrot.slane %v3369, 4
        %v3406 = vsel %vm1141, %v3069, %v3405
        %v3407 = vrot.slane %v3370, 4
        %v3408 = vsel %vm1141, %v3072, %v3407
        %v3409 = vrot.slane %v3371, 4
        %v3410 = vsel %vm1141, %v3075, %v3409
        %v3411 = vrot.slane %v3372, 4
        %v3412 = vsel %vm1141, %v3078, %v3411
        %v3413 = vrot.slane %v3373, 4
        %v3414 = vsel %vm1141, %v3081, %v3413
        %v3415 = vrot.slane %v3374, 4
        %v3416 = vsel %vm1141, %v3084, %v3415
        %v3417 = vrot.slane %v3375, 4
        %v3418 = vsel %vm1141, %v3087, %v3417
        %v3419 = vrot.slane %v3376, 4
        %v3420 = vsel %vm1141, %v3090, %v3419
        %v3421 = vrot.slane %v3377, 4
        %v3422 = vsel %vm1141, %v3093, %v3421
        %v3423 = vrot.slane %v3378, 4
        %v3424 = vsel %vm1141, %v3096, %v3423
        %v3425 = vrot.slane %v3379, 4
        %v3426 = vsel %vm1141, %v3099, %v3425
        %v3427 = vrot.slane %v3380, 4
        %v3428 = vsel %vm1141, %v3102, %v3427
        %v3461 = vunpack.c.l.bf16 %v3398
        %v3462 = vunpack.c.h.bf16 %v3398
        %v3463 = vunpack.c.l.bf16 %v3397
        %v3464 = vunpack.c.l.bf16 %v3400
        %v3465 = vunpack.c.h.bf16 %v3400
        %v3466 = vunpack.c.l.bf16 %v3399
        %v3467 = vunpack.c.l.bf16 %v3402
        %v3468 = vunpack.c.h.bf16 %v3402
        %v3469 = vunpack.c.l.bf16 %v3401
        %v3470 = vunpack.c.l.bf16 %v3404
        %v3471 = vunpack.c.h.bf16 %v3404
        %v3472 = vunpack.c.l.bf16 %v3403
        %v3473 = vunpack.c.l.bf16 %v3406
        %v3474 = vunpack.c.h.bf16 %v3406
        %v3475 = vunpack.c.l.bf16 %v3405
        %v3476 = vunpack.c.l.bf16 %v3408
        %v3477 = vunpack.c.h.bf16 %v3408
        %v3478 = vunpack.c.l.bf16 %v3407
        %v3479 = vunpack.c.l.bf16 %v3410
        %v3480 = vunpack.c.h.bf16 %v3410
        %v3481 = vunpack.c.l.bf16 %v3409
        %v3482 = vunpack.c.l.bf16 %v3412
        %v3483 = vunpack.c.h.bf16 %v3412
        %v3484 = vunpack.c.l.bf16 %v3411
        %v3485 = vunpack.c.l.bf16 %v3414
        %v3486 = vunpack.c.h.bf16 %v3414
        %v3487 = vunpack.c.l.bf16 %v3413
        %v3488 = vunpack.c.l.bf16 %v3416
        %v3489 = vunpack.c.h.bf16 %v3416
        %v3490 = vunpack.c.l.bf16 %v3415
        %v3491 = vunpack.c.l.bf16 %v3418
        %v3492 = vunpack.c.h.bf16 %v3418
        %v3493 = vunpack.c.l.bf16 %v3417
        %v3494 = vunpack.c.l.bf16 %v3420
        %v3495 = vunpack.c.h.bf16 %v3420
        %v3496 = vunpack.c.l.bf16 %v3419
        %v3497 = vunpack.c.l.bf16 %v3422
        %v3498 = vunpack.c.h.bf16 %v3422
        %v3499 = vunpack.c.l.bf16 %v3421
        %v3500 = vunpack.c.l.bf16 %v3424
        %v3501 = vunpack.c.h.bf16 %v3424
        %v3502 = vunpack.c.l.bf16 %v3423
        %v3503 = vunpack.c.l.bf16 %v3426
        %v3504 = vunpack.c.h.bf16 %v3426
        %v3505 = vunpack.c.l.bf16 %v3425
        %v3506 = vunpack.c.l.bf16 %v3428
        %v3507 = vunpack.c.h.bf16 %v3428
        %v3508 = vunpack.c.l.bf16 %v3427
        %v3509 = vlaneseq
        %v3510 = vshrl.u32 %v3509, 7
        %v3511 = vsub.s32 0, %v3510
        %v3512 = vrot.slane %v905, %v3511
        %v3513 = vmul.f32 %v3461, %v3512
        %v3514 = vmul.f32 %v3462, %v3512
        %v3515 = vmul.f32 %v3463, %v3512
        %v3516 = vmul.f32 %v3464, %v3512
        %v3517 = vmul.f32 %v3465, %v3512
        %v3518 = vmul.f32 %v3466, %v3512
        %v3519 = vmul.f32 %v3467, %v3512
        %v3520 = vmul.f32 %v3468, %v3512
        %v3521 = vmul.f32 %v3469, %v3512
        %v3522 = vmul.f32 %v3470, %v3512
        %v3523 = vmul.f32 %v3471, %v3512
        %v3524 = vmul.f32 %v3472, %v3512
        %v3525 = vmul.f32 %v3473, %v3512
        %v3526 = vmul.f32 %v3474, %v3512
        %v3527 = vmul.f32 %v3475, %v3512
        %v3528 = vmul.f32 %v3476, %v3512
        %v3529 = vmul.f32 %v3477, %v3512
        %v3530 = vmul.f32 %v3478, %v3512
        %v3531 = vmul.f32 %v3479, %v3512
        %v3532 = vmul.f32 %v3480, %v3512
        %v3533 = vmul.f32 %v3481, %v3512
        %v3534 = vmul.f32 %v3482, %v3512
        %v3535 = vmul.f32 %v3483, %v3512
        %v3536 = vmul.f32 %v3484, %v3512
        %v3537 = vmul.f32 %v3485, %v3512
        %v3538 = vmul.f32 %v3486, %v3512
        %v3539 = vmul.f32 %v3487, %v3512
        %v3540 = vmul.f32 %v3488, %v3512
        %v3541 = vmul.f32 %v3489, %v3512
        %v3542 = vmul.f32 %v3490, %v3512
        %v3543 = vmul.f32 %v3491, %v3512
        %v3544 = vmul.f32 %v3492, %v3512
        %v3545 = vmul.f32 %v3493, %v3512
        %v3546 = vmul.f32 %v3494, %v3512
        %v3547 = vmul.f32 %v3495, %v3512
        %v3548 = vmul.f32 %v3496, %v3512
        %v3549 = vmul.f32 %v3497, %v3512
        %v3550 = vmul.f32 %v3498, %v3512
        %v3551 = vmul.f32 %v3499, %v3512
        %v3552 = vmul.f32 %v3500, %v3512
        %v3553 = vmul.f32 %v3501, %v3512
        %v3554 = vmul.f32 %v3502, %v3512
        %v3555 = vmul.f32 %v3503, %v3512
        %v3556 = vmul.f32 %v3504, %v3512
        %v3557 = vmul.f32 %v3505, %v3512
        %v3558 = vmul.f32 %v3506, %v3512
        %v3559 = vmul.f32 %v3507, %v3512
        %v3560 = vmul.f32 %v3508, %v3512
        %v3609 = vrot.slane %v3513, 2
        %v3610 = vrot.slane %v3514, 2
        %v3611 = vsel %vm1695, %v3609, %v3610
        %v3612 = vrot.slane %v3515, 2
        %v3613 = vsel %vm1695, %v3610, %v3612
        %v3614 = vrot.slane %v3516, 2
        %v3615 = vrot.slane %v3517, 2
        %v3616 = vsel %vm1695, %v3614, %v3615
        %v3617 = vrot.slane %v3518, 2
        %v3618 = vsel %vm1695, %v3615, %v3617
        %v3619 = vrot.slane %v3519, 2
        %v3620 = vrot.slane %v3520, 2
        %v3621 = vsel %vm1695, %v3619, %v3620
        %v3622 = vrot.slane %v3521, 2
        %v3623 = vsel %vm1695, %v3620, %v3622
        %v3624 = vrot.slane %v3522, 2
        %v3625 = vrot.slane %v3523, 2
        %v3626 = vsel %vm1695, %v3624, %v3625
        %v3627 = vrot.slane %v3524, 2
        %v3628 = vsel %vm1695, %v3625, %v3627
        %v3629 = vrot.slane %v3525, 2
        %v3630 = vrot.slane %v3526, 2
        %v3631 = vsel %vm1695, %v3629, %v3630
        %v3632 = vrot.slane %v3527, 2
        %v3633 = vsel %vm1695, %v3630, %v3632
        %v3634 = vrot.slane %v3528, 2
        %v3635 = vrot.slane %v3529, 2
        %v3636 = vsel %vm1695, %v3634, %v3635
        %v3637 = vrot.slane %v3530, 2
        %v3638 = vsel %vm1695, %v3635, %v3637
        %v3639 = vrot.slane %v3531, 2
        %v3640 = vrot.slane %v3532, 2
        %v3641 = vsel %vm1695, %v3639, %v3640
        %v3642 = vrot.slane %v3533, 2
        %v3643 = vsel %vm1695, %v3640, %v3642
        %v3644 = vrot.slane %v3534, 2
        %v3645 = vrot.slane %v3535, 2
        %v3646 = vsel %vm1695, %v3644, %v3645
        %v3647 = vrot.slane %v3536, 2
        %v3648 = vsel %vm1695, %v3645, %v3647
        %v3649 = vrot.slane %v3537, 2
        %v3650 = vrot.slane %v3538, 2
        %v3651 = vsel %vm1695, %v3649, %v3650
        %v3652 = vrot.slane %v3539, 2
        %v3653 = vsel %vm1695, %v3650, %v3652
        %v3654 = vrot.slane %v3540, 2
        %v3655 = vrot.slane %v3541, 2
        %v3656 = vsel %vm1695, %v3654, %v3655
        %v3657 = vrot.slane %v3542, 2
        %v3658 = vsel %vm1695, %v3655, %v3657
        %v3659 = vrot.slane %v3543, 2
        %v3660 = vrot.slane %v3544, 2
        %v3661 = vsel %vm1695, %v3659, %v3660
        %v3662 = vrot.slane %v3545, 2
        %v3663 = vsel %vm1695, %v3660, %v3662
        %v3664 = vrot.slane %v3546, 2
        %v3665 = vrot.slane %v3547, 2
        %v3666 = vsel %vm1695, %v3664, %v3665
        %v3667 = vrot.slane %v3548, 2
        %v3668 = vsel %vm1695, %v3665, %v3667
        %v3669 = vrot.slane %v3549, 2
        %v3670 = vrot.slane %v3550, 2
        %v3671 = vsel %vm1695, %v3669, %v3670
        %v3672 = vrot.slane %v3551, 2
        %v3673 = vsel %vm1695, %v3670, %v3672
        %v3674 = vrot.slane %v3552, 2
        %v3675 = vrot.slane %v3553, 2
        %v3676 = vsel %vm1695, %v3674, %v3675
        %v3677 = vrot.slane %v3554, 2
        %v3678 = vsel %vm1695, %v3675, %v3677
        %v3679 = vrot.slane %v3555, 2
        %v3680 = vrot.slane %v3556, 2
        %v3681 = vsel %vm1695, %v3679, %v3680
        %v3682 = vrot.slane %v3557, 2
        %v3683 = vsel %vm1695, %v3680, %v3682
        %v3684 = vrot.slane %v3558, 2
        %v3685 = vrot.slane %v3559, 2
        %v3686 = vsel %vm1695, %v3684, %v3685
        %v3687 = vrot.slane %v3560, 2
        %v3688 = vsel %vm1695, %v3685, %v3687
        %v3737 = vadd.f32 %v3317, %v3609
        %v3738 = vadd.f32 %v3318, %v3611
        %v3739 = vadd.f32 %v3319, %v3613
        %v3740 = vadd.f32 %v3320, %v3614
        %v3741 = vadd.f32 %v3321, %v3616
        %v3742 = vadd.f32 %v3322, %v3618
        %v3743 = vadd.f32 %v3323, %v3619
        %v3744 = vadd.f32 %v3324, %v3621
        %v3745 = vadd.f32 %v3325, %v3623
        %v3746 = vadd.f32 %v3326, %v3624
        %v3747 = vadd.f32 %v3327, %v3626
        %v3748 = vadd.f32 %v3328, %v3628
        %v3749 = vadd.f32 %v3329, %v3629
        %v3750 = vadd.f32 %v3330, %v3631
        %v3751 = vadd.f32 %v3331, %v3633
        %v3752 = vadd.f32 %v3332, %v3634
        %v3753 = vadd.f32 %v3333, %v3636
        %v3754 = vadd.f32 %v3334, %v3638
        %v3755 = vadd.f32 %v3335, %v3639
        %v3756 = vadd.f32 %v3336, %v3641
        %v3757 = vadd.f32 %v3337, %v3643
        %v3758 = vadd.f32 %v3338, %v3644
        %v3759 = vadd.f32 %v3339, %v3646
        %v3760 = vadd.f32 %v3340, %v3648
        %v3761 = vadd.f32 %v3341, %v3649
        %v3762 = vadd.f32 %v3342, %v3651
        %v3763 = vadd.f32 %v3343, %v3653
        %v3764 = vadd.f32 %v3344, %v3654
        %v3765 = vadd.f32 %v3345, %v3656
        %v3766 = vadd.f32 %v3346, %v3658
        %v3767 = vadd.f32 %v3347, %v3659
        %v3768 = vadd.f32 %v3348, %v3661
        %v3769 = vadd.f32 %v3349, %v3663
        %v3770 = vadd.f32 %v3350, %v3664
        %v3771 = vadd.f32 %v3351, %v3666
        %v3772 = vadd.f32 %v3352, %v3668
        %v3773 = vadd.f32 %v3353, %v3669
        %v3774 = vadd.f32 %v3354, %v3671
        %v3775 = vadd.f32 %v3355, %v3673
        %v3776 = vadd.f32 %v3356, %v3674
        %v3777 = vadd.f32 %v3357, %v3676
        %v3778 = vadd.f32 %v3358, %v3678
        %v3779 = vadd.f32 %v3359, %v3679
        %v3780 = vadd.f32 %v3360, %v3681
        %v3781 = vadd.f32 %v3361, %v3683
        %v3782 = vadd.f32 %v3362, %v3684
        %v3783 = vadd.f32 %v3363, %v3686
        %v3784 = vadd.f32 %v3364, %v3688
        %v3785 = vmax.f32 %v3737, 0.0
        %v3786 = vmax.f32 %v3738, 0.0
        %v3787 = vmax.f32 %v3739, 0.0
        %v3788 = vmax.f32 %v3740, 0.0
        %v3789 = vmax.f32 %v3741, 0.0
        %v3790 = vmax.f32 %v3742, 0.0
        %v3791 = vmax.f32 %v3743, 0.0
        %v3792 = vmax.f32 %v3744, 0.0
        %v3793 = vmax.f32 %v3745, 0.0
        %v3794 = vmax.f32 %v3746, 0.0
        %v3795 = vmax.f32 %v3747, 0.0
        %v3796 = vmax.f32 %v3748, 0.0
        %v3797 = vmax.f32 %v3749, 0.0
        %v3798 = vmax.f32 %v3750, 0.0
        %v3799 = vmax.f32 %v3751, 0.0
        %v3800 = vmax.f32 %v3752, 0.0
        %v3801 = vmax.f32 %v3753, 0.0
        %v3802 = vmax.f32 %v3754, 0.0
        %v3803 = vmax.f32 %v3755, 0.0
        %v3804 = vmax.f32 %v3756, 0.0
        %v3805 = vmax.f32 %v3757, 0.0
        %v3806 = vmax.f32 %v3758, 0.0
        %v3807 = vmax.f32 %v3759, 0.0
        %v3808 = vmax.f32 %v3760, 0.0
        %v3809 = vmax.f32 %v3761, 0.0
        %v3810 = vmax.f32 %v3762, 0.0
        %v3811 = vmax.f32 %v3763, 0.0
        %v3812 = vmax.f32 %v3764, 0.0
        %v3813 = vmax.f32 %v3765, 0.0
        %v3814 = vmax.f32 %v3766, 0.0
        %v3815 = vmax.f32 %v3767, 0.0
        %v3816 = vmax.f32 %v3768, 0.0
        %v3817 = vmax.f32 %v3769, 0.0
        %v3818 = vmax.f32 %v3770, 0.0
        %v3819 = vmax.f32 %v3771, 0.0
        %v3820 = vmax.f32 %v3772, 0.0
        %v3821 = vmax.f32 %v3773, 0.0
        %v3822 = vmax.f32 %v3774, 0.0
        %v3823 = vmax.f32 %v3775, 0.0
        %v3824 = vmax.f32 %v3776, 0.0
        %v3825 = vmax.f32 %v3777, 0.0
        %v3826 = vmax.f32 %v3778, 0.0
        %v3827 = vmax.f32 %v3779, 0.0
        %v3828 = vmax.f32 %v3780, 0.0
        %v3829 = vmax.f32 %v3781, 0.0
        %v3830 = vmax.f32 %v3782, 0.0
        %v3831 = vmax.f32 %v3783, 0.0
        %v3832 = vmax.f32 %v3784, 0.0
        %v3833 = vmin.f32 %v3785, 6.0
        %v3834 = vmin.f32 %v3786, 6.0
        %v3835 = vmin.f32 %v3787, 6.0
        %v3836 = vmin.f32 %v3788, 6.0
        %v3837 = vmin.f32 %v3789, 6.0
        %v3838 = vmin.f32 %v3790, 6.0
        %v3839 = vmin.f32 %v3791, 6.0
        %v3840 = vmin.f32 %v3792, 6.0
        %v3841 = vmin.f32 %v3793, 6.0
        %v3842 = vmin.f32 %v3794, 6.0
        %v3843 = vmin.f32 %v3795, 6.0
        %v3844 = vmin.f32 %v3796, 6.0
        %v3845 = vmin.f32 %v3797, 6.0
        %v3846 = vmin.f32 %v3798, 6.0
        %v3847 = vmin.f32 %v3799, 6.0
        %v3848 = vmin.f32 %v3800, 6.0
        %v3849 = vmin.f32 %v3801, 6.0
        %v3850 = vmin.f32 %v3802, 6.0
        %v3851 = vmin.f32 %v3803, 6.0
        %v3852 = vmin.f32 %v3804, 6.0
        %v3853 = vmin.f32 %v3805, 6.0
        %v3854 = vmin.f32 %v3806, 6.0
        %v3855 = vmin.f32 %v3807, 6.0
        %v3856 = vmin.f32 %v3808, 6.0
        %v3857 = vmin.f32 %v3809, 6.0
        %v3858 = vmin.f32 %v3810, 6.0
        %v3859 = vmin.f32 %v3811, 6.0
        %v3860 = vmin.f32 %v3812, 6.0
        %v3861 = vmin.f32 %v3813, 6.0
        %v3862 = vmin.f32 %v3814, 6.0
        %v3863 = vmin.f32 %v3815, 6.0
        %v3864 = vmin.f32 %v3816, 6.0
        %v3865 = vmin.f32 %v3817, 6.0
        %v3866 = vmin.f32 %v3818, 6.0
        %v3867 = vmin.f32 %v3819, 6.0
        %v3868 = vmin.f32 %v3820, 6.0
        %v3869 = vmin.f32 %v3821, 6.0
        %v3870 = vmin.f32 %v3822, 6.0
        %v3871 = vmin.f32 %v3823, 6.0
        %v3872 = vmin.f32 %v3824, 6.0
        %v3873 = vmin.f32 %v3825, 6.0
        %v3874 = vmin.f32 %v3826, 6.0
        %v3875 = vmin.f32 %v3827, 6.0
        %v3876 = vmin.f32 %v3828, 6.0
        %v3877 = vmin.f32 %v3829, 6.0
        %v3878 = vmin.f32 %v3830, 6.0
        %v3879 = vmin.f32 %v3831, 6.0
        %v3880 = vmin.f32 %v3832, 6.0
        %vm3929 = vcmask 1040384
        %v3930 = vrot.slane %v3833, 7
        %v3931 = vrot.slane %v3834, 7
        %v3932 = vsel %vm3929, %v3930, %v3931
        %v3933 = vrot.slane %v3835, 7
        %v3934 = vsel %vm3929, %v3931, %v3933
        %v3935 = vrot.slane %v3836, 7
        %v3936 = vrot.slane %v3837, 7
        %v3937 = vsel %vm3929, %v3935, %v3936
        %v3938 = vrot.slane %v3838, 7
        %v3939 = vsel %vm3929, %v3936, %v3938
        %v3940 = vrot.slane %v3839, 7
        %v3941 = vrot.slane %v3840, 7
        %v3942 = vsel %vm3929, %v3940, %v3941
        %v3943 = vrot.slane %v3841, 7
        %v3944 = vsel %vm3929, %v3941, %v3943
        %v3945 = vrot.slane %v3842, 7
        %v3946 = vrot.slane %v3843, 7
        %v3947 = vsel %vm3929, %v3945, %v3946
        %v3948 = vrot.slane %v3844, 7
        %v3949 = vsel %vm3929, %v3946, %v3948
        %v3950 = vrot.slane %v3845, 7
        %v3951 = vrot.slane %v3846, 7
        %v3952 = vsel %vm3929, %v3950, %v3951
        %v3953 = vrot.slane %v3847, 7
        %v3954 = vsel %vm3929, %v3951, %v3953
        %v3955 = vrot.slane %v3848, 7
        %v3956 = vrot.slane %v3849, 7
        %v3957 = vsel %vm3929, %v3955, %v3956
        %v3958 = vrot.slane %v3850, 7
        %v3959 = vsel %vm3929, %v3956, %v3958
        %v3960 = vrot.slane %v3851, 7
        %v3961 = vrot.slane %v3852, 7
        %v3962 = vsel %vm3929, %v3960, %v3961
        %v3963 = vrot.slane %v3853, 7
        %v3964 = vsel %vm3929, %v3961, %v3963
        %v3965 = vrot.slane %v3854, 7
        %v3966 = vrot.slane %v3855, 7
        %v3967 = vsel %vm3929, %v3965, %v3966
        %v3968 = vrot.slane %v3856, 7
        %v3969 = vsel %vm3929, %v3966, %v3968
        %v3970 = vrot.slane %v3857, 7
        %v3971 = vrot.slane %v3858, 7
        %v3972 = vsel %vm3929, %v3970, %v3971
        %v3973 = vrot.slane %v3859, 7
        %v3974 = vsel %vm3929, %v3971, %v3973
        %v3975 = vrot.slane %v3860, 7
        %v3976 = vrot.slane %v3861, 7
        %v3977 = vsel %vm3929, %v3975, %v3976
        %v3978 = vrot.slane %v3862, 7
        %v3979 = vsel %vm3929, %v3976, %v3978
        %v3980 = vrot.slane %v3863, 7
        %v3981 = vrot.slane %v3864, 7
        %v3982 = vsel %vm3929, %v3980, %v3981
        %v3983 = vrot.slane %v3865, 7
        %v3984 = vsel %vm3929, %v3981, %v3983
        %v3985 = vrot.slane %v3866, 7
        %v3986 = vrot.slane %v3867, 7
        %v3987 = vsel %vm3929, %v3985, %v3986
        %v3988 = vrot.slane %v3868, 7
        %v3989 = vsel %vm3929, %v3986, %v3988
        %v3990 = vrot.slane %v3869, 7
        %v3991 = vrot.slane %v3870, 7
        %v3992 = vsel %vm3929, %v3990, %v3991
        %v3993 = vrot.slane %v3871, 7
        %v3994 = vsel %vm3929, %v3991, %v3993
        %v3995 = vrot.slane %v3872, 7
        %v3996 = vrot.slane %v3873, 7
        %v3997 = vsel %vm3929, %v3995, %v3996
        %v3998 = vrot.slane %v3874, 7
        %v3999 = vsel %vm3929, %v3996, %v3998
        %v4000 = vrot.slane %v3875, 7
        %v4001 = vrot.slane %v3876, 7
        %v4002 = vsel %vm3929, %v4000, %v4001
        %v4003 = vrot.slane %v3877, 7
        %v4004 = vsel %vm3929, %v4001, %v4003
        %v4005 = vrot.slane %v3878, 7
        %v4006 = vrot.slane %v3879, 7
        %v4007 = vsel %vm3929, %v4005, %v4006
        %v4008 = vrot.slane %v3880, 7
        %v4009 = vsel %vm3929, %v4006, %v4008
        %v4042 = vpack.c.bf16 %v3934, %v3932
        %v4043 = vpack.c.bf16 %v3939, %v3937
        %v4044 = vpack.c.bf16 %v3944, %v3942
        %v4045 = vpack.c.bf16 %v3949, %v3947
        %v4046 = vpack.c.bf16 %v3954, %v3952
        %v4047 = vpack.c.bf16 %v3959, %v3957
        %v4048 = vpack.c.bf16 %v3964, %v3962
        %v4049 = vpack.c.bf16 %v3969, %v3967
        %v4050 = vpack.c.bf16 %v3974, %v3972
        %v4051 = vpack.c.bf16 %v3979, %v3977
        %v4052 = vpack.c.bf16 %v3984, %v3982
        %v4053 = vpack.c.bf16 %v3989, %v3987
        %v4054 = vpack.c.bf16 %v3994, %v3992
        %v4055 = vpack.c.bf16 %v3999, %v3997
        %v4056 = vpack.c.bf16 %v4004, %v4002
        %v4057 = vpack.c.bf16 %v4009, %v4007
        %v4058 = vld [vmem:[#allocation9] sm:$0xf]
        %v4059 = vld [vmem:[#allocation9 + $0x4] sm:$0xf]
        %v4060 = vld [vmem:[#allocation9 + $0x8] sm:$0xf]
        %v4061 = vld [vmem:[#allocation9 + $0xc] sm:$0xf]
        %v4062 = vld [vmem:[#allocation9 + $0x10] sm:$0xf]
        %v4063 = vld [vmem:[#allocation9 + $0x14] sm:$0xf]
        %v4064 = vld [vmem:[#allocation9 + $0x18] sm:$0xf]
        %v4065 = vld [vmem:[#allocation9 + $0x1c] sm:$0xf]
        %v4066 = vld [vmem:[#allocation9 + $0x20] sm:$0xf]
        %v4067 = vld [vmem:[#allocation9 + $0x24] sm:$0xf]
        %v4068 = vld [vmem:[#allocation9 + $0x28] sm:$0xf]
        %v4069 = vld [vmem:[#allocation9 + $0x2c] sm:$0xf]
        %v4070 = vld [vmem:[#allocation9 + $0x30] sm:$0xf]
        %v4071 = vld [vmem:[#allocation9 + $0x34] sm:$0xf]
        %v4072 = vld [vmem:[#allocation9 + $0x38] sm:$0xf]
        %v4073 = vld [vmem:[#allocation9 + $0x3c] sm:$0xf]
        %v4074 = vld [vmem:[%s6] sm:$0x1]
        %v4076 = vlaneseq
        %v4077 = vshrl.u32 %v4076, 7
        %v4078 = vsub.s32 0, %v4077
        %v4079 = vrot.slane %v4074, %v4078
        %v4097 = vunpack.c.l.b16 %v4058
        %v4098 = vunpack.c.l.b16 %v4059
        %v4099 = vunpack.c.l.b16 %v4060
        %v4100 = vunpack.c.l.b16 %v4061
        %v4101 = vunpack.c.l.b16 %v4062
        %v4102 = vunpack.c.l.b16 %v4063
        %v4103 = vunpack.c.l.b16 %v4064
        %v4104 = vunpack.c.l.b16 %v4065
        %v4105 = vunpack.c.l.b16 %v4066
        %v4106 = vunpack.c.l.b16 %v4067
        %v4107 = vunpack.c.l.b16 %v4068
        %v4108 = vunpack.c.l.b16 %v4069
        %v4109 = vunpack.c.l.b16 %v4070
        %v4110 = vunpack.c.l.b16 %v4071
        %v4111 = vunpack.c.l.b16 %v4072
        %v4112 = vunpack.c.l.b16 %v4073
        %v4113 = vpack.c.b16 %v4098, %v4097
        %v4114 = vpack.c.b16 %v4100, %v4099
        %v4115 = vpack.c.b16 %v4102, %v4101
        %v4116 = vpack.c.b16 %v4104, %v4103
        %v4117 = vpack.c.b16 %v4106, %v4105
        %v4118 = vpack.c.b16 %v4108, %v4107
        %v4119 = vpack.c.b16 %v4110, %v4109
        %v4120 = vpack.c.b16 %v4112, %v4111
        %4129 = vmatprep.subr.bf16.mxu0 0
        %4130 = vmatpush1.bf16.msra.mxu0 %v4113
        %4131 = vmatprep.subr.bf16.mxu0 0
        %4132 = vmatpush1.bf16.msra.mxu0 %v4114
        %4133 = vmatprep.subr.bf16.mxu0 0
        %4134 = vmatpush1.bf16.msra.mxu0 %v4115
        %4135 = vmatprep.subr.bf16.mxu0 0
        %4136 = vmatpush1.bf16.msra.mxu0 %v4116
        %4137 = vmatprep.subr.bf16.mxu0 0
        %4138 = vmatpush1.bf16.msra.mxu0 %v4117
        %4139 = vmatprep.subr.bf16.mxu0 0
        %4140 = vmatpush1.bf16.msra.mxu0 %v4118
        %4141 = vmatprep.subr.bf16.mxu0 0
        %4142 = vmatpush1.bf16.msra.mxu0 %v4119
        %4143 = vmatprep.subr.bf16.mxu0 0
        %4144 = vmatpush1.bf16.msra.mxu0 %v4120
        %4145 = vmatprep.subr.bf16.mxu0 0
        %4146 = vmatpush1.bf16.msra.mxu0 0
        %4147 = vmatprep.subr.bf16.mxu0 0
        %4148 = vmatpush1.bf16.msra.mxu0 0
        %4149 = vmatprep.subr.bf16.mxu0 0
        %4150 = vmatpush1.bf16.msra.mxu0 0
        %4151 = vmatprep.subr.bf16.mxu0 0
        %4152 = vmatpush1.bf16.msra.mxu0 0
        %4153 = vmatprep.subr.bf16.mxu0 0
        %4154 = vmatpush1.bf16.msra.mxu0 0
        %4155 = vmatprep.subr.bf16.mxu0 0
        %4156 = vmatpush1.bf16.msra.mxu0 0
        %4157 = vmatprep.subr.bf16.mxu0 0
        %4158 = vmatpush1.bf16.msra.mxu0 0
        %4159 = vmatprep.subr.bf16.mxu0 0
        %4160 = vmatpush1.bf16.msra.mxu0 0
        %4161 = vmatprep.mubr.bf16.mxu0 0
        %4162 = vmatmul.mubr.bf16.gmra.mrb[0].mxu0 %v4042
        %v4163 = vpop.f32.mrb[0].mxu0
        %v4164 = vadd.f32 %v4079, %v4163
        %v4165 = vpop.f32.mrb[0].mxu0
        %v4166 = vpop.f32.mrb[0].mxu0
        %v4167 = vadd.f32 %v4079, %v4166
        %v4168 = vpop.f32.mrb[0].mxu0
        %4169 = vmatprep.mubr.bf16.mxu0 0
        %4170 = vmatmul.mubr.bf16.gmra.mrb[0].mxu0 %v4043
        %v4171 = vpop.f32.mrb[0].mxu0
        %v4172 = vadd.f32 %v4079, %v4171
        %v4173 = vpop.f32.mrb[0].mxu0
        %v4174 = vpop.f32.mrb[0].mxu0
        %v4175 = vadd.f32 %v4079, %v4174
        %v4176 = vpop.f32.mrb[0].mxu0
        %4177 = vmatprep.mubr.bf16.mxu0 0
        %4178 = vmatmul.mubr.bf16.gmra.mrb[0].mxu0 %v4044
        %v4179 = vpop.f32.mrb[0].mxu0
        %v4180 = vadd.f32 %v4079, %v4179
        %v4181 = vpop.f32.mrb[0].mxu0
        %v4182 = vpop.f32.mrb[0].mxu0
        %v4183 = vadd.f32 %v4079, %v4182
        %v4184 = vpop.f32.mrb[0].mxu0
        %4185 = vmatprep.mubr.bf16.mxu0 0
        %4186 = vmatmul.mubr.bf16.gmra.mrb[0].mxu0 %v4045
        %v4187 = vpop.f32.mrb[0].mxu0
        %v4188 = vadd.f32 %v4079, %v4187
        %v4189 = vpop.f32.mrb[0].mxu0
        %v4190 = vpop.f32.mrb[0].mxu0
        %v4191 = vadd.f32 %v4079, %v4190
        %v4192 = vpop.f32.mrb[0].mxu0
        %4193 = vmatprep.mubr.bf16.mxu0 0
        %4194 = vmatmul.mubr.bf16.gmra.mrb[0].mxu0 %v4046
        %v4195 = vpop.f32.mrb[0].mxu0
        %v4196 = vadd.f32 %v4079, %v4195
        %v4197 = vpop.f32.mrb[0].mxu0
        %v4198 = vpop.f32.mrb[0].mxu0
        %v4199 = vadd.f32 %v4079, %v4198
        %v4200 = vpop.f32.mrb[0].mxu0
        %4201 = vmatprep.mubr.bf16.mxu0 0
        %4202 = vmatmul.mubr.bf16.gmra.mrb[0].mxu0 %v4047
        %v4203 = vpop.f32.mrb[0].mxu0
        %v4204 = vadd.f32 %v4079, %v4203
        %v4205 = vpop.f32.mrb[0].mxu0
        %v4206 = vpop.f32.mrb[0].mxu0
        %v4207 = vadd.f32 %v4079, %v4206
        %v4208 = vpop.f32.mrb[0].mxu0
        %4209 = vmatprep.mubr.bf16.mxu0 0
        %4210 = vmatmul.mubr.bf16.gmra.mrb[0].mxu0 %v4048
        %v4211 = vpop.f32.mrb[0].mxu0
        %v4212 = vadd.f32 %v4079, %v4211
        %v4213 = vpop.f32.mrb[0].mxu0
        %v4214 = vpop.f32.mrb[0].mxu0
        %v4215 = vadd.f32 %v4079, %v4214
        %v4216 = vpop.f32.mrb[0].mxu0
        %4217 = vmatprep.mubr.bf16.mxu0 0
        %4218 = vmatmul.mubr.bf16.gmra.mrb[0].mxu0 %v4049
        %v4219 = vpop.f32.mrb[0].mxu0
        %v4220 = vadd.f32 %v4079, %v4219
        %v4221 = vpop.f32.mrb[0].mxu0
        %v4222 = vpop.f32.mrb[0].mxu0
        %v4223 = vadd.f32 %v4079, %v4222
        %v4224 = vpop.f32.mrb[0].mxu0
        %4225 = vmatprep.mubr.bf16.mxu0 0
        %4226 = vmatmul.mubr.bf16.gmra.mrb[0].mxu0 %v4050
        %v4227 = vpop.f32.mrb[0].mxu0
        %v4228 = vadd.f32 %v4079, %v4227
        %v4229 = vpop.f32.mrb[0].mxu0
        %v4230 = vpop.f32.mrb[0].mxu0
        %v4231 = vadd.f32 %v4079, %v4230
        %v4232 = vpop.f32.mrb[0].mxu0
        %4233 = vmatprep.mubr.bf16.mxu0 0
        %4234 = vmatmul.mubr.bf16.gmra.mrb[0].mxu0 %v4051
        %v4235 = vpop.f32.mrb[0].mxu0
        %v4236 = vadd.f32 %v4079, %v4235
        %v4237 = vpop.f32.mrb[0].mxu0
        %v4238 = vpop.f32.mrb[0].mxu0
        %v4239 = vadd.f32 %v4079, %v4238
        %v4240 = vpop.f32.mrb[0].mxu0
        %4241 = vmatprep.mubr.bf16.mxu0 0
        %4242 = vmatmul.mubr.bf16.gmra.mrb[0].mxu0 %v4052
        %v4243 = vpop.f32.mrb[0].mxu0
        %v4244 = vadd.f32 %v4079, %v4243
        %v4245 = vpop.f32.mrb[0].mxu0
        %v4246 = vpop.f32.mrb[0].mxu0
        %v4247 = vadd.f32 %v4079, %v4246
        %v4248 = vpop.f32.mrb[0].mxu0
        %4249 = vmatprep.mubr.bf16.mxu0 0
        %4250 = vmatmul.mubr.bf16.gmra.mrb[0].mxu0 %v4053
        %v4251 = vpop.f32.mrb[0].mxu0
        %v4252 = vadd.f32 %v4079, %v4251
        %v4253 = vpop.f32.mrb[0].mxu0
        %v4254 = vpop.f32.mrb[0].mxu0
        %v4255 = vadd.f32 %v4079, %v4254
        %v4256 = vpop.f32.mrb[0].mxu0
        %4257 = vmatprep.mubr.bf16.mxu0 0
        %4258 = vmatmul.mubr.bf16.gmra.mrb[0].mxu0 %v4054
        %v4259 = vpop.f32.mrb[0].mxu0
        %v4260 = vadd.f32 %v4079, %v4259
        %v4261 = vpop.f32.mrb[0].mxu0
        %v4262 = vpop.f32.mrb[0].mxu0
        %v4263 = vadd.f32 %v4079, %v4262
        %v4264 = vpop.f32.mrb[0].mxu0
        %4265 = vmatprep.mubr.bf16.mxu0 0
        %4266 = vmatmul.mubr.bf16.gmra.mrb[0].mxu0 %v4055
        %v4267 = vpop.f32.mrb[0].mxu0
        %v4268 = vadd.f32 %v4079, %v4267
        %v4269 = vpop.f32.mrb[0].mxu0
        %v4270 = vpop.f32.mrb[0].mxu0
        %v4271 = vadd.f32 %v4079, %v4270
        %v4272 = vpop.f32.mrb[0].mxu0
        %4273 = vmatprep.mubr.bf16.mxu0 0
        %4274 = vmatmul.mubr.bf16.gmra.mrb[0].mxu0 %v4056
        %v4275 = vpop.f32.mrb[0].mxu0
        %v4276 = vadd.f32 %v4079, %v4275
        %v4277 = vpop.f32.mrb[0].mxu0
        %v4278 = vpop.f32.mrb[0].mxu0
        %v4279 = vadd.f32 %v4079, %v4278
        %v4280 = vpop.f32.mrb[0].mxu0
        %4281 = vmatprep.mubr.bf16.mxu0 0
        %4282 = vmatmul.mubr.bf16.gmra.mrb[0].mxu0 %v4057
        %v4283 = vpop.f32.mrb[0].mxu0
        %v4284 = vadd.f32 %v4079, %v4283
        %v4285 = vpop.f32.mrb[0].mxu0
        %v4286 = vpop.f32.mrb[0].mxu0
        %v4287 = vadd.f32 %v4079, %v4286
        %v4288 = vpop.f32.mrb[0].mxu0
        %4289 = vdwg.mxu0
        %v4290 = vunpack.c.l.bf16 %v383
        %v4291 = vunpack.c.l.bf16 %v384
        %v4292 = vunpack.c.l.bf16 %v385
        %v4293 = vunpack.c.l.bf16 %v386
        %v4294 = vunpack.c.l.bf16 %v387
        %v4295 = vunpack.c.l.bf16 %v388
        %v4296 = vunpack.c.l.bf16 %v389
        %v4297 = vunpack.c.l.bf16 %v390
        %v4298 = vunpack.c.l.bf16 %v391
        %v4299 = vunpack.c.l.bf16 %v392
        %v4300 = vunpack.c.l.bf16 %v393
        %v4301 = vunpack.c.l.bf16 %v394
        %v4302 = vunpack.c.l.bf16 %v395
        %v4303 = vunpack.c.l.bf16 %v396
        %v4304 = vunpack.c.l.bf16 %v397
        %v4305 = vunpack.c.l.bf16 %v398
        %v4306 = vunpack.c.l.bf16 %v399
        %v4307 = vunpack.c.l.bf16 %v400
        %v4308 = vunpack.c.l.bf16 %v401
        %v4309 = vunpack.c.l.bf16 %v402
        %v4310 = vunpack.c.l.bf16 %v403
        %v4311 = vunpack.c.l.bf16 %v404
        %v4312 = vunpack.c.l.bf16 %v405
        %v4313 = vunpack.c.l.bf16 %v406
        %v4314 = vunpack.c.l.bf16 %v407
        %v4315 = vunpack.c.l.bf16 %v408
        %v4316 = vunpack.c.l.bf16 %v409
        %v4317 = vunpack.c.l.bf16 %v410
        %v4318 = vunpack.c.l.bf16 %v411
        %v4319 = vunpack.c.l.bf16 %v412
        %v4320 = vunpack.c.l.bf16 %v413
        %v4321 = vunpack.c.l.bf16 %v414
        %v4322 = vadd.f32 %v4164, %v4290
        %v4323 = vadd.f32 %v4167, %v4291
        %v4324 = vadd.f32 %v4172, %v4292
        %v4325 = vadd.f32 %v4175, %v4293
        %v4326 = vadd.f32 %v4180, %v4294
        %v4327 = vadd.f32 %v4183, %v4295
        %v4328 = vadd.f32 %v4188, %v4296
        %v4329 = vadd.f32 %v4191, %v4297
        %v4330 = vadd.f32 %v4196, %v4298
        %v4331 = vadd.f32 %v4199, %v4299
        %v4332 = vadd.f32 %v4204, %v4300
        %v4333 = vadd.f32 %v4207, %v4301
        %v4334 = vadd.f32 %v4212, %v4302
        %v4335 = vadd.f32 %v4215, %v4303
        %v4336 = vadd.f32 %v4220, %v4304
        %v4337 = vadd.f32 %v4223, %v4305
        %v4338 = vadd.f32 %v4228, %v4306
        %v4339 = vadd.f32 %v4231, %v4307
        %v4340 = vadd.f32 %v4236, %v4308
        %v4341 = vadd.f32 %v4239, %v4309
        %v4342 = vadd.f32 %v4244, %v4310
        %v4343 = vadd.f32 %v4247, %v4311
        %v4344 = vadd.f32 %v4252, %v4312
        %v4345 = vadd.f32 %v4255, %v4313
        %v4346 = vadd.f32 %v4260, %v4314
        %v4347 = vadd.f32 %v4263, %v4315
        %v4348 = vadd.f32 %v4268, %v4316
        %v4349 = vadd.f32 %v4271, %v4317
        %v4350 = vadd.f32 %v4276, %v4318
        %v4351 = vadd.f32 %v4279, %v4319
        %v4352 = vadd.f32 %v4284, %v4320
        %v4353 = vadd.f32 %v4287, %v4321
        %4354 = vst [vmem:[%s340] sm:$0xff] %v4322
        %4355 = vst [vmem:[%s340 + $0x8] sm:$0xff] %v4323
        %4356 = vst [vmem:[%s340 + $0x10] sm:$0xff] %v4324
        %4357 = vst [vmem:[%s340 + $0x18] sm:$0xff] %v4325
        %4358 = vst [vmem:[%s340 + $0x20] sm:$0xff] %v4326
        %4359 = vst [vmem:[%s340 + $0x28] sm:$0xff] %v4327
        %4360 = vst [vmem:[%s340 + $0x30] sm:$0xff] %v4328
        %4361 = vst [vmem:[%s340 + $0x38] sm:$0xff] %v4329
        %4362 = vst [vmem:[%s340 + $0x40] sm:$0xff] %v4330
        %4363 = vst [vmem:[%s340 + $0x48] sm:$0xff] %v4331
        %4364 = vst [vmem:[%s340 + $0x50] sm:$0xff] %v4332
        %4365 = vst [vmem:[%s340 + $0x58] sm:$0xff] %v4333
        %4366 = vst [vmem:[%s340 + $0x60] sm:$0xff] %v4334
        %4367 = vst [vmem:[%s340 + $0x68] sm:$0xff] %v4335
        %4368 = vst [vmem:[%s340 + $0x70] sm:$0xff] %v4336
        %4369 = vst [vmem:[%s340 + $0x78] sm:$0xff] %v4337
        %4370 = vst [vmem:[%s340 + $0x80] sm:$0xff] %v4338
        %4371 = vst [vmem:[%s340 + $0x88] sm:$0xff] %v4339
        %4372 = vst [vmem:[%s340 + $0x90] sm:$0xff] %v4340
        %4373 = vst [vmem:[%s340 + $0x98] sm:$0xff] %v4341
        %4374 = vst [vmem:[%s340 + $0xa0] sm:$0xff] %v4342
        %4375 = vst [vmem:[%s340 + $0xa8] sm:$0xff] %v4343
        %4376 = vst [vmem:[%s340 + $0xb0] sm:$0xff] %v4344
        %4377 = vst [vmem:[%s340 + $0xb8] sm:$0xff] %v4345
        %4378 = vst [vmem:[%s340 + $0xc0] sm:$0xff] %v4346
        %4379 = vst [vmem:[%s340 + $0xc8] sm:$0xff] %v4347
        %4380 = vst [vmem:[%s340 + $0xd0] sm:$0xff] %v4348
        %4381 = vst [vmem:[%s340 + $0xd8] sm:$0xff] %v4349
        %4382 = vst [vmem:[%s340 + $0xe0] sm:$0xff] %v4350
        %4383 = vst [vmem:[%s340 + $0xe8] sm:$0xff] %v4351
        %4384 = vst [vmem:[%s340 + $0xf0] sm:$0xff] %v4352
        %4385 = vst [vmem:[%s340 + $0xf8] sm:$0xff] %v4353
        %s4386 = sand.u32 %s186, 1
        %s4387 = scalar_lea.sflag [#allocation5], %s4386
        %s4388 = sand.u32 %s186, 1
        %s4389 = smul.addr %s4388, 256
        %s4390 = scalar_lea.vmem [#allocation11], %s4389
        // Predicated region
        $region65: #{tpu_custom_call.1} parent=47 // pred_check
          %p4391 = pneg %p196
        $region66: #{tpu_custom_call.1} parent=47 // pred_check_branch
          %4393 = sbr.rel (%p4391) target = $region68
        $region67: #{tpu_custom_call.1} parent=47 // pred_region
          %s4395 = ssub.s32 4096, 4096
          %4396 = vsyncadd %s4387, %s4395
          %s4397 = smul.addr %s26, 32
          %s4398 = smul.addr %s4397, 128
          %s4399 = scalar_lea.hbm %s7, %s4398
          %s4400 = sshll.u32 %s4390, 4
          %s4401 = int_to_ptr.vmem [resolvable:$true] %s4400
          %4406 = dma.vmem_to_hbm [thread:$0]  %s4401, 4096, %s4399, %s4387, 128, 128, 8
        $region68: #{tpu_custom_call.1} parent=47 // pred_fallthru
          _
      $region48: #{tpu_custom_call.1} parent=5 // pred_fallthru
        _
      %p4407 = scmp.le.s32.totalorder 2, %s21
      // Predicated region
      $region69: #{tpu_custom_call.1} parent=5 // pred_check
        %p4408 = pneg %p4407
      $region70: #{tpu_custom_call.1} parent=5 // pred_check_branch
        %4410 = sbr.rel (%p4408) target = $region72
      $region71: #{tpu_custom_call.1} parent=5 // pred_region
        %s4411 = ssub.s32 %s21, 2
        // Predicated region
        $region73: #{tpu_custom_call.1} parent=71 // pred_check
          %p4412 = pneg %p202
        $region74: #{tpu_custom_call.1} parent=71 // pred_check_branch
          %4414 = sbr.rel (%p4412) target = $region76
        $region75: #{tpu_custom_call.1} parent=71 // pred_region
          %s4415 = sand.u32 %s187, 1
          %s4416 = scalar_lea.sflag [#allocation5], %s4415
          %s4417 = sand.u32 %s187, 1
          %s4418 = smul.addr %s4417, 256
          %s4419 = scalar_lea.vmem [#allocation11], %s4418
          %4420 = dma.done %s4416, 4096
        $region76: #{tpu_custom_call.1} parent=71 // pred_fallthru
          _
      $region72: #{tpu_custom_call.1} parent=5 // pred_fallthru
        _
    $region6: #{tpu_custom_call.1} parent=1 // loop_footer
      %s25 = sadd.s32 1, %s21
    $region7: #{tpu_custom_call.1} parent=1 // loop_footer_branch
      %20 = sbr.rel target = $region3
    $region8: #{tpu_custom_call.1} parent=1 // loop_exit
      _
    %4421 = vsyncpa [#allocation4], 1
    %s4422 = scalar_lea.sflag [#allocation4], 1
    %4423 = vsyncpa %s4422, 1
    %4424 = vsyncpa [#allocation7], 1
    %4425 = vsyncpa [#allocation10], 1
    %4426 = vsyncpa [#allocation5], 1
    %s4427 = scalar_lea.sflag [#allocation5], 1
    %4428 = vsyncpa %s4427, 1

</llo_original>
